<compile_context>
chip_gen: v7x
topology: tpu7x:2x2x1
jax: 0.10.0
libtpu: 0.0.40
codegen_flags: <defaults>
</compile_context>

<pallas_src>
import jax
import jax.numpy as jnp
from jax import lax
from jax.experimental import pallas as pl
from jax.experimental.pallas import tpu as pltpu


def down2d_kernel(x_ref, w1_ref, s1_ref, b1_ref, w2_ref, s2_ref, b2_ref,
                  o_ref, pad1_ref, pad2_ref, acc1_ref, acc2_ref):
    B, H, W, Cin = x_ref.shape
    Hh, Wh = H // 2, W // 2
    Cmid = w1_ref.shape[-1]          # lane-padded by the wrapper
    Cout = w2_ref.shape[-1]          # lane-padded by the wrapper
    M = B * Hh * Wh

    # ---- zero only the 1-pixel halo of the padded scratches (cheap; done every
    # step so each TensorCore's private scratch is always initialized) ----
    zrow1 = jnp.zeros((B, 1, Wh + 2, Cin), pad1_ref.dtype)
    zcol1 = jnp.zeros((B, Hh + 2, 1, Cin), pad1_ref.dtype)
    pad1_ref[:, 0:1, :, :] = zrow1
    pad1_ref[:, Hh + 1:Hh + 2, :, :] = zrow1
    pad1_ref[:, :, 0:1, :] = zcol1
    pad1_ref[:, :, Wh + 1:Wh + 2, :] = zcol1

    zrow2 = jnp.zeros((B, 1, Wh + 2, Cmid), pad2_ref.dtype)
    zcol2 = jnp.zeros((B, Hh + 2, 1, Cmid), pad2_ref.dtype)
    pad2_ref[:, 0:1, :, :] = zrow2
    pad2_ref[:, Hh + 1:Hh + 2, :, :] = zrow2
    pad2_ref[:, :, 0:1, :] = zcol2
    pad2_ref[:, :, Wh + 1:Wh + 2, :] = zcol2

    # ---------------- MaxPool2d(kernel=2, stride=2) ----------------
    # Four doubly-strided reads + elementwise max, written straight into the
    # padded scratch interior (single cast to compute_dtype).
    p00 = x_ref[:, pl.ds(0, Hh, stride=2), pl.ds(0, Wh, stride=2), :]
    p01 = x_ref[:, pl.ds(0, Hh, stride=2), pl.ds(1, Wh, stride=2), :]
    p10 = x_ref[:, pl.ds(1, Hh, stride=2), pl.ds(0, Wh, stride=2), :]
    p11 = x_ref[:, pl.ds(1, Hh, stride=2), pl.ds(1, Wh, stride=2), :]
    pooled = jnp.maximum(jnp.maximum(p00, p01), jnp.maximum(p10, p11))
    pad1_ref[:, 1:1 + Hh, 1:1 + Wh, :] = pooled.astype(pad1_ref.dtype)

    # ---------- Conv3x3 (pad=1) + folded BN + ReLU, #1 ----------
    # 9 accumulating tap matmuls into one f32 VMEM accumulator (no im2col copy).
    for t in range(9):
        dy, dx = t // 3, t % 3
        a_t = pad1_ref[:, dy:dy + Hh, dx:dx + Wh, :].reshape(M, Cin)
        part = jnp.dot(a_t, w1_ref[t], preferred_element_type=jnp.float32)
        if t == 0:
            acc1_ref[...] = part
        else:
            acc1_ref[...] += part
    h1 = jnp.maximum(acc1_ref[...] * s1_ref[...] + b1_ref[...], 0.0)   # (M, Cmid) f32
    # lane-dense store (Cmid is a multiple of 128)
    pad2_ref[:, 1:1 + Hh, 1:1 + Wh, :] = (
        h1.reshape(B, Hh, Wh, Cmid).astype(pad2_ref.dtype))

    # ---------- Conv3x3 (pad=1) + folded BN + ReLU, #2 ----------
    for t in range(9):
        dy, dx = t // 3, t % 3
        a_t = pad2_ref[:, dy:dy + Hh, dx:dx + Wh, :].reshape(M, Cmid)
        part = jnp.dot(a_t, w2_ref[t], preferred_element_type=jnp.float32)
        if t == 0:
            acc2_ref[...] = part
        else:
            acc2_ref[...] += part
    out = jnp.maximum(acc2_ref[...] * s2_ref[...] + b2_ref[...], 0.0)  # (M, Cout) f32

    o_ref[...] = out.reshape(B, Hh, Wh, Cout).astype(o_ref.dtype)


def down2d(x_nhwc, w1, s1, b1, w2, s2, b2, *,
           compute_dtype=jnp.float32, lane=128, target_m=512):
    """MaxPool2d(2) + DoubleConv with eval-mode BN folded into (scale, bias).

    x_nhwc: (N, H, W, Cin); w*: (3, 3, Ci, Co) HWIO; s*/b*: (Co,).
    compute_dtype: dtype fed to the MXU / stored in the padded scratches
                   (jnp.bfloat16 recommended on v6e/v7x); accumulation and the
                   BN/ReLU epilogue stay f32.  Default f32 keeps the 1e-4 check.
    """
    N, H, W, Cin = x_nhwc.shape
    assert H % 2 == 0 and W % 2 == 0, "MaxPool2d(2) requires even H and W"
    Hh, Wh = H // 2, W // 2
    Cmid = w1.shape[-1]
    Cout = w2.shape[-1]

    def lane_pad(c):
        return ((c + lane - 1) // lane) * lane

    Cmid_p = lane_pad(Cmid)
    Cout_p = lane_pad(Cout)

    # Lane-pad Cmid: zero-pad conv1 out-channels / BN1 params and the matching
    # conv2 input rows -> conv1->conv2 handoff stores and conv2 tap reads are
    # unmasked, and matmul #1 fills the MXU N dimension.
    if Cmid_p != Cmid:
        w1 = jnp.pad(w1, ((0, 0), (0, 0), (0, 0), (0, Cmid_p - Cmid)))
        s1 = jnp.pad(s1, (0, Cmid_p - Cmid))
        b1 = jnp.pad(b1, (0, Cmid_p - Cmid))
        w2 = jnp.pad(w2, ((0, 0), (0, 0), (0, Cmid_p - Cmid), (0, 0)))
    # Lane-dense output: pad Cout with zero weights/scale/bias; slice off after.
    if Cout_p != Cout:
        w2 = jnp.pad(w2, ((0, 0), (0, 0), (0, 0), (0, Cout_p - Cout)))
        s2 = jnp.pad(s2, (0, Cout_p - Cout))
        b2 = jnp.pad(b2, (0, Cout_p - Cout))

    # Fuse the batch into the matmul M dimension: largest divisor of N whose
    # block gives M = b_tile * Hh * Wh around `target_m` rows.
    bt_cap = max(1, target_m // max(1, Hh * Wh))
    b_tile = 1
    for d in range(min(N, bt_cap), 0, -1):
        if N % d == 0:
            b_tile = d
            break
    grid = (N // b_tile,)
    M = b_tile * Hh * Wh

    # Per-tap weight layout (tap-major) so each tap matmul reads a clean tile.
    w1r = w1.reshape(9, Cin, Cmid_p).astype(compute_dtype)
    w2r = w2.reshape(9, Cmid_p, Cout_p).astype(compute_dtype)
    s1r = s1.reshape(1, Cmid_p).astype(jnp.float32)
    b1r = b1.reshape(1, Cmid_p).astype(jnp.float32)
    s2r = s2.reshape(1, Cout_p).astype(jnp.float32)
    b2r = b2.reshape(1, Cout_p).astype(jnp.float32)

    # Input is fed to the kernel in compute_dtype (halves the input DMA for bf16).
    x_in = x_nhwc.astype(compute_dtype)
    cbytes = jnp.dtype(compute_dtype).itemsize
    obytes = jnp.dtype(x_nhwc.dtype).itemsize

    # Explicit scoped-VMEM limit from the working set (default 16/32 MiB would
    # gate the big blocks); leave headroom, cap below v7x's 64 MiB physical.
    in_block = b_tile * H * W * Cin * cbytes
    out_block = b_tile * Hh * Wh * Cout_p * obytes
    w_bytes = (9 * Cin * Cmid_p + 9 * Cmid_p * Cout_p) * cbytes
    sb_bytes = 2 * (Cmid_p + Cout_p) * 4
    pad_bytes = b_tile * (Hh + 2) * (Wh + 2) * (Cin + Cmid_p) * cbytes
    acc_bytes = M * (Cmid_p + Cout_p) * 4
    working = (2 * (in_block + out_block) + 2 * (w_bytes + sb_bytes)
               + pad_bytes + acc_bytes)
    vmem_limit = int(min(100 * 2**20, max(32 * 2**20, int(1.3 * working))))

    out = pl.pallas_call(
        down2d_kernel,
        out_shape=jax.ShapeDtypeStruct((N, Hh, Wh, Cout_p), x_nhwc.dtype),
        grid=grid,
        in_specs=[
            pl.BlockSpec((b_tile, H, W, Cin), lambda g: (g, 0, 0, 0)),
            pl.BlockSpec((9, Cin, Cmid_p), lambda g: (0, 0, 0)),
            pl.BlockSpec((1, Cmid_p), lambda g: (0, 0)),
            pl.BlockSpec((1, Cmid_p), lambda g: (0, 0)),
            pl.BlockSpec((9, Cmid_p, Cout_p), lambda g: (0, 0, 0)),
            pl.BlockSpec((1, Cout_p), lambda g: (0, 0)),
            pl.BlockSpec((1, Cout_p), lambda g: (0, 0)),
        ],
        out_specs=pl.BlockSpec((b_tile, Hh, Wh, Cout_p), lambda g: (g, 0, 0, 0)),
        scratch_shapes=[
            pltpu.VMEM((b_tile, Hh + 2, Wh + 2, Cin), compute_dtype),     # padded pool out
            pltpu.VMEM((b_tile, Hh + 2, Wh + 2, Cmid_p), compute_dtype),  # padded conv1 out
            pltpu.VMEM((M, Cmid_p), jnp.float32),                         # conv1 accumulator
            pltpu.VMEM((M, Cout_p), jnp.float32),                         # conv2 accumulator
        ],
        compiler_params=pltpu.CompilerParams(
            dimension_semantics=("parallel",),
            vmem_limit_bytes=vmem_limit),
    )(x_in, w1r, s1r, b1r, w2r, s2r, b2r)

    return out[..., :Cout] if Cout_p != Cout else out


def reference_nhwc(x, w1, s1, b1, w2, s2, b2):
    """Pure-JAX reference (NHWC) of MaxPool2d(2) + DoubleConv with folded BN."""
    p = lax.reduce_window(x, -jnp.inf, lax.max,
                          window_dimensions=(1, 2, 2, 1),
                          window_strides=(1, 2, 2, 1), padding="VALID")

    def conv_bn_relu(h, w, s, b):
        y = lax.conv_general_dilated(
            h, w, window_strides=(1, 1), padding="SAME",
            dimension_numbers=("NHWC", "HWIO", "NHWC"),
            precision=lax.Precision.HIGHEST)
        return jnp.maximum(y * s + b, 0.0)

    return conv_bn_relu(conv_bn_relu(p, w1, s1, b1), w2, s2, b2)


def fold_bn(gamma, beta, mean, var, eps=1e-5):
    scale = gamma / jnp.sqrt(var + eps)
    bias = beta - mean * scale
    return scale, bias


if __name__ == "__main__":
    N, Cin, Cout, H, W = 2, 4, 8, 16, 16
    Cmid = Cout

    key = jax.random.PRNGKey(0)
    ks = jax.random.split(key, 11)

    # input in PyTorch NCHW convention, transposed to kernel layout NHWC
    x_nchw = jax.random.normal(ks[0], (N, Cin, H, W), dtype=jnp.float32)
    x_nhwc = jnp.transpose(x_nchw, (0, 2, 3, 1))

    # deterministic synthetic parameters (conv bias=False, BN in eval mode)
    w1 = jax.random.normal(ks[1], (3, 3, Cin, Cmid), jnp.float32) / jnp.sqrt(9.0 * Cin)
    w2 = jax.random.normal(ks[2], (3, 3, Cmid, Cout), jnp.float32) / jnp.sqrt(9.0 * Cmid)
    g1 = 1.0 + 0.1 * jax.random.normal(ks[3], (Cmid,), jnp.float32)
    be1 = 0.1 * jax.random.normal(ks[4], (Cmid,), jnp.float32)
    m1 = 0.1 * jax.random.normal(ks[5], (Cmid,), jnp.float32)
    v1 = 0.9 + 0.2 * jnp.abs(jax.random.normal(ks[6], (Cmid,), jnp.float32))
    g2 = 1.0 + 0.1 * jax.random.normal(ks[7], (Cout,), jnp.float32)
    be2 = 0.1 * jax.random.normal(ks[8], (Cout,), jnp.float32)
    m2 = 0.1 * jax.random.normal(ks[9], (Cout,), jnp.float32)
    v2 = 0.9 + 0.2 * jnp.abs(jax.random.normal(ks[10], (Cout,), jnp.float32))

    s1, b1 = fold_bn(g1, be1, m1, v1)
    s2, b2 = fold_bn(g2, be2, m2, v2)

    y = down2d(x_nhwc, w1, s1, b1, w2, s2, b2)       # f32 MXU path (bit-accurate test)
    y = jax.block_until_ready(y)                     # (N, H/2, W/2, Cout) NHWC

    y_ref = reference_nhwc(x_nhwc, w1, s1, b1, w2, s2, b2)
    assert y.shape == (N, H // 2, W // 2, Cout)
    assert jnp.allclose(y, y_ref, atol=1e-4, rtol=1e-4), \
        f"max abs err {jnp.max(jnp.abs(y - y_ref))}"

    # back to PyTorch NCHW convention for the module's output
    y_nchw = jnp.transpose(y, (0, 3, 1, 2))
    assert y_nchw.shape == (N, Cout, H // 2, W // 2)

    print("KERNEL_OK")
</pallas_src>

<mosaic_0001>
module attributes {stable_mosaic.version = 11 : i64} {
  func.func @down2d_kernel(%arg0: i32, %arg1: memref<2x16x16x4xf32, #tpu.memory_space<vmem>>, %arg2: memref<9x4x128xf32, #tpu.memory_space<vmem>>, %arg3: memref<1x128xf32, #tpu.memory_space<vmem>>, %arg4: memref<1x128xf32, #tpu.memory_space<vmem>>, %arg5: memref<9x128x128xf32, #tpu.memory_space<vmem>>, %arg6: memref<1x128xf32, #tpu.memory_space<vmem>>, %arg7: memref<1x128xf32, #tpu.memory_space<vmem>>, %arg8: memref<2x8x8x128xf32, #tpu.memory_space<vmem>>, %arg9: memref<2x10x10x4xf32, #tpu.memory_space<vmem>>, %arg10: memref<2x10x10x128xf32, #tpu.memory_space<vmem>>, %arg11: memref<128x128xf32, #tpu.memory_space<vmem>>, %arg12: memref<128x128xf32, #tpu.memory_space<vmem>>) attributes {dimension_semantics = [#tpu.dimension_semantics<parallel>], iteration_bounds = array<i64: 1>, scalar_prefetch = 0 : i64, scratch_operands = 4 : i64, tpu.core_type = #tpu.core_type<tc>, window_params = [{transform_indices = @transform_0, window_bounds = array<i64: 2, 16, 16, 4>}, {pipeline_mode = #tpu.pipeline_mode<synchronous>, transform_indices = @transform_1, window_bounds = array<i64: 9, 4, 128>}, {pipeline_mode = #tpu.pipeline_mode<synchronous>, transform_indices = @transform_2, window_bounds = array<i64: 1, 128>}, {pipeline_mode = #tpu.pipeline_mode<synchronous>, transform_indices = @transform_3, window_bounds = array<i64: 1, 128>}, {pipeline_mode = #tpu.pipeline_mode<synchronous>, transform_indices = @transform_4, window_bounds = array<i64: 9, 128, 128>}, {pipeline_mode = #tpu.pipeline_mode<synchronous>, transform_indices = @transform_5, window_bounds = array<i64: 1, 128>}, {pipeline_mode = #tpu.pipeline_mode<synchronous>, transform_indices = @transform_6, window_bounds = array<i64: 1, 128>}, {transform_indices = @transform_7, window_bounds = array<i64: 2, 8, 8, 128>}]} {
    %cst = arith.constant 0.000000e+00 : f32
    %0 = vector.broadcast %cst : f32 to vector<2x1x10x4xf32>
    %cst_0 = arith.constant 0.000000e+00 : f32
    %1 = vector.broadcast %cst_0 : f32 to vector<2x10x1x4xf32>
    %c0 = arith.constant 0 : index
    %c0_1 = arith.constant 0 : index
    %c0_2 = arith.constant 0 : index
    %c0_3 = arith.constant 0 : index
    %2 = vector.load %arg9[%c0, %c0_1, %c0_2, %c0_3] : memref<2x10x10x4xf32, #tpu.memory_space<vmem>>, vector<2x1x10x4xf32>
    tpu.vector_store %arg9[%c0, %c0_1, %c0_2, %c0_3], %0 {strides = array<i32>} : memref<2x10x10x4xf32, #tpu.memory_space<vmem>>, vector<2x1x10x4xf32>,
    %c0_4 = arith.constant 0 : index
    %c9 = arith.constant 9 : index
    %c0_5 = arith.constant 0 : index
    %c0_6 = arith.constant 0 : index
    %3 = vector.load %arg9[%c0_4, %c9, %c0_5, %c0_6] : memref<2x10x10x4xf32, #tpu.memory_space<vmem>>, vector<2x1x10x4xf32>
    tpu.vector_store %arg9[%c0_4, %c9, %c0_5, %c0_6], %0 {strides = array<i32>} : memref<2x10x10x4xf32, #tpu.memory_space<vmem>>, vector<2x1x10x4xf32>,
    %c0_7 = arith.constant 0 : index
    %c0_8 = arith.constant 0 : index
    %c0_9 = arith.constant 0 : index
    %c0_10 = arith.constant 0 : index
    %4 = vector.load %arg9[%c0_7, %c0_8, %c0_9, %c0_10] : memref<2x10x10x4xf32, #tpu.memory_space<vmem>>, vector<2x10x1x4xf32>
    tpu.vector_store %arg9[%c0_7, %c0_8, %c0_9, %c0_10], %1 {strides = array<i32>} : memref<2x10x10x4xf32, #tpu.memory_space<vmem>>, vector<2x10x1x4xf32>,
    %c0_11 = arith.constant 0 : index
    %c0_12 = arith.constant 0 : index
    %c9_13 = arith.constant 9 : index
    %c0_14 = arith.constant 0 : index
    %5 = vector.load %arg9[%c0_11, %c0_12, %c9_13, %c0_14] : memref<2x10x10x4xf32, #tpu.memory_space<vmem>>, vector<2x10x1x4xf32>
    tpu.vector_store %arg9[%c0_11, %c0_12, %c9_13, %c0_14], %1 {strides = array<i32>} : memref<2x10x10x4xf32, #tpu.memory_space<vmem>>, vector<2x10x1x4xf32>,
    %cst_15 = arith.constant 0.000000e+00 : f32
    %6 = vector.broadcast %cst_15 : f32 to vector<2x1x10x128xf32>
    %cst_16 = arith.constant 0.000000e+00 : f32
    %7 = vector.broadcast %cst_16 : f32 to vector<2x10x1x128xf32>
    %c0_17 = arith.constant 0 : index
    %c0_18 = arith.constant 0 : index
    %c0_19 = arith.constant 0 : index
    %c0_20 = arith.constant 0 : index
    %8 = vector.load %arg10[%c0_17, %c0_18, %c0_19, %c0_20] : memref<2x10x10x128xf32, #tpu.memory_space<vmem>>, vector<2x1x10x128xf32>
    tpu.vector_store %arg10[%c0_17, %c0_18, %c0_19, %c0_20], %6 {strides = array<i32>} : memref<2x10x10x128xf32, #tpu.memory_space<vmem>>, vector<2x1x10x128xf32>,
    %c0_21 = arith.constant 0 : index
    %c9_22 = arith.constant 9 : index
    %c0_23 = arith.constant 0 : index
    %c0_24 = arith.constant 0 : index
    %9 = vector.load %arg10[%c0_21, %c9_22, %c0_23, %c0_24] : memref<2x10x10x128xf32, #tpu.memory_space<vmem>>, vector<2x1x10x128xf32>
    tpu.vector_store %arg10[%c0_21, %c9_22, %c0_23, %c0_24], %6 {strides = array<i32>} : memref<2x10x10x128xf32, #tpu.memory_space<vmem>>, vector<2x1x10x128xf32>,
    %c0_25 = arith.constant 0 : index
    %c0_26 = arith.constant 0 : index
    %c0_27 = arith.constant 0 : index
    %c0_28 = arith.constant 0 : index
    %10 = vector.load %arg10[%c0_25, %c0_26, %c0_27, %c0_28] : memref<2x10x10x128xf32, #tpu.memory_space<vmem>>, vector<2x10x1x128xf32>
    tpu.vector_store %arg10[%c0_25, %c0_26, %c0_27, %c0_28], %7 {strides = array<i32>} : memref<2x10x10x128xf32, #tpu.memory_space<vmem>>, vector<2x10x1x128xf32>,
    %c0_29 = arith.constant 0 : index
    %c0_30 = arith.constant 0 : index
    %c9_31 = arith.constant 9 : index
    %c0_32 = arith.constant 0 : index
    %11 = vector.load %arg10[%c0_29, %c0_30, %c9_31, %c0_32] : memref<2x10x10x128xf32, #tpu.memory_space<vmem>>, vector<2x10x1x128xf32>
    tpu.vector_store %arg10[%c0_29, %c0_30, %c9_31, %c0_32], %7 {strides = array<i32>} : memref<2x10x10x128xf32, #tpu.memory_space<vmem>>, vector<2x10x1x128xf32>,
    %c0_33 = arith.constant 0 : index
    %c0_34 = arith.constant 0 : index
    %c0_35 = arith.constant 0 : index
    %c0_36 = arith.constant 0 : index
    %12 = tpu.strided_load %arg1[%c0_33, %c0_34, %c0_35, %c0_36] {strides = array<i32: 1, 2, 2, 1>} : memref<2x16x16x4xf32, #tpu.memory_space<vmem>>, vector<2x8x8x4xf32>
    %c0_37 = arith.constant 0 : index
    %c0_38 = arith.constant 0 : index
    %c1 = arith.constant 1 : index
    %c0_39 = arith.constant 0 : index
    %13 = tpu.strided_load %arg1[%c0_37, %c0_38, %c1, %c0_39] {strides = array<i32: 1, 2, 2, 1>} : memref<2x16x16x4xf32, #tpu.memory_space<vmem>>, vector<2x8x8x4xf32>
    %c0_40 = arith.constant 0 : index
    %c1_41 = arith.constant 1 : index
    %c0_42 = arith.constant 0 : index
    %c0_43 = arith.constant 0 : index
    %14 = tpu.strided_load %arg1[%c0_40, %c1_41, %c0_42, %c0_43] {strides = array<i32: 1, 2, 2, 1>} : memref<2x16x16x4xf32, #tpu.memory_space<vmem>>, vector<2x8x8x4xf32>
    %c0_44 = arith.constant 0 : index
    %c1_45 = arith.constant 1 : index
    %c1_46 = arith.constant 1 : index
    %c0_47 = arith.constant 0 : index
    %15 = tpu.strided_load %arg1[%c0_44, %c1_45, %c1_46, %c0_47] {strides = array<i32: 1, 2, 2, 1>} : memref<2x16x16x4xf32, #tpu.memory_space<vmem>>, vector<2x8x8x4xf32>
    %16 = arith.maximumf %12, %13 : vector<2x8x8x4xf32>
    %17 = arith.maximumf %14, %15 : vector<2x8x8x4xf32>
    %18 = arith.maximumf %16, %17 : vector<2x8x8x4xf32>
    %c0_48 = arith.constant 0 : index
    %c1_49 = arith.constant 1 : index
    %c1_50 = arith.constant 1 : index
    %c0_51 = arith.constant 0 : index
    %19 = vector.load %arg9[%c0_48, %c1_49, %c1_50, %c0_51] : memref<2x10x10x4xf32, #tpu.memory_space<vmem>>, vector<2x8x8x4xf32>
    tpu.vector_store %arg9[%c0_48, %c1_49, %c1_50, %c0_51], %18 {strides = array<i32>} : memref<2x10x10x4xf32, #tpu.memory_space<vmem>>, vector<2x8x8x4xf32>,
    %c0_52 = arith.constant 0 : index
    %c0_53 = arith.constant 0 : index
    %c0_54 = arith.constant 0 : index
    %c0_55 = arith.constant 0 : index
    %20 = vector.load %arg9[%c0_52, %c0_53, %c0_54, %c0_55] : memref<2x10x10x4xf32, #tpu.memory_space<vmem>>, vector<2x8x8x4xf32>
    %21 = vector.shape_cast %20 : vector<2x8x8x4xf32> to vector<128x4xf32>
    %c0_56 = arith.constant 0 : index
    %c0_57 = arith.constant 0 : index
    %c0_58 = arith.constant 0 : index
    %22 = vector.load %arg2[%c0_56, %c0_57, %c0_58] : memref<9x4x128xf32, #tpu.memory_space<vmem>>, vector<1x4x128xf32>
    %23 = vector.shape_cast %22 : vector<1x4x128xf32> to vector<4x128xf32>
    %cst_59 = arith.constant dense<0.000000e+00> : vector<128x128xf32>
    %24 = tpu.matmul %21, %23, %cst_59 {dimension_numbers = #tpu.dot_dimension_numbers<[1], [0], [0], [1], [0, 0, 1, 1], [], []>} : vector<128x4xf32>, vector<4x128xf32>, vector<128x128xf32> -> vector<128x128xf32>
    %c0_60 = arith.constant 0 : index
    %c0_61 = arith.constant 0 : index
    %25 = vector.load %arg11[%c0_60, %c0_61] : memref<128x128xf32, #tpu.memory_space<vmem>>, vector<128x128xf32>
    tpu.vector_store %arg11[%c0_60, %c0_61], %24 {strides = array<i32>} : memref<128x128xf32, #tpu.memory_space<vmem>>, vector<128x128xf32>,
    %c0_62 = arith.constant 0 : index
    %c0_63 = arith.constant 0 : index
    %c1_64 = arith.constant 1 : index
    %c0_65 = arith.constant 0 : index
    %26 = vector.load %arg9[%c0_62, %c0_63, %c1_64, %c0_65] : memref<2x10x10x4xf32, #tpu.memory_space<vmem>>, vector<2x8x8x4xf32>
    %27 = vector.shape_cast %26 : vector<2x8x8x4xf32> to vector<128x4xf32>
    %c1_66 = arith.constant 1 : index
    %c0_67 = arith.constant 0 : index
    %c0_68 = arith.constant 0 : index
    %28 = vector.load %arg2[%c1_66, %c0_67, %c0_68] : memref<9x4x128xf32, #tpu.memory_space<vmem>>, vector<1x4x128xf32>
    %29 = vector.shape_cast %28 : vector<1x4x128xf32> to vector<4x128xf32>
    %cst_69 = arith.constant dense<0.000000e+00> : vector<128x128xf32>
    %30 = tpu.matmul %27, %29, %cst_69 {dimension_numbers = #tpu.dot_dimension_numbers<[1], [0], [0], [1], [0, 0, 1, 1], [], []>} : vector<128x4xf32>, vector<4x128xf32>, vector<128x128xf32> -> vector<128x128xf32>
    %c0_70 = arith.constant 0 : index
    %c0_71 = arith.constant 0 : index
    %31 = vector.load %arg11[%c0_70, %c0_71] : memref<128x128xf32, #tpu.memory_space<vmem>>, vector<128x128xf32>
    %32 = arith.addf %31, %30 : vector<128x128xf32>
    %c0_72 = arith.constant 0 : index
    %c0_73 = arith.constant 0 : index
    %33 = vector.load %arg11[%c0_72, %c0_73] : memref<128x128xf32, #tpu.memory_space<vmem>>, vector<128x128xf32>
    tpu.vector_store %arg11[%c0_72, %c0_73], %32 {strides = array<i32>} : memref<128x128xf32, #tpu.memory_space<vmem>>, vector<128x128xf32>,
    %c0_74 = arith.constant 0 : index
    %c0_75 = arith.constant 0 : index
    %c2 = arith.constant 2 : index
    %c0_76 = arith.constant 0 : index
    %34 = vector.load %arg9[%c0_74, %c0_75, %c2, %c0_76] : memref<2x10x10x4xf32, #tpu.memory_space<vmem>>, vector<2x8x8x4xf32>
    %35 = vector.shape_cast %34 : vector<2x8x8x4xf32> to vector<128x4xf32>
    %c2_77 = arith.constant 2 : index
    %c0_78 = arith.constant 0 : index
    %c0_79 = arith.constant 0 : index
    %36 = vector.load %arg2[%c2_77, %c0_78, %c0_79] : memref<9x4x128xf32, #tpu.memory_space<vmem>>, vector<1x4x128xf32>
    %37 = vector.shape_cast %36 : vector<1x4x128xf32> to vector<4x128xf32>
    %cst_80 = arith.constant dense<0.000000e+00> : vector<128x128xf32>
    %38 = tpu.matmul %35, %37, %cst_80 {dimension_numbers = #tpu.dot_dimension_numbers<[1], [0], [0], [1], [0, 0, 1, 1], [], []>} : vector<128x4xf32>, vector<4x128xf32>, vector<128x128xf32> -> vector<128x128xf32>
    %c0_81 = arith.constant 0 : index
    %c0_82 = arith.constant 0 : index
    %39 = vector.load %arg11[%c0_81, %c0_82] : memref<128x128xf32, #tpu.memory_space<vmem>>, vector<128x128xf32>
    %40 = arith.addf %39, %38 : vector<128x128xf32>
    %c0_83 = arith.constant 0 : index
    %c0_84 = arith.constant 0 : index
    %41 = vector.load %arg11[%c0_83, %c0_84] : memref<128x128xf32, #tpu.memory_space<vmem>>, vector<128x128xf32>
    tpu.vector_store %arg11[%c0_83, %c0_84], %40 {strides = array<i32>} : memref<128x128xf32, #tpu.memory_space<vmem>>, vector<128x128xf32>,
    %c0_85 = arith.constant 0 : index
    %c1_86 = arith.constant 1 : index
    %c0_87 = arith.constant 0 : index
    %c0_88 = arith.constant 0 : index
    %42 = vector.load %arg9[%c0_85, %c1_86, %c0_87, %c0_88] : memref<2x10x10x4xf32, #tpu.memory_space<vmem>>, vector<2x8x8x4xf32>
    %43 = vector.shape_cast %42 : vector<2x8x8x4xf32> to vector<128x4xf32>
    %c3 = arith.constant 3 : index
    %c0_89 = arith.constant 0 : index
    %c0_90 = arith.constant 0 : index
    %44 = vector.load %arg2[%c3, %c0_89, %c0_90] : memref<9x4x128xf32, #tpu.memory_space<vmem>>, vector<1x4x128xf32>
    %45 = vector.shape_cast %44 : vector<1x4x128xf32> to vector<4x128xf32>
    %cst_91 = arith.constant dense<0.000000e+00> : vector<128x128xf32>
    %46 = tpu.matmul %43, %45, %cst_91 {dimension_numbers = #tpu.dot_dimension_numbers<[1], [0], [0], [1], [0, 0, 1, 1], [], []>} : vector<128x4xf32>, vector<4x128xf32>, vector<128x128xf32> -> vector<128x128xf32>
    %c0_92 = arith.constant 0 : index
    %c0_93 = arith.constant 0 : index
    %47 = vector.load %arg11[%c0_92, %c0_93] : memref<128x128xf32, #tpu.memory_space<vmem>>, vector<128x128xf32>
    %48 = arith.addf %47, %46 : vector<128x128xf32>
    %c0_94 = arith.constant 0 : index
    %c0_95 = arith.constant 0 : index
    %49 = vector.load %arg11[%c0_94, %c0_95] : memref<128x128xf32, #tpu.memory_space<vmem>>, vector<128x128xf32>
    tpu.vector_store %arg11[%c0_94, %c0_95], %48 {strides = array<i32>} : memref<128x128xf32, #tpu.memory_space<vmem>>, vector<128x128xf32>,
    %c0_96 = arith.constant 0 : index
    %c1_97 = arith.constant 1 : index
    %c1_98 = arith.constant 1 : index
    %c0_99 = arith.constant 0 : index
    %50 = vector.load %arg9[%c0_96, %c1_97, %c1_98, %c0_99] : memref<2x10x10x4xf32, #tpu.memory_space<vmem>>, vector<2x8x8x4xf32>
    %51 = vector.shape_cast %50 : vector<2x8x8x4xf32> to vector<128x4xf32>
    %c4 = arith.constant 4 : index
    %c0_100 = arith.constant 0 : index
    %c0_101 = arith.constant 0 : index
    %52 = vector.load %arg2[%c4, %c0_100, %c0_101] : memref<9x4x128xf32, #tpu.memory_space<vmem>>, vector<1x4x128xf32>
    %53 = vector.shape_cast %52 : vector<1x4x128xf32> to vector<4x128xf32>
    %cst_102 = arith.constant dense<0.000000e+00> : vector<128x128xf32>
    %54 = tpu.matmul %51, %53, %cst_102 {dimension_numbers = #tpu.dot_dimension_numbers<[1], [0], [0], [1], [0, 0, 1, 1], [], []>} : vector<128x4xf32>, vector<4x128xf32>, vector<128x128xf32> -> vector<128x128xf32>
    %c0_103 = arith.constant 0 : index
    %c0_104 = arith.constant 0 : index
    %55 = vector.load %arg11[%c0_103, %c0_104] : memref<128x128xf32, #tpu.memory_space<vmem>>, vector<128x128xf32>
    %56 = arith.addf %55, %54 : vector<128x128xf32>
    %c0_105 = arith.constant 0 : index
    %c0_106 = arith.constant 0 : index
    %57 = vector.load %arg11[%c0_105, %c0_106] : memref<128x128xf32, #tpu.memory_space<vmem>>, vector<128x128xf32>
    tpu.vector_store %arg11[%c0_105, %c0_106], %56 {strides = array<i32>} : memref<128x128xf32, #tpu.memory_space<vmem>>, vector<128x128xf32>,
    %c0_107 = arith.constant 0 : index
    %c1_108 = arith.constant 1 : index
    %c2_109 = arith.constant 2 : index
    %c0_110 = arith.constant 0 : index
    %58 = vector.load %arg9[%c0_107, %c1_108, %c2_109, %c0_110] : memref<2x10x10x4xf32, #tpu.memory_space<vmem>>, vector<2x8x8x4xf32>
    %59 = vector.shape_cast %58 : vector<2x8x8x4xf32> to vector<128x4xf32>
    %c5 = arith.constant 5 : index
    %c0_111 = arith.constant 0 : index
    %c0_112 = arith.constant 0 : index
    %60 = vector.load %arg2[%c5, %c0_111, %c0_112] : memref<9x4x128xf32, #tpu.memory_space<vmem>>, vector<1x4x128xf32>
    %61 = vector.shape_cast %60 : vector<1x4x128xf32> to vector<4x128xf32>
    %cst_113 = arith.constant dense<0.000000e+00> : vector<128x128xf32>
    %62 = tpu.matmul %59, %61, %cst_113 {dimension_numbers = #tpu.dot_dimension_numbers<[1], [0], [0], [1], [0, 0, 1, 1], [], []>} : vector<128x4xf32>, vector<4x128xf32>, vector<128x128xf32> -> vector<128x128xf32>
    %c0_114 = arith.constant 0 : index
    %c0_115 = arith.constant 0 : index
    %63 = vector.load %arg11[%c0_114, %c0_115] : memref<128x128xf32, #tpu.memory_space<vmem>>, vector<128x128xf32>
    %64 = arith.addf %63, %62 : vector<128x128xf32>
    %c0_116 = arith.constant 0 : index
    %c0_117 = arith.constant 0 : index
    %65 = vector.load %arg11[%c0_116, %c0_117] : memref<128x128xf32, #tpu.memory_space<vmem>>, vector<128x128xf32>
    tpu.vector_store %arg11[%c0_116, %c0_117], %64 {strides = array<i32>} : memref<128x128xf32, #tpu.memory_space<vmem>>, vector<128x128xf32>,
    %c0_118 = arith.constant 0 : index
    %c2_119 = arith.constant 2 : index
    %c0_120 = arith.constant 0 : index
    %c0_121 = arith.constant 0 : index
    %66 = vector.load %arg9[%c0_118, %c2_119, %c0_120, %c0_121] : memref<2x10x10x4xf32, #tpu.memory_space<vmem>>, vector<2x8x8x4xf32>
    %67 = vector.shape_cast %66 : vector<2x8x8x4xf32> to vector<128x4xf32>
    %c6 = arith.constant 6 : index
    %c0_122 = arith.constant 0 : index
    %c0_123 = arith.constant 0 : index
    %68 = vector.load %arg2[%c6, %c0_122, %c0_123] : memref<9x4x128xf32, #tpu.memory_space<vmem>>, vector<1x4x128xf32>
    %69 = vector.shape_cast %68 : vector<1x4x128xf32> to vector<4x128xf32>
    %cst_124 = arith.constant dense<0.000000e+00> : vector<128x128xf32>
    %70 = tpu.matmul %67, %69, %cst_124 {dimension_numbers = #tpu.dot_dimension_numbers<[1], [0], [0], [1], [0, 0, 1, 1], [], []>} : vector<128x4xf32>, vector<4x128xf32>, vector<128x128xf32> -> vector<128x128xf32>
    %c0_125 = arith.constant 0 : index
    %c0_126 = arith.constant 0 : index
    %71 = vector.load %arg11[%c0_125, %c0_126] : memref<128x128xf32, #tpu.memory_space<vmem>>, vector<128x128xf32>
    %72 = arith.addf %71, %70 : vector<128x128xf32>
    %c0_127 = arith.constant 0 : index
    %c0_128 = arith.constant 0 : index
    %73 = vector.load %arg11[%c0_127, %c0_128] : memref<128x128xf32, #tpu.memory_space<vmem>>, vector<128x128xf32>
    tpu.vector_store %arg11[%c0_127, %c0_128], %72 {strides = array<i32>} : memref<128x128xf32, #tpu.memory_space<vmem>>, vector<128x128xf32>,
    %c0_129 = arith.constant 0 : index
    %c2_130 = arith.constant 2 : index
    %c1_131 = arith.constant 1 : index
    %c0_132 = arith.constant 0 : index
    %74 = vector.load %arg9[%c0_129, %c2_130, %c1_131, %c0_132] : memref<2x10x10x4xf32, #tpu.memory_space<vmem>>, vector<2x8x8x4xf32>
    %75 = vector.shape_cast %74 : vector<2x8x8x4xf32> to vector<128x4xf32>
    %c7 = arith.constant 7 : index
    %c0_133 = arith.constant 0 : index
    %c0_134 = arith.constant 0 : index
    %76 = vector.load %arg2[%c7, %c0_133, %c0_134] : memref<9x4x128xf32, #tpu.memory_space<vmem>>, vector<1x4x128xf32>
    %77 = vector.shape_cast %76 : vector<1x4x128xf32> to vector<4x128xf32>
    %cst_135 = arith.constant dense<0.000000e+00> : vector<128x128xf32>
    %78 = tpu.matmul %75, %77, %cst_135 {dimension_numbers = #tpu.dot_dimension_numbers<[1], [0], [0], [1], [0, 0, 1, 1], [], []>} : vector<128x4xf32>, vector<4x128xf32>, vector<128x128xf32> -> vector<128x128xf32>
    %c0_136 = arith.constant 0 : index
    %c0_137 = arith.constant 0 : index
    %79 = vector.load %arg11[%c0_136, %c0_137] : memref<128x128xf32, #tpu.memory_space<vmem>>, vector<128x128xf32>
    %80 = arith.addf %79, %78 : vector<128x128xf32>
    %c0_138 = arith.constant 0 : index
    %c0_139 = arith.constant 0 : index
    %81 = vector.load %arg11[%c0_138, %c0_139] : memref<128x128xf32, #tpu.memory_space<vmem>>, vector<128x128xf32>
    tpu.vector_store %arg11[%c0_138, %c0_139], %80 {strides = array<i32>} : memref<128x128xf32, #tpu.memory_space<vmem>>, vector<128x128xf32>,
    %c0_140 = arith.constant 0 : index
    %c2_141 = arith.constant 2 : index
    %c2_142 = arith.constant 2 : index
    %c0_143 = arith.constant 0 : index
    %82 = vector.load %arg9[%c0_140, %c2_141, %c2_142, %c0_143] : memref<2x10x10x4xf32, #tpu.memory_space<vmem>>, vector<2x8x8x4xf32>
    %83 = vector.shape_cast %82 : vector<2x8x8x4xf32> to vector<128x4xf32>
    %c8 = arith.constant 8 : index
    %c0_144 = arith.constant 0 : index
    %c0_145 = arith.constant 0 : index
    %84 = vector.load %arg2[%c8, %c0_144, %c0_145] : memref<9x4x128xf32, #tpu.memory_space<vmem>>, vector<1x4x128xf32>
    %85 = vector.shape_cast %84 : vector<1x4x128xf32> to vector<4x128xf32>
    %cst_146 = arith.constant dense<0.000000e+00> : vector<128x128xf32>
    %86 = tpu.matmul %83, %85, %cst_146 {dimension_numbers = #tpu.dot_dimension_numbers<[1], [0], [0], [1], [0, 0, 1, 1], [], []>} : vector<128x4xf32>, vector<4x128xf32>, vector<128x128xf32> -> vector<128x128xf32>
    %c0_147 = arith.constant 0 : index
    %c0_148 = arith.constant 0 : index
    %87 = vector.load %arg11[%c0_147, %c0_148] : memref<128x128xf32, #tpu.memory_space<vmem>>, vector<128x128xf32>
    %88 = arith.addf %87, %86 : vector<128x128xf32>
    %c0_149 = arith.constant 0 : index
    %c0_150 = arith.constant 0 : index
    %89 = vector.load %arg11[%c0_149, %c0_150] : memref<128x128xf32, #tpu.memory_space<vmem>>, vector<128x128xf32>
    tpu.vector_store %arg11[%c0_149, %c0_150], %88 {strides = array<i32>} : memref<128x128xf32, #tpu.memory_space<vmem>>, vector<128x128xf32>,
    %c0_151 = arith.constant 0 : index
    %c0_152 = arith.constant 0 : index
    %90 = vector.load %arg11[%c0_151, %c0_152] : memref<128x128xf32, #tpu.memory_space<vmem>>, vector<128x128xf32>
    %c0_153 = arith.constant 0 : index
    %c0_154 = arith.constant 0 : index
    %91 = vector.load %arg3[%c0_153, %c0_154] : memref<1x128xf32, #tpu.memory_space<vmem>>, vector<1x128xf32>
    %92 = vector.broadcast %91 : vector<1x128xf32> to vector<128x128xf32>
    %93 = arith.mulf %90, %92 : vector<128x128xf32>
    %c0_155 = arith.constant 0 : index
    %c0_156 = arith.constant 0 : index
    %94 = vector.load %arg4[%c0_155, %c0_156] : memref<1x128xf32, #tpu.memory_space<vmem>>, vector<1x128xf32>
    %95 = vector.broadcast %94 : vector<1x128xf32> to vector<128x128xf32>
    %96 = arith.addf %93, %95 : vector<128x128xf32>
    %cst_157 = arith.constant 0.000000e+00 : f32
    %97 = vector.broadcast %cst_157 : f32 to vector<128x128xf32>
    %98 = arith.maximumf %96, %97 : vector<128x128xf32>
    %99 = vector.shape_cast %98 : vector<128x128xf32> to vector<2x8x8x128xf32>
    %c0_158 = arith.constant 0 : index
    %c1_159 = arith.constant 1 : index
    %c1_160 = arith.constant 1 : index
    %c0_161 = arith.constant 0 : index
    %100 = vector.load %arg10[%c0_158, %c1_159, %c1_160, %c0_161] : memref<2x10x10x128xf32, #tpu.memory_space<vmem>>, vector<2x8x8x128xf32>
    tpu.vector_store %arg10[%c0_158, %c1_159, %c1_160, %c0_161], %99 {strides = array<i32>} : memref<2x10x10x128xf32, #tpu.memory_space<vmem>>, vector<2x8x8x128xf32>,
    %c0_162 = arith.constant 0 : index
    %c0_163 = arith.constant 0 : index
    %c0_164 = arith.constant 0 : index
    %c0_165 = arith.constant 0 : index
    %101 = vector.load %arg10[%c0_162, %c0_163, %c0_164, %c0_165] : memref<2x10x10x128xf32, #tpu.memory_space<vmem>>, vector<2x8x8x128xf32>
    %102 = vector.shape_cast %101 : vector<2x8x8x128xf32> to vector<128x128xf32>
    %c0_166 = arith.constant 0 : index
    %c0_167 = arith.constant 0 : index
    %c0_168 = arith.constant 0 : index
    %103 = vector.load %arg5[%c0_166, %c0_167, %c0_168] : memref<9x128x128xf32, #tpu.memory_space<vmem>>, vector<1x128x128xf32>
    %104 = vector.shape_cast %103 : vector<1x128x128xf32> to vector<128x128xf32>
    %cst_169 = arith.constant dense<0.000000e+00> : vector<128x128xf32>
    %105 = tpu.matmul %102, %104, %cst_169 {dimension_numbers = #tpu.dot_dimension_numbers<[1], [0], [0], [1], [0, 0, 1, 1], [], []>} : vector<128x128xf32>, vector<128x128xf32>, vector<128x128xf32> -> vector<128x128xf32>
    %c0_170 = arith.constant 0 : index
    %c0_171 = arith.constant 0 : index
    %106 = vector.load %arg12[%c0_170, %c0_171] : memref<128x128xf32, #tpu.memory_space<vmem>>, vector<128x128xf32>
    tpu.vector_store %arg12[%c0_170, %c0_171], %105 {strides = array<i32>} : memref<128x128xf32, #tpu.memory_space<vmem>>, vector<128x128xf32>,
    %c0_172 = arith.constant 0 : index
    %c0_173 = arith.constant 0 : index
    %c1_174 = arith.constant 1 : index
    %c0_175 = arith.constant 0 : index
    %107 = vector.load %arg10[%c0_172, %c0_173, %c1_174, %c0_175] : memref<2x10x10x128xf32, #tpu.memory_space<vmem>>, vector<2x8x8x128xf32>
    %108 = vector.shape_cast %107 : vector<2x8x8x128xf32> to vector<128x128xf32>
    %c1_176 = arith.constant 1 : index
    %c0_177 = arith.constant 0 : index
    %c0_178 = arith.constant 0 : index
    %109 = vector.load %arg5[%c1_176, %c0_177, %c0_178] : memref<9x128x128xf32, #tpu.memory_space<vmem>>, vector<1x128x128xf32>
    %110 = vector.shape_cast %109 : vector<1x128x128xf32> to vector<128x128xf32>
    %cst_179 = arith.constant dense<0.000000e+00> : vector<128x128xf32>
    %111 = tpu.matmul %108, %110, %cst_179 {dimension_numbers = #tpu.dot_dimension_numbers<[1], [0], [0], [1], [0, 0, 1, 1], [], []>} : vector<128x128xf32>, vector<128x128xf32>, vector<128x128xf32> -> vector<128x128xf32>
    %c0_180 = arith.constant 0 : index
    %c0_181 = arith.constant 0 : index
    %112 = vector.load %arg12[%c0_180, %c0_181] : memref<128x128xf32, #tpu.memory_space<vmem>>, vector<128x128xf32>
    %113 = arith.addf %112, %111 : vector<128x128xf32>
    %c0_182 = arith.constant 0 : index
    %c0_183 = arith.constant 0 : index
    %114 = vector.load %arg12[%c0_182, %c0_183] : memref<128x128xf32, #tpu.memory_space<vmem>>, vector<128x128xf32>
    tpu.vector_store %arg12[%c0_182, %c0_183], %113 {strides = array<i32>} : memref<128x128xf32, #tpu.memory_space<vmem>>, vector<128x128xf32>,
    %c0_184 = arith.constant 0 : index
    %c0_185 = arith.constant 0 : index
    %c2_186 = arith.constant 2 : index
    %c0_187 = arith.constant 0 : index
    %115 = vector.load %arg10[%c0_184, %c0_185, %c2_186, %c0_187] : memref<2x10x10x128xf32, #tpu.memory_space<vmem>>, vector<2x8x8x128xf32>
    %116 = vector.shape_cast %115 : vector<2x8x8x128xf32> to vector<128x128xf32>
    %c2_188 = arith.constant 2 : index
    %c0_189 = arith.constant 0 : index
    %c0_190 = arith.constant 0 : index
    %117 = vector.load %arg5[%c2_188, %c0_189, %c0_190] : memref<9x128x128xf32, #tpu.memory_space<vmem>>, vector<1x128x128xf32>
    %118 = vector.shape_cast %117 : vector<1x128x128xf32> to vector<128x128xf32>
    %cst_191 = arith.constant dense<0.000000e+00> : vector<128x128xf32>
    %119 = tpu.matmul %116, %118, %cst_191 {dimension_numbers = #tpu.dot_dimension_numbers<[1], [0], [0], [1], [0, 0, 1, 1], [], []>} : vector<128x128xf32>, vector<128x128xf32>, vector<128x128xf32> -> vector<128x128xf32>
    %c0_192 = arith.constant 0 : index
    %c0_193 = arith.constant 0 : index
    %120 = vector.load %arg12[%c0_192, %c0_193] : memref<128x128xf32, #tpu.memory_space<vmem>>, vector<128x128xf32>
    %121 = arith.addf %120, %119 : vector<128x128xf32>
    %c0_194 = arith.constant 0 : index
    %c0_195 = arith.constant 0 : index
    %122 = vector.load %arg12[%c0_194, %c0_195] : memref<128x128xf32, #tpu.memory_space<vmem>>, vector<128x128xf32>
    tpu.vector_store %arg12[%c0_194, %c0_195], %121 {strides = array<i32>} : memref<128x128xf32, #tpu.memory_space<vmem>>, vector<128x128xf32>,
    %c0_196 = arith.constant 0 : index
    %c1_197 = arith.constant 1 : index
    %c0_198 = arith.constant 0 : index
    %c0_199 = arith.constant 0 : index
    %123 = vector.load %arg10[%c0_196, %c1_197, %c0_198, %c0_199] : memref<2x10x10x128xf32, #tpu.memory_space<vmem>>, vector<2x8x8x128xf32>
    %124 = vector.shape_cast %123 : vector<2x8x8x128xf32> to vector<128x128xf32>
    %c3_200 = arith.constant 3 : index
    %c0_201 = arith.constant 0 : index
    %c0_202 = arith.constant 0 : index
    %125 = vector.load %arg5[%c3_200, %c0_201, %c0_202] : memref<9x128x128xf32, #tpu.memory_space<vmem>>, vector<1x128x128xf32>
    %126 = vector.shape_cast %125 : vector<1x128x128xf32> to vector<128x128xf32>
    %cst_203 = arith.constant dense<0.000000e+00> : vector<128x128xf32>
    %127 = tpu.matmul %124, %126, %cst_203 {dimension_numbers = #tpu.dot_dimension_numbers<[1], [0], [0], [1], [0, 0, 1, 1], [], []>} : vector<128x128xf32>, vector<128x128xf32>, vector<128x128xf32> -> vector<128x128xf32>
    %c0_204 = arith.constant 0 : index
    %c0_205 = arith.constant 0 : index
    %128 = vector.load %arg12[%c0_204, %c0_205] : memref<128x128xf32, #tpu.memory_space<vmem>>, vector<128x128xf32>
    %129 = arith.addf %128, %127 : vector<128x128xf32>
    %c0_206 = arith.constant 0 : index
    %c0_207 = arith.constant 0 : index
    %130 = vector.load %arg12[%c0_206, %c0_207] : memref<128x128xf32, #tpu.memory_space<vmem>>, vector<128x128xf32>
    tpu.vector_store %arg12[%c0_206, %c0_207], %129 {strides = array<i32>} : memref<128x128xf32, #tpu.memory_space<vmem>>, vector<128x128xf32>,
    %c0_208 = arith.constant 0 : index
    %c1_209 = arith.constant 1 : index
    %c1_210 = arith.constant 1 : index
    %c0_211 = arith.constant 0 : index
    %131 = vector.load %arg10[%c0_208, %c1_209, %c1_210, %c0_211] : memref<2x10x10x128xf32, #tpu.memory_space<vmem>>, vector<2x8x8x128xf32>
    %132 = vector.shape_cast %131 : vector<2x8x8x128xf32> to vector<128x128xf32>
    %c4_212 = arith.constant 4 : index
    %c0_213 = arith.constant 0 : index
    %c0_214 = arith.constant 0 : index
    %133 = vector.load %arg5[%c4_212, %c0_213, %c0_214] : memref<9x128x128xf32, #tpu.memory_space<vmem>>, vector<1x128x128xf32>
    %134 = vector.shape_cast %133 : vector<1x128x128xf32> to vector<128x128xf32>
    %cst_215 = arith.constant dense<0.000000e+00> : vector<128x128xf32>
    %135 = tpu.matmul %132, %134, %cst_215 {dimension_numbers = #tpu.dot_dimension_numbers<[1], [0], [0], [1], [0, 0, 1, 1], [], []>} : vector<128x128xf32>, vector<128x128xf32>, vector<128x128xf32> -> vector<128x128xf32>
    %c0_216 = arith.constant 0 : index
    %c0_217 = arith.constant 0 : index
    %136 = vector.load %arg12[%c0_216, %c0_217] : memref<128x128xf32, #tpu.memory_space<vmem>>, vector<128x128xf32>
    %137 = arith.addf %136, %135 : vector<128x128xf32>
    %c0_218 = arith.constant 0 : index
    %c0_219 = arith.constant 0 : index
    %138 = vector.load %arg12[%c0_218, %c0_219] : memref<128x128xf32, #tpu.memory_space<vmem>>, vector<128x128xf32>
    tpu.vector_store %arg12[%c0_218, %c0_219], %137 {strides = array<i32>} : memref<128x128xf32, #tpu.memory_space<vmem>>, vector<128x128xf32>,
    %c0_220 = arith.constant 0 : index
    %c1_221 = arith.constant 1 : index
    %c2_222 = arith.constant 2 : index
    %c0_223 = arith.constant 0 : index
    %139 = vector.load %arg10[%c0_220, %c1_221, %c2_222, %c0_223] : memref<2x10x10x128xf32, #tpu.memory_space<vmem>>, vector<2x8x8x128xf32>
    %140 = vector.shape_cast %139 : vector<2x8x8x128xf32> to vector<128x128xf32>
    %c5_224 = arith.constant 5 : index
    %c0_225 = arith.constant 0 : index
    %c0_226 = arith.constant 0 : index
    %141 = vector.load %arg5[%c5_224, %c0_225, %c0_226] : memref<9x128x128xf32, #tpu.memory_space<vmem>>, vector<1x128x128xf32>
    %142 = vector.shape_cast %141 : vector<1x128x128xf32> to vector<128x128xf32>
    %cst_227 = arith.constant dense<0.000000e+00> : vector<128x128xf32>
    %143 = tpu.matmul %140, %142, %cst_227 {dimension_numbers = #tpu.dot_dimension_numbers<[1], [0], [0], [1], [0, 0, 1, 1], [], []>} : vector<128x128xf32>, vector<128x128xf32>, vector<128x128xf32> -> vector<128x128xf32>
    %c0_228 = arith.constant 0 : index
    %c0_229 = arith.constant 0 : index
    %144 = vector.load %arg12[%c0_228, %c0_229] : memref<128x128xf32, #tpu.memory_space<vmem>>, vector<128x128xf32>
    %145 = arith.addf %144, %143 : vector<128x128xf32>
    %c0_230 = arith.constant 0 : index
    %c0_231 = arith.constant 0 : index
    %146 = vector.load %arg12[%c0_230, %c0_231] : memref<128x128xf32, #tpu.memory_space<vmem>>, vector<128x128xf32>
    tpu.vector_store %arg12[%c0_230, %c0_231], %145 {strides = array<i32>} : memref<128x128xf32, #tpu.memory_space<vmem>>, vector<128x128xf32>,
    %c0_232 = arith.constant 0 : index
    %c2_233 = arith.constant 2 : index
    %c0_234 = arith.constant 0 : index
    %c0_235 = arith.constant 0 : index
    %147 = vector.load %arg10[%c0_232, %c2_233, %c0_234, %c0_235] : memref<2x10x10x128xf32, #tpu.memory_space<vmem>>, vector<2x8x8x128xf32>
    %148 = vector.shape_cast %147 : vector<2x8x8x128xf32> to vector<128x128xf32>
    %c6_236 = arith.constant 6 : index
    %c0_237 = arith.constant 0 : index
    %c0_238 = arith.constant 0 : index
    %149 = vector.load %arg5[%c6_236, %c0_237, %c0_238] : memref<9x128x128xf32, #tpu.memory_space<vmem>>, vector<1x128x128xf32>
    %150 = vector.shape_cast %149 : vector<1x128x128xf32> to vector<128x128xf32>
    %cst_239 = arith.constant dense<0.000000e+00> : vector<128x128xf32>
    %151 = tpu.matmul %148, %150, %cst_239 {dimension_numbers = #tpu.dot_dimension_numbers<[1], [0], [0], [1], [0, 0, 1, 1], [], []>} : vector<128x128xf32>, vector<128x128xf32>, vector<128x128xf32> -> vector<128x128xf32>
    %c0_240 = arith.constant 0 : index
    %c0_241 = arith.constant 0 : index
    %152 = vector.load %arg12[%c0_240, %c0_241] : memref<128x128xf32, #tpu.memory_space<vmem>>, vector<128x128xf32>
    %153 = arith.addf %152, %151 : vector<128x128xf32>
    %c0_242 = arith.constant 0 : index
    %c0_243 = arith.constant 0 : index
    %154 = vector.load %arg12[%c0_242, %c0_243] : memref<128x128xf32, #tpu.memory_space<vmem>>, vector<128x128xf32>
    tpu.vector_store %arg12[%c0_242, %c0_243], %153 {strides = array<i32>} : memref<128x128xf32, #tpu.memory_space<vmem>>, vector<128x128xf32>,
    %c0_244 = arith.constant 0 : index
    %c2_245 = arith.constant 2 : index
    %c1_246 = arith.constant 1 : index
    %c0_247 = arith.constant 0 : index
    %155 = vector.load %arg10[%c0_244, %c2_245, %c1_246, %c0_247] : memref<2x10x10x128xf32, #tpu.memory_space<vmem>>, vector<2x8x8x128xf32>
    %156 = vector.shape_cast %155 : vector<2x8x8x128xf32> to vector<128x128xf32>
    %c7_248 = arith.constant 7 : index
    %c0_249 = arith.constant 0 : index
    %c0_250 = arith.constant 0 : index
    %157 = vector.load %arg5[%c7_248, %c0_249, %c0_250] : memref<9x128x128xf32, #tpu.memory_space<vmem>>, vector<1x128x128xf32>
    %158 = vector.shape_cast %157 : vector<1x128x128xf32> to vector<128x128xf32>
    %cst_251 = arith.constant dense<0.000000e+00> : vector<128x128xf32>
    %159 = tpu.matmul %156, %158, %cst_251 {dimension_numbers = #tpu.dot_dimension_numbers<[1], [0], [0], [1], [0, 0, 1, 1], [], []>} : vector<128x128xf32>, vector<128x128xf32>, vector<128x128xf32> -> vector<128x128xf32>
    %c0_252 = arith.constant 0 : index
    %c0_253 = arith.constant 0 : index
    %160 = vector.load %arg12[%c0_252, %c0_253] : memref<128x128xf32, #tpu.memory_space<vmem>>, vector<128x128xf32>
    %161 = arith.addf %160, %159 : vector<128x128xf32>
    %c0_254 = arith.constant 0 : index
    %c0_255 = arith.constant 0 : index
    %162 = vector.load %arg12[%c0_254, %c0_255] : memref<128x128xf32, #tpu.memory_space<vmem>>, vector<128x128xf32>
    tpu.vector_store %arg12[%c0_254, %c0_255], %161 {strides = array<i32>} : memref<128x128xf32, #tpu.memory_space<vmem>>, vector<128x128xf32>,
    %c0_256 = arith.constant 0 : index
    %c2_257 = arith.constant 2 : index
    %c2_258 = arith.constant 2 : index
    %c0_259 = arith.constant 0 : index
    %163 = vector.load %arg10[%c0_256, %c2_257, %c2_258, %c0_259] : memref<2x10x10x128xf32, #tpu.memory_space<vmem>>, vector<2x8x8x128xf32>
    %164 = vector.shape_cast %163 : vector<2x8x8x128xf32> to vector<128x128xf32>
    %c8_260 = arith.constant 8 : index
    %c0_261 = arith.constant 0 : index
    %c0_262 = arith.constant 0 : index
    %165 = vector.load %arg5[%c8_260, %c0_261, %c0_262] : memref<9x128x128xf32, #tpu.memory_space<vmem>>, vector<1x128x128xf32>
    %166 = vector.shape_cast %165 : vector<1x128x128xf32> to vector<128x128xf32>
    %cst_263 = arith.constant dense<0.000000e+00> : vector<128x128xf32>
    %167 = tpu.matmul %164, %166, %cst_263 {dimension_numbers = #tpu.dot_dimension_numbers<[1], [0], [0], [1], [0, 0, 1, 1], [], []>} : vector<128x128xf32>, vector<128x128xf32>, vector<128x128xf32> -> vector<128x128xf32>
    %c0_264 = arith.constant 0 : index
    %c0_265 = arith.constant 0 : index
    %168 = vector.load %arg12[%c0_264, %c0_265] : memref<128x128xf32, #tpu.memory_space<vmem>>, vector<128x128xf32>
    %169 = arith.addf %168, %167 : vector<128x128xf32>
    %c0_266 = arith.constant 0 : index
    %c0_267 = arith.constant 0 : index
    %170 = vector.load %arg12[%c0_266, %c0_267] : memref<128x128xf32, #tpu.memory_space<vmem>>, vector<128x128xf32>
    tpu.vector_store %arg12[%c0_266, %c0_267], %169 {strides = array<i32>} : memref<128x128xf32, #tpu.memory_space<vmem>>, vector<128x128xf32>,
    %c0_268 = arith.constant 0 : index
    %c0_269 = arith.constant 0 : index
    %171 = vector.load %arg12[%c0_268, %c0_269] : memref<128x128xf32, #tpu.memory_space<vmem>>, vector<128x128xf32>
    %c0_270 = arith.constant 0 : index
    %c0_271 = arith.constant 0 : index
    %172 = vector.load %arg6[%c0_270, %c0_271] : memref<1x128xf32, #tpu.memory_space<vmem>>, vector<1x128xf32>
    %173 = vector.broadcast %172 : vector<1x128xf32> to vector<128x128xf32>
    %174 = arith.mulf %171, %173 : vector<128x128xf32>
    %c0_272 = arith.constant 0 : index
    %c0_273 = arith.constant 0 : index
    %175 = vector.load %arg7[%c0_272, %c0_273] : memref<1x128xf32, #tpu.memory_space<vmem>>, vector<1x128xf32>
    %176 = vector.broadcast %175 : vector<1x128xf32> to vector<128x128xf32>
    %177 = arith.addf %174, %176 : vector<128x128xf32>
    %cst_274 = arith.constant 0.000000e+00 : f32
    %178 = vector.broadcast %cst_274 : f32 to vector<128x128xf32>
    %179 = arith.maximumf %177, %178 : vector<128x128xf32>
    %180 = vector.shape_cast %179 : vector<128x128xf32> to vector<2x8x8x128xf32>
    %c0_275 = arith.constant 0 : index
    %c0_276 = arith.constant 0 : index
    %c0_277 = arith.constant 0 : index
    %c0_278 = arith.constant 0 : index
    %181 = vector.load %arg8[%c0_275, %c0_276, %c0_277, %c0_278] : memref<2x8x8x128xf32, #tpu.memory_space<vmem>>, vector<2x8x8x128xf32>
    tpu.vector_store %arg8[%c0_275, %c0_276, %c0_277, %c0_278], %180 {strides = array<i32>} : memref<2x8x8x128xf32, #tpu.memory_space<vmem>>, vector<2x8x8x128xf32>,
    return
  }
  func.func @transform_0(%arg0: i32) -> (i32, i32, i32, i32) {
    %c0_i32 = arith.constant 0 : i32
    %c0_i32_0 = arith.constant 0 : i32
    %c0_i32_1 = arith.constant 0 : i32
    %c0_i32_2 = arith.constant 0 : i32
    return %arg0, %c0_i32, %c0_i32_0, %c0_i32_1 : i32, i32, i32, i32
  }
  func.func @transform_1(%arg0: i32) -> (i32, i32, i32) {
    %c0_i32 = arith.constant 0 : i32
    %c0_i32_0 = arith.constant 0 : i32
    %c0_i32_1 = arith.constant 0 : i32
    %c0_i32_2 = arith.constant 0 : i32
    return %c0_i32, %c0_i32_0, %c0_i32_1 : i32, i32, i32
  }
  func.func @transform_2(%arg0: i32) -> (i32, i32) {
    %c0_i32 = arith.constant 0 : i32
    %c0_i32_0 = arith.constant 0 : i32
    %c0_i32_1 = arith.constant 0 : i32
    return %c0_i32, %c0_i32_0 : i32, i32
  }
  func.func @transform_3(%arg0: i32) -> (i32, i32) {
    %c0_i32 = arith.constant 0 : i32
    %c0_i32_0 = arith.constant 0 : i32
    %c0_i32_1 = arith.constant 0 : i32
    return %c0_i32, %c0_i32_0 : i32, i32
  }
  func.func @transform_4(%arg0: i32) -> (i32, i32, i32) {
    %c0_i32 = arith.constant 0 : i32
    %c0_i32_0 = arith.constant 0 : i32
    %c0_i32_1 = arith.constant 0 : i32
    %c0_i32_2 = arith.constant 0 : i32
    return %c0_i32, %c0_i32_0, %c0_i32_1 : i32, i32, i32
  }
  func.func @transform_5(%arg0: i32) -> (i32, i32) {
    %c0_i32 = arith.constant 0 : i32
    %c0_i32_0 = arith.constant 0 : i32
    %c0_i32_1 = arith.constant 0 : i32
    return %c0_i32, %c0_i32_0 : i32, i32
  }
  func.func @transform_6(%arg0: i32) -> (i32, i32) {
    %c0_i32 = arith.constant 0 : i32
    %c0_i32_0 = arith.constant 0 : i32
    %c0_i32_1 = arith.constant 0 : i32
    return %c0_i32, %c0_i32_0 : i32, i32
  }
  func.func @transform_7(%arg0: i32) -> (i32, i32, i32, i32) {
    %c0_i32 = arith.constant 0 : i32
    %c0_i32_0 = arith.constant 0 : i32
    %c0_i32_1 = arith.constant 0 : i32
    %c0_i32_2 = arith.constant 0 : i32
    return %arg0, %c0_i32, %c0_i32_0, %c0_i32_1 : i32, i32, i32, i32
  }
}

</mosaic_0001>

<llo_original>
// kernel: tpu_custom_call.1
$region0: #{tpu_custom_call.1}
  #allocation0 [shape = 'u32[]', space=smem, size = 0x4, offset = 0x4, fixed_abs, tag = 'smem constant byte address 0x4 - core index']
  #allocation1 [shape = 'u32[144,128]{1,0:T(1,128)}', space=vmem, size = 0x12000, scoped, tag = 'internal scratch']
  #allocation2 [shape = 'f32[2,10,10,4]{3,2,1,0:T(8,128)}', space=vmem, size = 0x28000, scoped, tag = 'scratch operand']
  #allocation3 [shape = 'f32[2,10,10,128]{3,2,1,0:T(8,128)}', space=vmem, size = 0x28000, scoped, tag = 'scratch operand']
  #allocation4 [shape = 'f32[128,128]{1,0:T(8,128)}', space=vmem, size = 0x10000, scoped, tag = 'scratch operand']
  #allocation5 [shape = 'f32[128,128]{1,0:T(8,128)}', space=vmem, size = 0x10000, scoped, tag = 'scratch operand']
  %s0 = inlined_call_operand.vmem [shape: f32[2,16,16,4], index: 0, kind: input, shape index: {}]
  %s1 = inlined_call_operand.vmem [shape: f32[9,4,128], index: 1, kind: input, shape index: {}]
  %s2 = inlined_call_operand.vmem [shape: f32[1,128], index: 2, kind: input, shape index: {}]
  %s3 = inlined_call_operand.vmem [shape: f32[1,128], index: 3, kind: input, shape index: {}]
  %s4 = inlined_call_operand.hbm [shape: f32[9,128,128], index: 4, kind: input, shape index: {}]
  %s5 = inlined_call_operand.vmem [shape: f32[1,128], index: 5, kind: input, shape index: {}]
  %s6 = inlined_call_operand.vmem [shape: f32[1,128], index: 6, kind: input, shape index: {}]
  %s7 = inlined_call_operand.hbm [shape: f32[2,8,8,128], index: 7, kind: output, shape index: {}]
  %s8 = sld [smem:[#allocation0]]
  $region42: #{tpu_custom_call.1} parent=0
    _
  %s10 = ssub.s32 1, %s8
  %s11 = scalar_select 0, %s10, %s8
  $region1: #{tpu_custom_call.1} parent=0
    #allocation6 [shape = 'u8[589824]{0}', space=vmem, size = 0x90000, scoped, tag = 'input window, operand 4, single buffered']
    #allocation7 [shape = 's32[1]{0}', space=sflag, size = 0x4, scoped, tag = 'scoped memory for tpu_custom_call.1']
    #allocation8 [shape = 's32[1]{0}', space=sflag, size = 0x4, scoped, tag = 'scoped memory for tpu_custom_call.1']
    #allocation9 [shape = 'u8[65536]{0}', space=vmem, size = 0x10000, scoped, tag = 'output window, operand 0, single buffered']
    %12 = vsyncpa [#allocation7], 0
    %13 = vsyncpa [#allocation8], 0
    // Predicated region
    $region2: #{tpu_custom_call.1} parent=1 // pred_check
      _
    $region3: #{tpu_custom_call.1} parent=1 // pred_check_branch
      %15 = sbr.rel (0) target = $region5
    $region4: #{tpu_custom_call.1} parent=1 // pred_region
      _
    $region5: #{tpu_custom_call.1} parent=1 // pred_fallthru
      _
    // Predicated region
    $region6: #{tpu_custom_call.1} parent=1 // pred_check
      _
    $region7: #{tpu_custom_call.1} parent=1 // pred_check_branch
      %17 = sbr.rel (0) target = $region9
    $region8: #{tpu_custom_call.1} parent=1 // pred_region
      _
    $region9: #{tpu_custom_call.1} parent=1 // pred_fallthru
      _
    // Predicated region
    $region10: #{tpu_custom_call.1} parent=1 // pred_check
      _
    $region11: #{tpu_custom_call.1} parent=1 // pred_check_branch
      %19 = sbr.rel (0) target = $region13
    $region12: #{tpu_custom_call.1} parent=1 // pred_region
      _
    $region13: #{tpu_custom_call.1} parent=1 // pred_fallthru
      _
    // Predicated region
    $region14: #{tpu_custom_call.1} parent=1 // pred_check
      _
    $region15: #{tpu_custom_call.1} parent=1 // pred_check_branch
      %21 = sbr.rel (0) target = $region17
    $region16: #{tpu_custom_call.1} parent=1 // pred_region
      _
    $region17: #{tpu_custom_call.1} parent=1 // pred_fallthru
      _
    // Predicated region
    $region18: #{tpu_custom_call.1} parent=1 // pred_check
      _
    $region19: #{tpu_custom_call.1} parent=1 // pred_check_branch
      %23 = sbr.rel (0) target = $region21
    $region20: #{tpu_custom_call.1} parent=1 // pred_region
      %s25 = ssub.s32 18432, 18432
      %26 = vsyncadd [#allocation7], %s25
      %s27 = sshll.u32 [#allocation6], 4
      %s28 = int_to_ptr.vmem [resolvable:$true] %s27
      %33 = dma.hbm_to_vmem [thread:$0]  %s4, 18432, %s28, [#allocation7], 128, 128, 8
    $region21: #{tpu_custom_call.1} parent=1 // pred_fallthru
      _
    // Predicated region
    $region22: #{tpu_custom_call.1} parent=1 // pred_check
      _
    $region23: #{tpu_custom_call.1} parent=1 // pred_check_branch
      %35 = sbr.rel (0) target = $region25
    $region24: #{tpu_custom_call.1} parent=1 // pred_region
      _
    $region25: #{tpu_custom_call.1} parent=1 // pred_fallthru
      _
    // Predicated region
    $region26: #{tpu_custom_call.1} parent=1 // pred_check
      _
    $region27: #{tpu_custom_call.1} parent=1 // pred_check_branch
      %37 = sbr.rel (0) target = $region29
    $region28: #{tpu_custom_call.1} parent=1 // pred_region
      _
    $region29: #{tpu_custom_call.1} parent=1 // pred_fallthru
      _
    // Predicated region
    $region30: #{tpu_custom_call.1} parent=1 // pred_check
      _
    $region31: #{tpu_custom_call.1} parent=1 // pred_check_branch
      %39 = sbr.rel (0) target = $region33
    $region32: #{tpu_custom_call.1} parent=1 // pred_region
      %40 = dma.done [#allocation7], 18432
    $region33: #{tpu_custom_call.1} parent=1 // pred_fallthru
      _
    %vm41 = vcmask 31744
    %42 = vst.msk [vmem:[#allocation2] sm:$0xff] %vm41, 0.0
    %vm43 = vcmask 25600
    %44 = vst.msk [vmem:[#allocation2 + $0x8] sm:$0x3] %vm43, 0.0
    %45 = vst.msk [vmem:[#allocation2 + $0xa0] sm:$0xff] %vm41, 0.0
    %46 = vst.msk [vmem:[#allocation2 + $0xa8] sm:$0x3] %vm43, 0.0
    %s47 = scalar_lea.vmem [#allocation2], 144
    %48 = vst.msk [vmem:[%s47] sm:$0xff] %vm41, 0.0
    %49 = vst.msk [vmem:[%s47 + $0x8] sm:$0x3] %vm43, 0.0
    %50 = vst.msk [vmem:[%s47 + $0xa0] sm:$0xff] %vm41, 0.0
    %51 = vst.msk [vmem:[%s47 + $0xa8] sm:$0x3] %vm43, 0.0
    %vm52 = vcmask 24576
    %53 = vst.msk [vmem:[#allocation2] sm:$0x1] %vm52, 0.0
    %54 = vst.msk [vmem:[#allocation2 + $0x10] sm:$0x1] %vm52, 0.0
    %55 = vst.msk [vmem:[#allocation2 + $0x20] sm:$0x1] %vm52, 0.0
    %56 = vst.msk [vmem:[#allocation2 + $0x30] sm:$0x1] %vm52, 0.0
    %57 = vst.msk [vmem:[#allocation2 + $0x40] sm:$0x1] %vm52, 0.0
    %58 = vst.msk [vmem:[#allocation2 + $0x50] sm:$0x1] %vm52, 0.0
    %59 = vst.msk [vmem:[#allocation2 + $0x60] sm:$0x1] %vm52, 0.0
    %60 = vst.msk [vmem:[#allocation2 + $0x70] sm:$0x1] %vm52, 0.0
    %61 = vst.msk [vmem:[#allocation2 + $0x80] sm:$0x1] %vm52, 0.0
    %62 = vst.msk [vmem:[#allocation2 + $0x90] sm:$0x1] %vm52, 0.0
    %63 = vst.msk [vmem:[#allocation2 + $0xa0] sm:$0x1] %vm52, 0.0
    %64 = vst.msk [vmem:[#allocation2 + $0xb0] sm:$0x1] %vm52, 0.0
    %65 = vst.msk [vmem:[#allocation2 + $0xc0] sm:$0x1] %vm52, 0.0
    %66 = vst.msk [vmem:[#allocation2 + $0xd0] sm:$0x1] %vm52, 0.0
    %67 = vst.msk [vmem:[#allocation2 + $0xe0] sm:$0x1] %vm52, 0.0
    %68 = vst.msk [vmem:[#allocation2 + $0xf0] sm:$0x1] %vm52, 0.0
    %69 = vst.msk [vmem:[#allocation2 + $0x100] sm:$0x1] %vm52, 0.0
    %70 = vst.msk [vmem:[#allocation2 + $0x110] sm:$0x1] %vm52, 0.0
    %71 = vst.msk [vmem:[#allocation2 + $0x120] sm:$0x1] %vm52, 0.0
    %72 = vst.msk [vmem:[#allocation2 + $0x130] sm:$0x1] %vm52, 0.0
    %73 = vst.msk [vmem:[#allocation2 + $0x9] sm:$0x1] %vm52, 0.0
    %74 = vst.msk [vmem:[#allocation2 + $0x19] sm:$0x1] %vm52, 0.0
    %75 = vst.msk [vmem:[#allocation2 + $0x29] sm:$0x1] %vm52, 0.0
    %76 = vst.msk [vmem:[#allocation2 + $0x39] sm:$0x1] %vm52, 0.0
    %77 = vst.msk [vmem:[#allocation2 + $0x49] sm:$0x1] %vm52, 0.0
    %78 = vst.msk [vmem:[#allocation2 + $0x59] sm:$0x1] %vm52, 0.0
    %79 = vst.msk [vmem:[#allocation2 + $0x69] sm:$0x1] %vm52, 0.0
    %80 = vst.msk [vmem:[#allocation2 + $0x79] sm:$0x1] %vm52, 0.0
    %81 = vst.msk [vmem:[#allocation2 + $0x89] sm:$0x1] %vm52, 0.0
    %82 = vst.msk [vmem:[#allocation2 + $0x99] sm:$0x1] %vm52, 0.0
    %83 = vst.msk [vmem:[#allocation2 + $0xa9] sm:$0x1] %vm52, 0.0
    %84 = vst.msk [vmem:[#allocation2 + $0xb9] sm:$0x1] %vm52, 0.0
    %85 = vst.msk [vmem:[#allocation2 + $0xc9] sm:$0x1] %vm52, 0.0
    %86 = vst.msk [vmem:[#allocation2 + $0xd9] sm:$0x1] %vm52, 0.0
    %87 = vst.msk [vmem:[#allocation2 + $0xe9] sm:$0x1] %vm52, 0.0
    %88 = vst.msk [vmem:[#allocation2 + $0xf9] sm:$0x1] %vm52, 0.0
    %89 = vst.msk [vmem:[#allocation2 + $0x109] sm:$0x1] %vm52, 0.0
    %90 = vst.msk [vmem:[#allocation2 + $0x119] sm:$0x1] %vm52, 0.0
    %91 = vst.msk [vmem:[#allocation2 + $0x129] sm:$0x1] %vm52, 0.0
    %92 = vst.msk [vmem:[#allocation2 + $0x139] sm:$0x1] %vm52, 0.0
    %93 = vst [vmem:[#allocation3] sm:$0xff] 0.0
    %94 = vst [vmem:[#allocation3 + $0x8] sm:$0x3] 0.0
    %95 = vst [vmem:[#allocation3 + $0xa0] sm:$0xff] 0.0
    %96 = vst [vmem:[#allocation3 + $0xa8] sm:$0x3] 0.0
    %s97 = scalar_lea.vmem [#allocation3], 144
    %98 = vst [vmem:[%s97] sm:$0xff] 0.0
    %99 = vst [vmem:[%s97 + $0x8] sm:$0x3] 0.0
    %100 = vst [vmem:[%s97 + $0xa0] sm:$0xff] 0.0
    %101 = vst [vmem:[%s97 + $0xa8] sm:$0x3] 0.0
    %102 = vst [vmem:[#allocation3] sm:$0x1] 0.0
    %103 = vst [vmem:[#allocation3 + $0x10] sm:$0x1] 0.0
    %104 = vst [vmem:[#allocation3 + $0x20] sm:$0x1] 0.0
    %105 = vst [vmem:[#allocation3 + $0x30] sm:$0x1] 0.0
    %106 = vst [vmem:[#allocation3 + $0x40] sm:$0x1] 0.0
    %107 = vst [vmem:[#allocation3 + $0x50] sm:$0x1] 0.0
    %108 = vst [vmem:[#allocation3 + $0x60] sm:$0x1] 0.0
    %109 = vst [vmem:[#allocation3 + $0x70] sm:$0x1] 0.0
    %110 = vst [vmem:[#allocation3 + $0x80] sm:$0x1] 0.0
    %111 = vst [vmem:[#allocation3 + $0x90] sm:$0x1] 0.0
    %112 = vst [vmem:[#allocation3 + $0xa0] sm:$0x1] 0.0
    %113 = vst [vmem:[#allocation3 + $0xb0] sm:$0x1] 0.0
    %114 = vst [vmem:[#allocation3 + $0xc0] sm:$0x1] 0.0
    %115 = vst [vmem:[#allocation3 + $0xd0] sm:$0x1] 0.0
    %116 = vst [vmem:[#allocation3 + $0xe0] sm:$0x1] 0.0
    %117 = vst [vmem:[#allocation3 + $0xf0] sm:$0x1] 0.0
    %118 = vst [vmem:[#allocation3 + $0x100] sm:$0x1] 0.0
    %119 = vst [vmem:[#allocation3 + $0x110] sm:$0x1] 0.0
    %120 = vst [vmem:[#allocation3 + $0x120] sm:$0x1] 0.0
    %121 = vst [vmem:[#allocation3 + $0x130] sm:$0x1] 0.0
    %122 = vst [vmem:[#allocation3 + $0x9] sm:$0x1] 0.0
    %123 = vst [vmem:[#allocation3 + $0x19] sm:$0x1] 0.0
    %124 = vst [vmem:[#allocation3 + $0x29] sm:$0x1] 0.0
    %125 = vst [vmem:[#allocation3 + $0x39] sm:$0x1] 0.0
    %126 = vst [vmem:[#allocation3 + $0x49] sm:$0x1] 0.0
    %127 = vst [vmem:[#allocation3 + $0x59] sm:$0x1] 0.0
    %128 = vst [vmem:[#allocation3 + $0x69] sm:$0x1] 0.0
    %129 = vst [vmem:[#allocation3 + $0x79] sm:$0x1] 0.0
    %130 = vst [vmem:[#allocation3 + $0x89] sm:$0x1] 0.0
    %131 = vst [vmem:[#allocation3 + $0x99] sm:$0x1] 0.0
    %132 = vst [vmem:[#allocation3 + $0xa9] sm:$0x1] 0.0
    %133 = vst [vmem:[#allocation3 + $0xb9] sm:$0x1] 0.0
    %134 = vst [vmem:[#allocation3 + $0xc9] sm:$0x1] 0.0
    %135 = vst [vmem:[#allocation3 + $0xd9] sm:$0x1] 0.0
    %136 = vst [vmem:[#allocation3 + $0xe9] sm:$0x1] 0.0
    %137 = vst [vmem:[#allocation3 + $0xf9] sm:$0x1] 0.0
    %138 = vst [vmem:[#allocation3 + $0x109] sm:$0x1] 0.0
    %139 = vst [vmem:[#allocation3 + $0x119] sm:$0x1] 0.0
    %140 = vst [vmem:[#allocation3 + $0x129] sm:$0x1] 0.0
    %141 = vst [vmem:[#allocation3 + $0x139] sm:$0x1] 0.0
    %v142 = vld [vmem:[%s0] ss:$2 sm:$0xff]
    %s143 = scalar_lea.vmem %s0, 32
    %v144 = vld [vmem:[%s143] ss:$2 sm:$0xff]
    %s145 = scalar_lea.vmem %s0, 64
    %v146 = vld [vmem:[%s145] ss:$2 sm:$0xff]
    %s147 = scalar_lea.vmem %s0, 96
    %v148 = vld [vmem:[%s147] ss:$2 sm:$0xff]
    %s149 = scalar_lea.vmem %s0, 128
    %v150 = vld [vmem:[%s149] ss:$2 sm:$0xff]
    %s151 = scalar_lea.vmem %s0, 160
    %v152 = vld [vmem:[%s151] ss:$2 sm:$0xff]
    %s153 = scalar_lea.vmem %s0, 192
    %v154 = vld [vmem:[%s153] ss:$2 sm:$0xff]
    %s155 = scalar_lea.vmem %s0, 224
    %v156 = vld [vmem:[%s155] ss:$2 sm:$0xff]
    %s157 = scalar_lea.vmem %s0, 256
    %v158 = vld [vmem:[%s157] ss:$2 sm:$0xff]
    %s159 = scalar_lea.vmem %s0, 288
    %v160 = vld [vmem:[%s159] ss:$2 sm:$0xff]
    %s161 = scalar_lea.vmem %s0, 320
    %v162 = vld [vmem:[%s161] ss:$2 sm:$0xff]
    %s163 = scalar_lea.vmem %s0, 352
    %v164 = vld [vmem:[%s163] ss:$2 sm:$0xff]
    %s165 = scalar_lea.vmem %s0, 384
    %v166 = vld [vmem:[%s165] ss:$2 sm:$0xff]
    %s167 = scalar_lea.vmem %s0, 416
    %v168 = vld [vmem:[%s167] ss:$2 sm:$0xff]
    %s169 = scalar_lea.vmem %s0, 448
    %v170 = vld [vmem:[%s169] ss:$2 sm:$0xff]
    %s171 = scalar_lea.vmem %s0, 480
    %v172 = vld [vmem:[%s171] ss:$2 sm:$0xff]
    %s173 = scalar_lea.vmem %s0, 1
    %v174 = vld [vmem:[%s173] ss:$2 sm:$0xff]
    %s175 = scalar_lea.vmem %s0, 33
    %v176 = vld [vmem:[%s175] ss:$2 sm:$0xff]
    %s177 = scalar_lea.vmem %s0, 65
    %v178 = vld [vmem:[%s177] ss:$2 sm:$0xff]
    %s179 = scalar_lea.vmem %s0, 97
    %v180 = vld [vmem:[%s179] ss:$2 sm:$0xff]
    %s181 = scalar_lea.vmem %s0, 129
    %v182 = vld [vmem:[%s181] ss:$2 sm:$0xff]
    %s183 = scalar_lea.vmem %s0, 161
    %v184 = vld [vmem:[%s183] ss:$2 sm:$0xff]
    %s185 = scalar_lea.vmem %s0, 193
    %v186 = vld [vmem:[%s185] ss:$2 sm:$0xff]
    %s187 = scalar_lea.vmem %s0, 225
    %v188 = vld [vmem:[%s187] ss:$2 sm:$0xff]
    %s189 = scalar_lea.vmem %s0, 257
    %v190 = vld [vmem:[%s189] ss:$2 sm:$0xff]
    %s191 = scalar_lea.vmem %s0, 289
    %v192 = vld [vmem:[%s191] ss:$2 sm:$0xff]
    %s193 = scalar_lea.vmem %s0, 321
    %v194 = vld [vmem:[%s193] ss:$2 sm:$0xff]
    %s195 = scalar_lea.vmem %s0, 353
    %v196 = vld [vmem:[%s195] ss:$2 sm:$0xff]
    %s197 = scalar_lea.vmem %s0, 385
    %v198 = vld [vmem:[%s197] ss:$2 sm:$0xff]
    %s199 = scalar_lea.vmem %s0, 417
    %v200 = vld [vmem:[%s199] ss:$2 sm:$0xff]
    %s201 = scalar_lea.vmem %s0, 449
    %v202 = vld [vmem:[%s201] ss:$2 sm:$0xff]
    %s203 = scalar_lea.vmem %s0, 481
    %v204 = vld [vmem:[%s203] ss:$2 sm:$0xff]
    %s205 = scalar_lea.vmem %s0, 16
    %v206 = vld [vmem:[%s205] ss:$2 sm:$0xff]
    %s207 = scalar_lea.vmem %s205, 32
    %v208 = vld [vmem:[%s207] ss:$2 sm:$0xff]
    %s209 = scalar_lea.vmem %s205, 64
    %v210 = vld [vmem:[%s209] ss:$2 sm:$0xff]
    %s211 = scalar_lea.vmem %s205, 96
    %v212 = vld [vmem:[%s211] ss:$2 sm:$0xff]
    %s213 = scalar_lea.vmem %s205, 128
    %v214 = vld [vmem:[%s213] ss:$2 sm:$0xff]
    %s215 = scalar_lea.vmem %s205, 160
    %v216 = vld [vmem:[%s215] ss:$2 sm:$0xff]
    %s217 = scalar_lea.vmem %s205, 192
    %v218 = vld [vmem:[%s217] ss:$2 sm:$0xff]
    %s219 = scalar_lea.vmem %s205, 224
    %v220 = vld [vmem:[%s219] ss:$2 sm:$0xff]
    %s221 = scalar_lea.vmem %s205, 256
    %v222 = vld [vmem:[%s221] ss:$2 sm:$0xff]
    %s223 = scalar_lea.vmem %s205, 288
    %v224 = vld [vmem:[%s223] ss:$2 sm:$0xff]
    %s225 = scalar_lea.vmem %s205, 320
    %v226 = vld [vmem:[%s225] ss:$2 sm:$0xff]
    %s227 = scalar_lea.vmem %s205, 352
    %v228 = vld [vmem:[%s227] ss:$2 sm:$0xff]
    %s229 = scalar_lea.vmem %s205, 384
    %v230 = vld [vmem:[%s229] ss:$2 sm:$0xff]
    %s231 = scalar_lea.vmem %s205, 416
    %v232 = vld [vmem:[%s231] ss:$2 sm:$0xff]
    %s233 = scalar_lea.vmem %s205, 448
    %v234 = vld [vmem:[%s233] ss:$2 sm:$0xff]
    %s235 = scalar_lea.vmem %s205, 480
    %v236 = vld [vmem:[%s235] ss:$2 sm:$0xff]
    %s237 = scalar_lea.vmem %s205, 1
    %v238 = vld [vmem:[%s237] ss:$2 sm:$0xff]
    %s239 = scalar_lea.vmem %s205, 33
    %v240 = vld [vmem:[%s239] ss:$2 sm:$0xff]
    %s241 = scalar_lea.vmem %s205, 65
    %v242 = vld [vmem:[%s241] ss:$2 sm:$0xff]
    %s243 = scalar_lea.vmem %s205, 97
    %v244 = vld [vmem:[%s243] ss:$2 sm:$0xff]
    %s245 = scalar_lea.vmem %s205, 129
    %v246 = vld [vmem:[%s245] ss:$2 sm:$0xff]
    %s247 = scalar_lea.vmem %s205, 161
    %v248 = vld [vmem:[%s247] ss:$2 sm:$0xff]
    %s249 = scalar_lea.vmem %s205, 193
    %v250 = vld [vmem:[%s249] ss:$2 sm:$0xff]
    %s251 = scalar_lea.vmem %s205, 225
    %v252 = vld [vmem:[%s251] ss:$2 sm:$0xff]
    %s253 = scalar_lea.vmem %s205, 257
    %v254 = vld [vmem:[%s253] ss:$2 sm:$0xff]
    %s255 = scalar_lea.vmem %s205, 289
    %v256 = vld [vmem:[%s255] ss:$2 sm:$0xff]
    %s257 = scalar_lea.vmem %s205, 321
    %v258 = vld [vmem:[%s257] ss:$2 sm:$0xff]
    %s259 = scalar_lea.vmem %s205, 353
    %v260 = vld [vmem:[%s259] ss:$2 sm:$0xff]
    %s261 = scalar_lea.vmem %s205, 385
    %v262 = vld [vmem:[%s261] ss:$2 sm:$0xff]
    %s263 = scalar_lea.vmem %s205, 417
    %v264 = vld [vmem:[%s263] ss:$2 sm:$0xff]
    %s265 = scalar_lea.vmem %s205, 449
    %v266 = vld [vmem:[%s265] ss:$2 sm:$0xff]
    %s267 = scalar_lea.vmem %s205, 481
    %v268 = vld [vmem:[%s267] ss:$2 sm:$0xff]
    %v269 = vmax.f32 %v142, %v174
    %v270 = vmax.f32 %v144, %v176
    %v271 = vmax.f32 %v146, %v178
    %v272 = vmax.f32 %v148, %v180
    %v273 = vmax.f32 %v150, %v182
    %v274 = vmax.f32 %v152, %v184
    %v275 = vmax.f32 %v154, %v186
    %v276 = vmax.f32 %v156, %v188
    %v277 = vmax.f32 %v158, %v190
    %v278 = vmax.f32 %v160, %v192
    %v279 = vmax.f32 %v162, %v194
    %v280 = vmax.f32 %v164, %v196
    %v281 = vmax.f32 %v166, %v198
    %v282 = vmax.f32 %v168, %v200
    %v283 = vmax.f32 %v170, %v202
    %v284 = vmax.f32 %v172, %v204
    %v285 = vmax.f32 %v206, %v238
    %v286 = vmax.f32 %v208, %v240
    %v287 = vmax.f32 %v210, %v242
    %v288 = vmax.f32 %v212, %v244
    %v289 = vmax.f32 %v214, %v246
    %v290 = vmax.f32 %v216, %v248
    %v291 = vmax.f32 %v218, %v250
    %v292 = vmax.f32 %v220, %v252
    %v293 = vmax.f32 %v222, %v254
    %v294 = vmax.f32 %v224, %v256
    %v295 = vmax.f32 %v226, %v258
    %v296 = vmax.f32 %v228, %v260
    %v297 = vmax.f32 %v230, %v262
    %v298 = vmax.f32 %v232, %v264
    %v299 = vmax.f32 %v234, %v266
    %v300 = vmax.f32 %v236, %v268
    %v301 = vmax.f32 %v269, %v285
    %v302 = vmax.f32 %v270, %v286
    %v303 = vmax.f32 %v271, %v287
    %v304 = vmax.f32 %v272, %v288
    %v305 = vmax.f32 %v273, %v289
    %v306 = vmax.f32 %v274, %v290
    %v307 = vmax.f32 %v275, %v291
    %v308 = vmax.f32 %v276, %v292
    %v309 = vmax.f32 %v277, %v293
    %v310 = vmax.f32 %v278, %v294
    %v311 = vmax.f32 %v279, %v295
    %v312 = vmax.f32 %v280, %v296
    %v313 = vmax.f32 %v281, %v297
    %v314 = vmax.f32 %v282, %v298
    %v315 = vmax.f32 %v283, %v299
    %v316 = vmax.f32 %v284, %v300
    %s317 = scalar_lea.vmem [#allocation2], 16
    %318 = vst.msk [vmem:[%s317 + $0x1] sm:$0xff] %vm41, %v301
    %319 = vst.msk [vmem:[%s317 + $0x11] sm:$0xff] %vm41, %v302
    %320 = vst.msk [vmem:[%s317 + $0x21] sm:$0xff] %vm41, %v303
    %321 = vst.msk [vmem:[%s317 + $0x31] sm:$0xff] %vm41, %v304
    %322 = vst.msk [vmem:[%s317 + $0x41] sm:$0xff] %vm41, %v305
    %323 = vst.msk [vmem:[%s317 + $0x51] sm:$0xff] %vm41, %v306
    %324 = vst.msk [vmem:[%s317 + $0x61] sm:$0xff] %vm41, %v307
    %325 = vst.msk [vmem:[%s317 + $0x71] sm:$0xff] %vm41, %v308
    %326 = vst.msk [vmem:[%s317 + $0xa1] sm:$0xff] %vm41, %v309
    %327 = vst.msk [vmem:[%s317 + $0xb1] sm:$0xff] %vm41, %v310
    %328 = vst.msk [vmem:[%s317 + $0xc1] sm:$0xff] %vm41, %v311
    %329 = vst.msk [vmem:[%s317 + $0xd1] sm:$0xff] %vm41, %v312
    %330 = vst.msk [vmem:[%s317 + $0xe1] sm:$0xff] %vm41, %v313
    %331 = vst.msk [vmem:[%s317 + $0xf1] sm:$0xff] %vm41, %v314
    %332 = vst.msk [vmem:[%s317 + $0x101] sm:$0xff] %vm41, %v315
    %333 = vst.msk [vmem:[%s317 + $0x111] sm:$0xff] %vm41, %v316
    %v334 = vld [vmem:[#allocation2] sm:$0xff]
    %v335 = vld [vmem:[#allocation2 + $0x10] sm:$0xff]
    %v336 = vld [vmem:[#allocation2 + $0x20] sm:$0xff]
    %v337 = vld [vmem:[#allocation2 + $0x30] sm:$0xff]
    %v338 = vld [vmem:[#allocation2 + $0x40] sm:$0xff]
    %v339 = vld [vmem:[#allocation2 + $0x50] sm:$0xff]
    %v340 = vld [vmem:[#allocation2 + $0x60] sm:$0xff]
    %v341 = vld [vmem:[#allocation2 + $0x70] sm:$0xff]
    %v342 = vld [vmem:[#allocation2 + $0xa0] sm:$0xff]
    %v343 = vld [vmem:[#allocation2 + $0xb0] sm:$0xff]
    %v344 = vld [vmem:[#allocation2 + $0xc0] sm:$0xff]
    %v345 = vld [vmem:[#allocation2 + $0xd0] sm:$0xff]
    %v346 = vld [vmem:[#allocation2 + $0xe0] sm:$0xff]
    %v347 = vld [vmem:[#allocation2 + $0xf0] sm:$0xff]
    %v348 = vld [vmem:[#allocation2 + $0x100] sm:$0xff]
    %v349 = vld [vmem:[#allocation2 + $0x110] sm:$0xff]
    %v350 = vld [vmem:[%s1] sm:$0xf]
    %v352 = vsel %vm41, %v334, 0
    %v355 = vsel %vm41, %v335, 0
    %v358 = vsel %vm41, %v336, 0
    %v361 = vsel %vm41, %v337, 0
    %v364 = vsel %vm41, %v338, 0
    %v367 = vsel %vm41, %v339, 0
    %v370 = vsel %vm41, %v340, 0
    %v373 = vsel %vm41, %v341, 0
    %v376 = vsel %vm41, %v342, 0
    %v379 = vsel %vm41, %v343, 0
    %v382 = vsel %vm41, %v344, 0
    %v385 = vsel %vm41, %v345, 0
    %v388 = vsel %vm41, %v346, 0
    %v391 = vsel %vm41, %v347, 0
    %v394 = vsel %vm41, %v348, 0
    %v397 = vsel %vm41, %v349, 0
    %vm399 = vcmask 1043456
    %v401 = vsel %vm399, %v350, 0
    %403 = vmatprep.subr.mxu0 0.0
    %404 = vmatpush1.msra.mxu0 %v401
    %405 = vmatprep.subr.mxu0 0.0
    %406 = vmatpush1.msra.mxu0 0.0
    %407 = vmatprep.subr.mxu0 0.0
    %408 = vmatpush1.msra.mxu0 0.0
    %409 = vmatprep.subr.mxu0 0.0
    %410 = vmatpush1.msra.mxu0 0.0
    %411 = vmatprep.subr.mxu0 0.0
    %412 = vmatpush1.msra.mxu0 0.0
    %413 = vmatprep.subr.mxu0 0.0
    %414 = vmatpush1.msra.mxu0 0.0
    %415 = vmatprep.subr.mxu0 0.0
    %416 = vmatpush1.msra.mxu0 0.0
    %417 = vmatprep.subr.mxu0 0.0
    %418 = vmatpush1.msra.mxu0 0.0
    %419 = vmatprep.subr.mxu0 0.0
    %420 = vmatpush1.msra.mxu0 0.0
    %421 = vmatprep.subr.mxu0 0.0
    %422 = vmatpush1.msra.mxu0 0.0
    %423 = vmatprep.subr.mxu0 0.0
    %424 = vmatpush1.msra.mxu0 0.0
    %425 = vmatprep.subr.mxu0 0.0
    %426 = vmatpush1.msra.mxu0 0.0
    %427 = vmatprep.subr.mxu0 0.0
    %428 = vmatpush1.msra.mxu0 0.0
    %429 = vmatprep.subr.mxu0 0.0
    %430 = vmatpush1.msra.mxu0 0.0
    %431 = vmatprep.subr.mxu0 0.0
    %432 = vmatpush1.msra.mxu0 0.0
    %433 = vmatprep.subr.mxu0 0.0
    %434 = vmatpush1.msra.mxu0 0.0
    %435 = vmatprep.subr.mxu0 0.0
    %436 = vmatpush1.msra.mxu0 0.0
    %437 = vmatprep.subr.mxu0 0.0
    %438 = vmatpush1.msra.mxu0 0.0
    %439 = vmatprep.subr.mxu0 0.0
    %440 = vmatpush1.msra.mxu0 0.0
    %441 = vmatprep.subr.mxu0 0.0
    %442 = vmatpush1.msra.mxu0 0.0
    %443 = vmatprep.subr.mxu0 0.0
    %444 = vmatpush1.msra.mxu0 0.0
    %445 = vmatprep.subr.mxu0 0.0
    %446 = vmatpush1.msra.mxu0 0.0
    %447 = vmatprep.subr.mxu0 0.0
    %448 = vmatpush1.msra.mxu0 0.0
    %449 = vmatprep.subr.mxu0 0.0
    %450 = vmatpush1.msra.mxu0 0.0
    %451 = vmatprep.subr.mxu0 0.0
    %452 = vmatpush1.msra.mxu0 0.0
    %453 = vmatprep.subr.mxu0 0.0
    %454 = vmatpush1.msra.mxu0 0.0
    %455 = vmatprep.subr.mxu0 0.0
    %456 = vmatpush1.msra.mxu0 0.0
    %457 = vmatprep.subr.mxu0 0.0
    %458 = vmatpush1.msra.mxu0 0.0
    %459 = vmatprep.subr.mxu0 0.0
    %460 = vmatpush1.msra.mxu0 0.0
    %461 = vmatprep.subr.mxu0 0.0
    %462 = vmatpush1.msra.mxu0 0.0
    %463 = vmatprep.subr.mxu0 0.0
    %464 = vmatpush1.msra.mxu0 0.0
    %465 = vmatprep.subr.mxu0 0.0
    %466 = vmatpush1.msra.mxu0 0.0
    %467 = vmatprep.mubr.f32.mxu0 0.0
    %468 = vmatmul.mubr.f32.gmra.mrb[0].mxu0 %v352
    %v469 = vpop.f32.mrb[0].mxu0
    %v470 = vadd.f32 0.0, %v469
    %v471 = vpop.f32.mrb[0].mxu0
    %472 = vmatprep.mubr.f32.mxu0 0.0
    %473 = vmatmul.mubr.f32.gmra.mrb[0].mxu0 %v355
    %v474 = vpop.f32.mrb[0].mxu0
    %v475 = vadd.f32 0.0, %v474
    %v476 = vpop.f32.mrb[0].mxu0
    %477 = vmatprep.mubr.f32.mxu0 0.0
    %478 = vmatmul.mubr.f32.gmra.mrb[0].mxu0 %v358
    %v479 = vpop.f32.mrb[0].mxu0
    %v480 = vadd.f32 0.0, %v479
    %v481 = vpop.f32.mrb[0].mxu0
    %482 = vmatprep.mubr.f32.mxu0 0.0
    %483 = vmatmul.mubr.f32.gmra.mrb[0].mxu0 %v361
    %v484 = vpop.f32.mrb[0].mxu0
    %v485 = vadd.f32 0.0, %v484
    %v486 = vpop.f32.mrb[0].mxu0
    %487 = vmatprep.mubr.f32.mxu0 0.0
    %488 = vmatmul.mubr.f32.gmra.mrb[0].mxu0 %v364
    %v489 = vpop.f32.mrb[0].mxu0
    %v490 = vadd.f32 0.0, %v489
    %v491 = vpop.f32.mrb[0].mxu0
    %492 = vmatprep.mubr.f32.mxu0 0.0
    %493 = vmatmul.mubr.f32.gmra.mrb[0].mxu0 %v367
    %v494 = vpop.f32.mrb[0].mxu0
    %v495 = vadd.f32 0.0, %v494
    %v496 = vpop.f32.mrb[0].mxu0
    %497 = vmatprep.mubr.f32.mxu0 0.0
    %498 = vmatmul.mubr.f32.gmra.mrb[0].mxu0 %v370
    %v499 = vpop.f32.mrb[0].mxu0
    %v500 = vadd.f32 0.0, %v499
    %v501 = vpop.f32.mrb[0].mxu0
    %502 = vmatprep.mubr.f32.mxu0 0.0
    %503 = vmatmul.mubr.f32.gmra.mrb[0].mxu0 %v373
    %v504 = vpop.f32.mrb[0].mxu0
    %v505 = vadd.f32 0.0, %v504
    %v506 = vpop.f32.mrb[0].mxu0
    %507 = vmatprep.mubr.f32.mxu0 0.0
    %508 = vmatmul.mubr.f32.gmra.mrb[0].mxu0 %v376
    %v509 = vpop.f32.mrb[0].mxu0
    %v510 = vadd.f32 0.0, %v509
    %v511 = vpop.f32.mrb[0].mxu0
    %512 = vmatprep.mubr.f32.mxu0 0.0
    %513 = vmatmul.mubr.f32.gmra.mrb[0].mxu0 %v379
    %v514 = vpop.f32.mrb[0].mxu0
    %v515 = vadd.f32 0.0, %v514
    %v516 = vpop.f32.mrb[0].mxu0
    %517 = vmatprep.mubr.f32.mxu0 0.0
    %518 = vmatmul.mubr.f32.gmra.mrb[0].mxu0 %v382
    %v519 = vpop.f32.mrb[0].mxu0
    %v520 = vadd.f32 0.0, %v519
    %v521 = vpop.f32.mrb[0].mxu0
    %522 = vmatprep.mubr.f32.mxu0 0.0
    %523 = vmatmul.mubr.f32.gmra.mrb[0].mxu0 %v385
    %v524 = vpop.f32.mrb[0].mxu0
    %v525 = vadd.f32 0.0, %v524
    %v526 = vpop.f32.mrb[0].mxu0
    %527 = vmatprep.mubr.f32.mxu0 0.0
    %528 = vmatmul.mubr.f32.gmra.mrb[0].mxu0 %v388
    %v529 = vpop.f32.mrb[0].mxu0
    %v530 = vadd.f32 0.0, %v529
    %v531 = vpop.f32.mrb[0].mxu0
    %532 = vmatprep.mubr.f32.mxu0 0.0
    %533 = vmatmul.mubr.f32.gmra.mrb[0].mxu0 %v391
    %v534 = vpop.f32.mrb[0].mxu0
    %v535 = vadd.f32 0.0, %v534
    %v536 = vpop.f32.mrb[0].mxu0
    %537 = vmatprep.mubr.f32.mxu0 0.0
    %538 = vmatmul.mubr.f32.gmra.mrb[0].mxu0 %v394
    %v539 = vpop.f32.mrb[0].mxu0
    %v540 = vadd.f32 0.0, %v539
    %v541 = vpop.f32.mrb[0].mxu0
    %542 = vmatprep.mubr.f32.mxu0 0.0
    %543 = vmatmul.mubr.f32.gmra.mrb[0].mxu0 %v397
    %v544 = vpop.f32.mrb[0].mxu0
    %v545 = vadd.f32 0.0, %v544
    %v546 = vpop.f32.mrb[0].mxu0
    %547 = vdwg.mxu0
    %548 = vst [vmem:[#allocation4] sm:$0xff] %v470
    %549 = vst [vmem:[#allocation4 + $0x8] sm:$0xff] %v475
    %550 = vst [vmem:[#allocation4 + $0x10] sm:$0xff] %v480
    %551 = vst [vmem:[#allocation4 + $0x18] sm:$0xff] %v485
    %552 = vst [vmem:[#allocation4 + $0x20] sm:$0xff] %v490
    %553 = vst [vmem:[#allocation4 + $0x28] sm:$0xff] %v495
    %554 = vst [vmem:[#allocation4 + $0x30] sm:$0xff] %v500
    %555 = vst [vmem:[#allocation4 + $0x38] sm:$0xff] %v505
    %556 = vst [vmem:[#allocation4 + $0x40] sm:$0xff] %v510
    %557 = vst [vmem:[#allocation4 + $0x48] sm:$0xff] %v515
    %558 = vst [vmem:[#allocation4 + $0x50] sm:$0xff] %v520
    %559 = vst [vmem:[#allocation4 + $0x58] sm:$0xff] %v525
    %560 = vst [vmem:[#allocation4 + $0x60] sm:$0xff] %v530
    %561 = vst [vmem:[#allocation4 + $0x68] sm:$0xff] %v535
    %562 = vst [vmem:[#allocation4 + $0x70] sm:$0xff] %v540
    %563 = vst [vmem:[#allocation4 + $0x78] sm:$0xff] %v545
    %v564 = vld [vmem:[#allocation2 + $0x1] sm:$0xff]
    %v565 = vld [vmem:[#allocation2 + $0x11] sm:$0xff]
    %v566 = vld [vmem:[#allocation2 + $0x21] sm:$0xff]
    %v567 = vld [vmem:[#allocation2 + $0x31] sm:$0xff]
    %v568 = vld [vmem:[#allocation2 + $0x41] sm:$0xff]
    %v569 = vld [vmem:[#allocation2 + $0x51] sm:$0xff]
    %v570 = vld [vmem:[#allocation2 + $0x61] sm:$0xff]
    %v571 = vld [vmem:[#allocation2 + $0x71] sm:$0xff]
    %v572 = vld [vmem:[#allocation2 + $0xa1] sm:$0xff]
    %v573 = vld [vmem:[#allocation2 + $0xb1] sm:$0xff]
    %v574 = vld [vmem:[#allocation2 + $0xc1] sm:$0xff]
    %v575 = vld [vmem:[#allocation2 + $0xd1] sm:$0xff]
    %v576 = vld [vmem:[#allocation2 + $0xe1] sm:$0xff]
    %v577 = vld [vmem:[#allocation2 + $0xf1] sm:$0xff]
    %v578 = vld [vmem:[#allocation2 + $0x101] sm:$0xff]
    %v579 = vld [vmem:[#allocation2 + $0x111] sm:$0xff]
    %s580 = scalar_lea.vmem %s1, 4
    %v581 = vld [vmem:[%s580] sm:$0xf]
    %v583 = vsel %vm41, %v564, 0
    %v586 = vsel %vm41, %v565, 0
    %v589 = vsel %vm41, %v566, 0
    %v592 = vsel %vm41, %v567, 0
    %v595 = vsel %vm41, %v568, 0
    %v598 = vsel %vm41, %v569, 0
    %v601 = vsel %vm41, %v570, 0
    %v604 = vsel %vm41, %v571, 0
    %v607 = vsel %vm41, %v572, 0
    %v610 = vsel %vm41, %v573, 0
    %v613 = vsel %vm41, %v574, 0
    %v616 = vsel %vm41, %v575, 0
    %v619 = vsel %vm41, %v576, 0
    %v622 = vsel %vm41, %v577, 0
    %v625 = vsel %vm41, %v578, 0
    %v628 = vsel %vm41, %v579, 0
    %v631 = vsel %vm399, %v581, 0
    %633 = vmatprep.subr.mxu0 0.0
    %634 = vmatpush1.msra.mxu0 %v631
    %635 = vmatprep.subr.mxu0 0.0
    %636 = vmatpush1.msra.mxu0 0.0
    %637 = vmatprep.subr.mxu0 0.0
    %638 = vmatpush1.msra.mxu0 0.0
    %639 = vmatprep.subr.mxu0 0.0
    %640 = vmatpush1.msra.mxu0 0.0
    %641 = vmatprep.subr.mxu0 0.0
    %642 = vmatpush1.msra.mxu0 0.0
    %643 = vmatprep.subr.mxu0 0.0
    %644 = vmatpush1.msra.mxu0 0.0
    %645 = vmatprep.subr.mxu0 0.0
    %646 = vmatpush1.msra.mxu0 0.0
    %647 = vmatprep.subr.mxu0 0.0
    %648 = vmatpush1.msra.mxu0 0.0
    %649 = vmatprep.subr.mxu0 0.0
    %650 = vmatpush1.msra.mxu0 0.0
    %651 = vmatprep.subr.mxu0 0.0
    %652 = vmatpush1.msra.mxu0 0.0
    %653 = vmatprep.subr.mxu0 0.0
    %654 = vmatpush1.msra.mxu0 0.0
    %655 = vmatprep.subr.mxu0 0.0
    %656 = vmatpush1.msra.mxu0 0.0
    %657 = vmatprep.subr.mxu0 0.0
    %658 = vmatpush1.msra.mxu0 0.0
    %659 = vmatprep.subr.mxu0 0.0
    %660 = vmatpush1.msra.mxu0 0.0
    %661 = vmatprep.subr.mxu0 0.0
    %662 = vmatpush1.msra.mxu0 0.0
    %663 = vmatprep.subr.mxu0 0.0
    %664 = vmatpush1.msra.mxu0 0.0
    %665 = vmatprep.subr.mxu0 0.0
    %666 = vmatpush1.msra.mxu0 0.0
    %667 = vmatprep.subr.mxu0 0.0
    %668 = vmatpush1.msra.mxu0 0.0
    %669 = vmatprep.subr.mxu0 0.0
    %670 = vmatpush1.msra.mxu0 0.0
    %671 = vmatprep.subr.mxu0 0.0
    %672 = vmatpush1.msra.mxu0 0.0
    %673 = vmatprep.subr.mxu0 0.0
    %674 = vmatpush1.msra.mxu0 0.0
    %675 = vmatprep.subr.mxu0 0.0
    %676 = vmatpush1.msra.mxu0 0.0
    %677 = vmatprep.subr.mxu0 0.0
    %678 = vmatpush1.msra.mxu0 0.0
    %679 = vmatprep.subr.mxu0 0.0
    %680 = vmatpush1.msra.mxu0 0.0
    %681 = vmatprep.subr.mxu0 0.0
    %682 = vmatpush1.msra.mxu0 0.0
    %683 = vmatprep.subr.mxu0 0.0
    %684 = vmatpush1.msra.mxu0 0.0
    %685 = vmatprep.subr.mxu0 0.0
    %686 = vmatpush1.msra.mxu0 0.0
    %687 = vmatprep.subr.mxu0 0.0
    %688 = vmatpush1.msra.mxu0 0.0
    %689 = vmatprep.subr.mxu0 0.0
    %690 = vmatpush1.msra.mxu0 0.0
    %691 = vmatprep.subr.mxu0 0.0
    %692 = vmatpush1.msra.mxu0 0.0
    %693 = vmatprep.subr.mxu0 0.0
    %694 = vmatpush1.msra.mxu0 0.0
    %695 = vmatprep.subr.mxu0 0.0
    %696 = vmatpush1.msra.mxu0 0.0
    %697 = vmatprep.mubr.f32.mxu0 0.0
    %698 = vmatmul.mubr.f32.gmra.mrb[0].mxu0 %v583
    %v699 = vpop.f32.mrb[0].mxu0
    %v700 = vadd.f32 0.0, %v699
    %v701 = vpop.f32.mrb[0].mxu0
    %702 = vmatprep.mubr.f32.mxu0 0.0
    %703 = vmatmul.mubr.f32.gmra.mrb[0].mxu0 %v586
    %v704 = vpop.f32.mrb[0].mxu0
    %v705 = vadd.f32 0.0, %v704
    %v706 = vpop.f32.mrb[0].mxu0
    %707 = vmatprep.mubr.f32.mxu0 0.0
    %708 = vmatmul.mubr.f32.gmra.mrb[0].mxu0 %v589
    %v709 = vpop.f32.mrb[0].mxu0
    %v710 = vadd.f32 0.0, %v709
    %v711 = vpop.f32.mrb[0].mxu0
    %712 = vmatprep.mubr.f32.mxu0 0.0
    %713 = vmatmul.mubr.f32.gmra.mrb[0].mxu0 %v592
    %v714 = vpop.f32.mrb[0].mxu0
    %v715 = vadd.f32 0.0, %v714
    %v716 = vpop.f32.mrb[0].mxu0
    %717 = vmatprep.mubr.f32.mxu0 0.0
    %718 = vmatmul.mubr.f32.gmra.mrb[0].mxu0 %v595
    %v719 = vpop.f32.mrb[0].mxu0
    %v720 = vadd.f32 0.0, %v719
    %v721 = vpop.f32.mrb[0].mxu0
    %722 = vmatprep.mubr.f32.mxu0 0.0
    %723 = vmatmul.mubr.f32.gmra.mrb[0].mxu0 %v598
    %v724 = vpop.f32.mrb[0].mxu0
    %v725 = vadd.f32 0.0, %v724
    %v726 = vpop.f32.mrb[0].mxu0
    %727 = vmatprep.mubr.f32.mxu0 0.0
    %728 = vmatmul.mubr.f32.gmra.mrb[0].mxu0 %v601
    %v729 = vpop.f32.mrb[0].mxu0
    %v730 = vadd.f32 0.0, %v729
    %v731 = vpop.f32.mrb[0].mxu0
    %732 = vmatprep.mubr.f32.mxu0 0.0
    %733 = vmatmul.mubr.f32.gmra.mrb[0].mxu0 %v604
    %v734 = vpop.f32.mrb[0].mxu0
    %v735 = vadd.f32 0.0, %v734
    %v736 = vpop.f32.mrb[0].mxu0
    %737 = vmatprep.mubr.f32.mxu0 0.0
    %738 = vmatmul.mubr.f32.gmra.mrb[0].mxu0 %v607
    %v739 = vpop.f32.mrb[0].mxu0
    %v740 = vadd.f32 0.0, %v739
    %v741 = vpop.f32.mrb[0].mxu0
    %742 = vmatprep.mubr.f32.mxu0 0.0
    %743 = vmatmul.mubr.f32.gmra.mrb[0].mxu0 %v610
    %v744 = vpop.f32.mrb[0].mxu0
    %v745 = vadd.f32 0.0, %v744
    %v746 = vpop.f32.mrb[0].mxu0
    %747 = vmatprep.mubr.f32.mxu0 0.0
    %748 = vmatmul.mubr.f32.gmra.mrb[0].mxu0 %v613
    %v749 = vpop.f32.mrb[0].mxu0
    %v750 = vadd.f32 0.0, %v749
    %v751 = vpop.f32.mrb[0].mxu0
    %752 = vmatprep.mubr.f32.mxu0 0.0
    %753 = vmatmul.mubr.f32.gmra.mrb[0].mxu0 %v616
    %v754 = vpop.f32.mrb[0].mxu0
    %v755 = vadd.f32 0.0, %v754
    %v756 = vpop.f32.mrb[0].mxu0
    %757 = vmatprep.mubr.f32.mxu0 0.0
    %758 = vmatmul.mubr.f32.gmra.mrb[0].mxu0 %v619
    %v759 = vpop.f32.mrb[0].mxu0
    %v760 = vadd.f32 0.0, %v759
    %v761 = vpop.f32.mrb[0].mxu0
    %762 = vmatprep.mubr.f32.mxu0 0.0
    %763 = vmatmul.mubr.f32.gmra.mrb[0].mxu0 %v622
    %v764 = vpop.f32.mrb[0].mxu0
    %v765 = vadd.f32 0.0, %v764
    %v766 = vpop.f32.mrb[0].mxu0
    %767 = vmatprep.mubr.f32.mxu0 0.0
    %768 = vmatmul.mubr.f32.gmra.mrb[0].mxu0 %v625
    %v769 = vpop.f32.mrb[0].mxu0
    %v770 = vadd.f32 0.0, %v769
    %v771 = vpop.f32.mrb[0].mxu0
    %772 = vmatprep.mubr.f32.mxu0 0.0
    %773 = vmatmul.mubr.f32.gmra.mrb[0].mxu0 %v628
    %v774 = vpop.f32.mrb[0].mxu0
    %v775 = vadd.f32 0.0, %v774
    %v776 = vpop.f32.mrb[0].mxu0
    %777 = vdwg.mxu0
    %v778 = vld [vmem:[#allocation4] sm:$0xff]
    %v779 = vld [vmem:[#allocation4 + $0x8] sm:$0xff]
    %v780 = vld [vmem:[#allocation4 + $0x10] sm:$0xff]
    %v781 = vld [vmem:[#allocation4 + $0x18] sm:$0xff]
    %v782 = vld [vmem:[#allocation4 + $0x20] sm:$0xff]
    %v783 = vld [vmem:[#allocation4 + $0x28] sm:$0xff]
    %v784 = vld [vmem:[#allocation4 + $0x30] sm:$0xff]
    %v785 = vld [vmem:[#allocation4 + $0x38] sm:$0xff]
    %v786 = vld [vmem:[#allocation4 + $0x40] sm:$0xff]
    %v787 = vld [vmem:[#allocation4 + $0x48] sm:$0xff]
    %v788 = vld [vmem:[#allocation4 + $0x50] sm:$0xff]
    %v789 = vld [vmem:[#allocation4 + $0x58] sm:$0xff]
    %v790 = vld [vmem:[#allocation4 + $0x60] sm:$0xff]
    %v791 = vld [vmem:[#allocation4 + $0x68] sm:$0xff]
    %v792 = vld [vmem:[#allocation4 + $0x70] sm:$0xff]
    %v793 = vld [vmem:[#allocation4 + $0x78] sm:$0xff]
    %v794 = vadd.f32 %v778, %v700
    %v795 = vadd.f32 %v779, %v705
    %v796 = vadd.f32 %v780, %v710
    %v797 = vadd.f32 %v781, %v715
    %v798 = vadd.f32 %v782, %v720
    %v799 = vadd.f32 %v783, %v725
    %v800 = vadd.f32 %v784, %v730
    %v801 = vadd.f32 %v785, %v735
    %v802 = vadd.f32 %v786, %v740
    %v803 = vadd.f32 %v787, %v745
    %v804 = vadd.f32 %v788, %v750
    %v805 = vadd.f32 %v789, %v755
    %v806 = vadd.f32 %v790, %v760
    %v807 = vadd.f32 %v791, %v765
    %v808 = vadd.f32 %v792, %v770
    %v809 = vadd.f32 %v793, %v775
    %810 = vst [vmem:[#allocation4] sm:$0xff] %v794
    %811 = vst [vmem:[#allocation4 + $0x8] sm:$0xff] %v795
    %812 = vst [vmem:[#allocation4 + $0x10] sm:$0xff] %v796
    %813 = vst [vmem:[#allocation4 + $0x18] sm:$0xff] %v797
    %814 = vst [vmem:[#allocation4 + $0x20] sm:$0xff] %v798
    %815 = vst [vmem:[#allocation4 + $0x28] sm:$0xff] %v799
    %816 = vst [vmem:[#allocation4 + $0x30] sm:$0xff] %v800
    %817 = vst [vmem:[#allocation4 + $0x38] sm:$0xff] %v801
    %818 = vst [vmem:[#allocation4 + $0x40] sm:$0xff] %v802
    %819 = vst [vmem:[#allocation4 + $0x48] sm:$0xff] %v803
    %820 = vst [vmem:[#allocation4 + $0x50] sm:$0xff] %v804
    %821 = vst [vmem:[#allocation4 + $0x58] sm:$0xff] %v805
    %822 = vst [vmem:[#allocation4 + $0x60] sm:$0xff] %v806
    %823 = vst [vmem:[#allocation4 + $0x68] sm:$0xff] %v807
    %824 = vst [vmem:[#allocation4 + $0x70] sm:$0xff] %v808
    %825 = vst [vmem:[#allocation4 + $0x78] sm:$0xff] %v809
    %v826 = vld [vmem:[#allocation2 + $0x2] sm:$0xff]
    %v827 = vld [vmem:[#allocation2 + $0x12] sm:$0xff]
    %v828 = vld [vmem:[#allocation2 + $0x22] sm:$0xff]
    %v829 = vld [vmem:[#allocation2 + $0x32] sm:$0xff]
    %v830 = vld [vmem:[#allocation2 + $0x42] sm:$0xff]
    %v831 = vld [vmem:[#allocation2 + $0x52] sm:$0xff]
    %v832 = vld [vmem:[#allocation2 + $0x62] sm:$0xff]
    %v833 = vld [vmem:[#allocation2 + $0x72] sm:$0xff]
    %v834 = vld [vmem:[#allocation2 + $0xa2] sm:$0xff]
    %v835 = vld [vmem:[#allocation2 + $0xb2] sm:$0xff]
    %v836 = vld [vmem:[#allocation2 + $0xc2] sm:$0xff]
    %v837 = vld [vmem:[#allocation2 + $0xd2] sm:$0xff]
    %v838 = vld [vmem:[#allocation2 + $0xe2] sm:$0xff]
    %v839 = vld [vmem:[#allocation2 + $0xf2] sm:$0xff]
    %v840 = vld [vmem:[#allocation2 + $0x102] sm:$0xff]
    %v841 = vld [vmem:[#allocation2 + $0x112] sm:$0xff]
    %s842 = scalar_lea.vmem %s1, 8
    %v843 = vld [vmem:[%s842] sm:$0xf]
    %v845 = vsel %vm41, %v826, 0
    %v848 = vsel %vm41, %v827, 0
    %v851 = vsel %vm41, %v828, 0
    %v854 = vsel %vm41, %v829, 0
    %v857 = vsel %vm41, %v830, 0
    %v860 = vsel %vm41, %v831, 0
    %v863 = vsel %vm41, %v832, 0
    %v866 = vsel %vm41, %v833, 0
    %v869 = vsel %vm41, %v834, 0
    %v872 = vsel %vm41, %v835, 0
    %v875 = vsel %vm41, %v836, 0
    %v878 = vsel %vm41, %v837, 0
    %v881 = vsel %vm41, %v838, 0
    %v884 = vsel %vm41, %v839, 0
    %v887 = vsel %vm41, %v840, 0
    %v890 = vsel %vm41, %v841, 0
    %v893 = vsel %vm399, %v843, 0
    %895 = vmatprep.subr.mxu0 0.0
    %896 = vmatpush1.msra.mxu0 %v893
    %897 = vmatprep.subr.mxu0 0.0
    %898 = vmatpush1.msra.mxu0 0.0
    %899 = vmatprep.subr.mxu0 0.0
    %900 = vmatpush1.msra.mxu0 0.0
    %901 = vmatprep.subr.mxu0 0.0
    %902 = vmatpush1.msra.mxu0 0.0
    %903 = vmatprep.subr.mxu0 0.0
    %904 = vmatpush1.msra.mxu0 0.0
    %905 = vmatprep.subr.mxu0 0.0
    %906 = vmatpush1.msra.mxu0 0.0
    %907 = vmatprep.subr.mxu0 0.0
    %908 = vmatpush1.msra.mxu0 0.0
    %909 = vmatprep.subr.mxu0 0.0
    %910 = vmatpush1.msra.mxu0 0.0
    %911 = vmatprep.subr.mxu0 0.0
    %912 = vmatpush1.msra.mxu0 0.0
    %913 = vmatprep.subr.mxu0 0.0
    %914 = vmatpush1.msra.mxu0 0.0
    %915 = vmatprep.subr.mxu0 0.0
    %916 = vmatpush1.msra.mxu0 0.0
    %917 = vmatprep.subr.mxu0 0.0
    %918 = vmatpush1.msra.mxu0 0.0
    %919 = vmatprep.subr.mxu0 0.0
    %920 = vmatpush1.msra.mxu0 0.0
    %921 = vmatprep.subr.mxu0 0.0
    %922 = vmatpush1.msra.mxu0 0.0
    %923 = vmatprep.subr.mxu0 0.0
    %924 = vmatpush1.msra.mxu0 0.0
    %925 = vmatprep.subr.mxu0 0.0
    %926 = vmatpush1.msra.mxu0 0.0
    %927 = vmatprep.subr.mxu0 0.0
    %928 = vmatpush1.msra.mxu0 0.0
    %929 = vmatprep.subr.mxu0 0.0
    %930 = vmatpush1.msra.mxu0 0.0
    %931 = vmatprep.subr.mxu0 0.0
    %932 = vmatpush1.msra.mxu0 0.0
    %933 = vmatprep.subr.mxu0 0.0
    %934 = vmatpush1.msra.mxu0 0.0
    %935 = vmatprep.subr.mxu0 0.0
    %936 = vmatpush1.msra.mxu0 0.0
    %937 = vmatprep.subr.mxu0 0.0
    %938 = vmatpush1.msra.mxu0 0.0
    %939 = vmatprep.subr.mxu0 0.0
    %940 = vmatpush1.msra.mxu0 0.0
    %941 = vmatprep.subr.mxu0 0.0
    %942 = vmatpush1.msra.mxu0 0.0
    %943 = vmatprep.subr.mxu0 0.0
    %944 = vmatpush1.msra.mxu0 0.0
    %945 = vmatprep.subr.mxu0 0.0
    %946 = vmatpush1.msra.mxu0 0.0
    %947 = vmatprep.subr.mxu0 0.0
    %948 = vmatpush1.msra.mxu0 0.0
    %949 = vmatprep.subr.mxu0 0.0
    %950 = vmatpush1.msra.mxu0 0.0
    %951 = vmatprep.subr.mxu0 0.0
    %952 = vmatpush1.msra.mxu0 0.0
    %953 = vmatprep.subr.mxu0 0.0
    %954 = vmatpush1.msra.mxu0 0.0
    %955 = vmatprep.subr.mxu0 0.0
    %956 = vmatpush1.msra.mxu0 0.0
    %957 = vmatprep.subr.mxu0 0.0
    %958 = vmatpush1.msra.mxu0 0.0
    %959 = vmatprep.mubr.f32.mxu0 0.0
    %960 = vmatmul.mubr.f32.gmra.mrb[0].mxu0 %v845
    %v961 = vpop.f32.mrb[0].mxu0
    %v962 = vadd.f32 0.0, %v961
    %v963 = vpop.f32.mrb[0].mxu0
    %964 = vmatprep.mubr.f32.mxu0 0.0
    %965 = vmatmul.mubr.f32.gmra.mrb[0].mxu0 %v848
    %v966 = vpop.f32.mrb[0].mxu0
    %v967 = vadd.f32 0.0, %v966
    %v968 = vpop.f32.mrb[0].mxu0
    %969 = vmatprep.mubr.f32.mxu0 0.0
    %970 = vmatmul.mubr.f32.gmra.mrb[0].mxu0 %v851
    %v971 = vpop.f32.mrb[0].mxu0
    %v972 = vadd.f32 0.0, %v971
    %v973 = vpop.f32.mrb[0].mxu0
    %974 = vmatprep.mubr.f32.mxu0 0.0
    %975 = vmatmul.mubr.f32.gmra.mrb[0].mxu0 %v854
    %v976 = vpop.f32.mrb[0].mxu0
    %v977 = vadd.f32 0.0, %v976
    %v978 = vpop.f32.mrb[0].mxu0
    %979 = vmatprep.mubr.f32.mxu0 0.0
    %980 = vmatmul.mubr.f32.gmra.mrb[0].mxu0 %v857
    %v981 = vpop.f32.mrb[0].mxu0
    %v982 = vadd.f32 0.0, %v981
    %v983 = vpop.f32.mrb[0].mxu0
    %984 = vmatprep.mubr.f32.mxu0 0.0
    %985 = vmatmul.mubr.f32.gmra.mrb[0].mxu0 %v860
    %v986 = vpop.f32.mrb[0].mxu0
    %v987 = vadd.f32 0.0, %v986
    %v988 = vpop.f32.mrb[0].mxu0
    %989 = vmatprep.mubr.f32.mxu0 0.0
    %990 = vmatmul.mubr.f32.gmra.mrb[0].mxu0 %v863
    %v991 = vpop.f32.mrb[0].mxu0
    %v992 = vadd.f32 0.0, %v991
    %v993 = vpop.f32.mrb[0].mxu0
    %994 = vmatprep.mubr.f32.mxu0 0.0
    %995 = vmatmul.mubr.f32.gmra.mrb[0].mxu0 %v866
    %v996 = vpop.f32.mrb[0].mxu0
    %v997 = vadd.f32 0.0, %v996
    %v998 = vpop.f32.mrb[0].mxu0
    %999 = vmatprep.mubr.f32.mxu0 0.0
    %1000 = vmatmul.mubr.f32.gmra.mrb[0].mxu0 %v869
    %v1001 = vpop.f32.mrb[0].mxu0
    %v1002 = vadd.f32 0.0, %v1001
    %v1003 = vpop.f32.mrb[0].mxu0
    %1004 = vmatprep.mubr.f32.mxu0 0.0
    %1005 = vmatmul.mubr.f32.gmra.mrb[0].mxu0 %v872
    %v1006 = vpop.f32.mrb[0].mxu0
    %v1007 = vadd.f32 0.0, %v1006
    %v1008 = vpop.f32.mrb[0].mxu0
    %1009 = vmatprep.mubr.f32.mxu0 0.0
    %1010 = vmatmul.mubr.f32.gmra.mrb[0].mxu0 %v875
    %v1011 = vpop.f32.mrb[0].mxu0
    %v1012 = vadd.f32 0.0, %v1011
    %v1013 = vpop.f32.mrb[0].mxu0
    %1014 = vmatprep.mubr.f32.mxu0 0.0
    %1015 = vmatmul.mubr.f32.gmra.mrb[0].mxu0 %v878
    %v1016 = vpop.f32.mrb[0].mxu0
    %v1017 = vadd.f32 0.0, %v1016
    %v1018 = vpop.f32.mrb[0].mxu0
    %1019 = vmatprep.mubr.f32.mxu0 0.0
    %1020 = vmatmul.mubr.f32.gmra.mrb[0].mxu0 %v881
    %v1021 = vpop.f32.mrb[0].mxu0
    %v1022 = vadd.f32 0.0, %v1021
    %v1023 = vpop.f32.mrb[0].mxu0
    %1024 = vmatprep.mubr.f32.mxu0 0.0
    %1025 = vmatmul.mubr.f32.gmra.mrb[0].mxu0 %v884
    %v1026 = vpop.f32.mrb[0].mxu0
    %v1027 = vadd.f32 0.0, %v1026
    %v1028 = vpop.f32.mrb[0].mxu0
    %1029 = vmatprep.mubr.f32.mxu0 0.0
    %1030 = vmatmul.mubr.f32.gmra.mrb[0].mxu0 %v887
    %v1031 = vpop.f32.mrb[0].mxu0
    %v1032 = vadd.f32 0.0, %v1031
    %v1033 = vpop.f32.mrb[0].mxu0
    %1034 = vmatprep.mubr.f32.mxu0 0.0
    %1035 = vmatmul.mubr.f32.gmra.mrb[0].mxu0 %v890
    %v1036 = vpop.f32.mrb[0].mxu0
    %v1037 = vadd.f32 0.0, %v1036
    %v1038 = vpop.f32.mrb[0].mxu0
    %1039 = vdwg.mxu0
    %v1040 = vld [vmem:[#allocation4] sm:$0xff]
    %v1041 = vld [vmem:[#allocation4 + $0x8] sm:$0xff]
    %v1042 = vld [vmem:[#allocation4 + $0x10] sm:$0xff]
    %v1043 = vld [vmem:[#allocation4 + $0x18] sm:$0xff]
    %v1044 = vld [vmem:[#allocation4 + $0x20] sm:$0xff]
    %v1045 = vld [vmem:[#allocation4 + $0x28] sm:$0xff]
    %v1046 = vld [vmem:[#allocation4 + $0x30] sm:$0xff]
    %v1047 = vld [vmem:[#allocation4 + $0x38] sm:$0xff]
    %v1048 = vld [vmem:[#allocation4 + $0x40] sm:$0xff]
    %v1049 = vld [vmem:[#allocation4 + $0x48] sm:$0xff]
    %v1050 = vld [vmem:[#allocation4 + $0x50] sm:$0xff]
    %v1051 = vld [vmem:[#allocation4 + $0x58] sm:$0xff]
    %v1052 = vld [vmem:[#allocation4 + $0x60] sm:$0xff]
    %v1053 = vld [vmem:[#allocation4 + $0x68] sm:$0xff]
    %v1054 = vld [vmem:[#allocation4 + $0x70] sm:$0xff]
    %v1055 = vld [vmem:[#allocation4 + $0x78] sm:$0xff]
    %v1056 = vadd.f32 %v1040, %v962
    %v1057 = vadd.f32 %v1041, %v967
    %v1058 = vadd.f32 %v1042, %v972
    %v1059 = vadd.f32 %v1043, %v977
    %v1060 = vadd.f32 %v1044, %v982
    %v1061 = vadd.f32 %v1045, %v987
    %v1062 = vadd.f32 %v1046, %v992
    %v1063 = vadd.f32 %v1047, %v997
    %v1064 = vadd.f32 %v1048, %v1002
    %v1065 = vadd.f32 %v1049, %v1007
    %v1066 = vadd.f32 %v1050, %v1012
    %v1067 = vadd.f32 %v1051, %v1017
    %v1068 = vadd.f32 %v1052, %v1022
    %v1069 = vadd.f32 %v1053, %v1027
    %v1070 = vadd.f32 %v1054, %v1032
    %v1071 = vadd.f32 %v1055, %v1037
    %1072 = vst [vmem:[#allocation4] sm:$0xff] %v1056
    %1073 = vst [vmem:[#allocation4 + $0x8] sm:$0xff] %v1057
    %1074 = vst [vmem:[#allocation4 + $0x10] sm:$0xff] %v1058
    %1075 = vst [vmem:[#allocation4 + $0x18] sm:$0xff] %v1059
    %1076 = vst [vmem:[#allocation4 + $0x20] sm:$0xff] %v1060
    %1077 = vst [vmem:[#allocation4 + $0x28] sm:$0xff] %v1061
    %1078 = vst [vmem:[#allocation4 + $0x30] sm:$0xff] %v1062
    %1079 = vst [vmem:[#allocation4 + $0x38] sm:$0xff] %v1063
    %1080 = vst [vmem:[#allocation4 + $0x40] sm:$0xff] %v1064
    %1081 = vst [vmem:[#allocation4 + $0x48] sm:$0xff] %v1065
    %1082 = vst [vmem:[#allocation4 + $0x50] sm:$0xff] %v1066
    %1083 = vst [vmem:[#allocation4 + $0x58] sm:$0xff] %v1067
    %1084 = vst [vmem:[#allocation4 + $0x60] sm:$0xff] %v1068
    %1085 = vst [vmem:[#allocation4 + $0x68] sm:$0xff] %v1069
    %1086 = vst [vmem:[#allocation4 + $0x70] sm:$0xff] %v1070
    %1087 = vst [vmem:[#allocation4 + $0x78] sm:$0xff] %v1071
    %v1088 = vld [vmem:[%s317] sm:$0xff]
    %v1089 = vld [vmem:[%s317 + $0x10] sm:$0xff]
    %v1090 = vld [vmem:[%s317 + $0x20] sm:$0xff]
    %v1091 = vld [vmem:[%s317 + $0x30] sm:$0xff]
    %v1092 = vld [vmem:[%s317 + $0x40] sm:$0xff]
    %v1093 = vld [vmem:[%s317 + $0x50] sm:$0xff]
    %v1094 = vld [vmem:[%s317 + $0x60] sm:$0xff]
    %v1095 = vld [vmem:[%s317 + $0x70] sm:$0xff]
    %v1096 = vld [vmem:[%s317 + $0xa0] sm:$0xff]
    %v1097 = vld [vmem:[%s317 + $0xb0] sm:$0xff]
    %v1098 = vld [vmem:[%s317 + $0xc0] sm:$0xff]
    %v1099 = vld [vmem:[%s317 + $0xd0] sm:$0xff]
    %v1100 = vld [vmem:[%s317 + $0xe0] sm:$0xff]
    %v1101 = vld [vmem:[%s317 + $0xf0] sm:$0xff]
    %v1102 = vld [vmem:[%s317 + $0x100] sm:$0xff]
    %v1103 = vld [vmem:[%s317 + $0x110] sm:$0xff]
    %s1104 = scalar_lea.vmem %s1, 12
    %v1105 = vld [vmem:[%s1104] sm:$0xf]
    %v1107 = vsel %vm41, %v1088, 0
    %v1110 = vsel %vm41, %v1089, 0
    %v1113 = vsel %vm41, %v1090, 0
    %v1116 = vsel %vm41, %v1091, 0
    %v1119 = vsel %vm41, %v1092, 0
    %v1122 = vsel %vm41, %v1093, 0
    %v1125 = vsel %vm41, %v1094, 0
    %v1128 = vsel %vm41, %v1095, 0
    %v1131 = vsel %vm41, %v1096, 0
    %v1134 = vsel %vm41, %v1097, 0
    %v1137 = vsel %vm41, %v1098, 0
    %v1140 = vsel %vm41, %v1099, 0
    %v1143 = vsel %vm41, %v1100, 0
    %v1146 = vsel %vm41, %v1101, 0
    %v1149 = vsel %vm41, %v1102, 0
    %v1152 = vsel %vm41, %v1103, 0
    %v1155 = vsel %vm399, %v1105, 0
    %1157 = vmatprep.subr.mxu0 0.0
    %1158 = vmatpush1.msra.mxu0 %v1155
    %1159 = vmatprep.subr.mxu0 0.0
    %1160 = vmatpush1.msra.mxu0 0.0
    %1161 = vmatprep.subr.mxu0 0.0
    %1162 = vmatpush1.msra.mxu0 0.0
    %1163 = vmatprep.subr.mxu0 0.0
    %1164 = vmatpush1.msra.mxu0 0.0
    %1165 = vmatprep.subr.mxu0 0.0
    %1166 = vmatpush1.msra.mxu0 0.0
    %1167 = vmatprep.subr.mxu0 0.0
    %1168 = vmatpush1.msra.mxu0 0.0
    %1169 = vmatprep.subr.mxu0 0.0
    %1170 = vmatpush1.msra.mxu0 0.0
    %1171 = vmatprep.subr.mxu0 0.0
    %1172 = vmatpush1.msra.mxu0 0.0
    %1173 = vmatprep.subr.mxu0 0.0
    %1174 = vmatpush1.msra.mxu0 0.0
    %1175 = vmatprep.subr.mxu0 0.0
    %1176 = vmatpush1.msra.mxu0 0.0
    %1177 = vmatprep.subr.mxu0 0.0
    %1178 = vmatpush1.msra.mxu0 0.0
    %1179 = vmatprep.subr.mxu0 0.0
    %1180 = vmatpush1.msra.mxu0 0.0
    %1181 = vmatprep.subr.mxu0 0.0
    %1182 = vmatpush1.msra.mxu0 0.0
    %1183 = vmatprep.subr.mxu0 0.0
    %1184 = vmatpush1.msra.mxu0 0.0
    %1185 = vmatprep.subr.mxu0 0.0
    %1186 = vmatpush1.msra.mxu0 0.0
    %1187 = vmatprep.subr.mxu0 0.0
    %1188 = vmatpush1.msra.mxu0 0.0
    %1189 = vmatprep.subr.mxu0 0.0
    %1190 = vmatpush1.msra.mxu0 0.0
    %1191 = vmatprep.subr.mxu0 0.0
    %1192 = vmatpush1.msra.mxu0 0.0
    %1193 = vmatprep.subr.mxu0 0.0
    %1194 = vmatpush1.msra.mxu0 0.0
    %1195 = vmatprep.subr.mxu0 0.0
    %1196 = vmatpush1.msra.mxu0 0.0
    %1197 = vmatprep.subr.mxu0 0.0
    %1198 = vmatpush1.msra.mxu0 0.0
    %1199 = vmatprep.subr.mxu0 0.0
    %1200 = vmatpush1.msra.mxu0 0.0
    %1201 = vmatprep.subr.mxu0 0.0
    %1202 = vmatpush1.msra.mxu0 0.0
    %1203 = vmatprep.subr.mxu0 0.0
    %1204 = vmatpush1.msra.mxu0 0.0
    %1205 = vmatprep.subr.mxu0 0.0
    %1206 = vmatpush1.msra.mxu0 0.0
    %1207 = vmatprep.subr.mxu0 0.0
    %1208 = vmatpush1.msra.mxu0 0.0
    %1209 = vmatprep.subr.mxu0 0.0
    %1210 = vmatpush1.msra.mxu0 0.0
    %1211 = vmatprep.subr.mxu0 0.0
    %1212 = vmatpush1.msra.mxu0 0.0
    %1213 = vmatprep.subr.mxu0 0.0
    %1214 = vmatpush1.msra.mxu0 0.0
    %1215 = vmatprep.subr.mxu0 0.0
    %1216 = vmatpush1.msra.mxu0 0.0
    %1217 = vmatprep.subr.mxu0 0.0
    %1218 = vmatpush1.msra.mxu0 0.0
    %1219 = vmatprep.subr.mxu0 0.0
    %1220 = vmatpush1.msra.mxu0 0.0
    %1221 = vmatprep.mubr.f32.mxu0 0.0
    %1222 = vmatmul.mubr.f32.gmra.mrb[0].mxu0 %v1107
    %v1223 = vpop.f32.mrb[0].mxu0
    %v1224 = vadd.f32 0.0, %v1223
    %v1225 = vpop.f32.mrb[0].mxu0
    %1226 = vmatprep.mubr.f32.mxu0 0.0
    %1227 = vmatmul.mubr.f32.gmra.mrb[0].mxu0 %v1110
    %v1228 = vpop.f32.mrb[0].mxu0
    %v1229 = vadd.f32 0.0, %v1228
    %v1230 = vpop.f32.mrb[0].mxu0
    %1231 = vmatprep.mubr.f32.mxu0 0.0
    %1232 = vmatmul.mubr.f32.gmra.mrb[0].mxu0 %v1113
    %v1233 = vpop.f32.mrb[0].mxu0
    %v1234 = vadd.f32 0.0, %v1233
    %v1235 = vpop.f32.mrb[0].mxu0
    %1236 = vmatprep.mubr.f32.mxu0 0.0
    %1237 = vmatmul.mubr.f32.gmra.mrb[0].mxu0 %v1116
    %v1238 = vpop.f32.mrb[0].mxu0
    %v1239 = vadd.f32 0.0, %v1238
    %v1240 = vpop.f32.mrb[0].mxu0
    %1241 = vmatprep.mubr.f32.mxu0 0.0
    %1242 = vmatmul.mubr.f32.gmra.mrb[0].mxu0 %v1119
    %v1243 = vpop.f32.mrb[0].mxu0
    %v1244 = vadd.f32 0.0, %v1243
    %v1245 = vpop.f32.mrb[0].mxu0
    %1246 = vmatprep.mubr.f32.mxu0 0.0
    %1247 = vmatmul.mubr.f32.gmra.mrb[0].mxu0 %v1122
    %v1248 = vpop.f32.mrb[0].mxu0
    %v1249 = vadd.f32 0.0, %v1248
    %v1250 = vpop.f32.mrb[0].mxu0
    %1251 = vmatprep.mubr.f32.mxu0 0.0
    %1252 = vmatmul.mubr.f32.gmra.mrb[0].mxu0 %v1125
    %v1253 = vpop.f32.mrb[0].mxu0
    %v1254 = vadd.f32 0.0, %v1253
    %v1255 = vpop.f32.mrb[0].mxu0
    %1256 = vmatprep.mubr.f32.mxu0 0.0
    %1257 = vmatmul.mubr.f32.gmra.mrb[0].mxu0 %v1128
    %v1258 = vpop.f32.mrb[0].mxu0
    %v1259 = vadd.f32 0.0, %v1258
    %v1260 = vpop.f32.mrb[0].mxu0
    %1261 = vmatprep.mubr.f32.mxu0 0.0
    %1262 = vmatmul.mubr.f32.gmra.mrb[0].mxu0 %v1131
    %v1263 = vpop.f32.mrb[0].mxu0
    %v1264 = vadd.f32 0.0, %v1263
    %v1265 = vpop.f32.mrb[0].mxu0
    %1266 = vmatprep.mubr.f32.mxu0 0.0
    %1267 = vmatmul.mubr.f32.gmra.mrb[0].mxu0 %v1134
    %v1268 = vpop.f32.mrb[0].mxu0
    %v1269 = vadd.f32 0.0, %v1268
    %v1270 = vpop.f32.mrb[0].mxu0
    %1271 = vmatprep.mubr.f32.mxu0 0.0
    %1272 = vmatmul.mubr.f32.gmra.mrb[0].mxu0 %v1137
    %v1273 = vpop.f32.mrb[0].mxu0
    %v1274 = vadd.f32 0.0, %v1273
    %v1275 = vpop.f32.mrb[0].mxu0
    %1276 = vmatprep.mubr.f32.mxu0 0.0
    %1277 = vmatmul.mubr.f32.gmra.mrb[0].mxu0 %v1140
    %v1278 = vpop.f32.mrb[0].mxu0
    %v1279 = vadd.f32 0.0, %v1278
    %v1280 = vpop.f32.mrb[0].mxu0
    %1281 = vmatprep.mubr.f32.mxu0 0.0
    %1282 = vmatmul.mubr.f32.gmra.mrb[0].mxu0 %v1143
    %v1283 = vpop.f32.mrb[0].mxu0
    %v1284 = vadd.f32 0.0, %v1283
    %v1285 = vpop.f32.mrb[0].mxu0
    %1286 = vmatprep.mubr.f32.mxu0 0.0
    %1287 = vmatmul.mubr.f32.gmra.mrb[0].mxu0 %v1146
    %v1288 = vpop.f32.mrb[0].mxu0
    %v1289 = vadd.f32 0.0, %v1288
    %v1290 = vpop.f32.mrb[0].mxu0
    %1291 = vmatprep.mubr.f32.mxu0 0.0
    %1292 = vmatmul.mubr.f32.gmra.mrb[0].mxu0 %v1149
    %v1293 = vpop.f32.mrb[0].mxu0
    %v1294 = vadd.f32 0.0, %v1293
    %v1295 = vpop.f32.mrb[0].mxu0
    %1296 = vmatprep.mubr.f32.mxu0 0.0
    %1297 = vmatmul.mubr.f32.gmra.mrb[0].mxu0 %v1152
    %v1298 = vpop.f32.mrb[0].mxu0
    %v1299 = vadd.f32 0.0, %v1298
    %v1300 = vpop.f32.mrb[0].mxu0
    %1301 = vdwg.mxu0
    %v1302 = vld [vmem:[#allocation4] sm:$0xff]
    %v1303 = vld [vmem:[#allocation4 + $0x8] sm:$0xff]
    %v1304 = vld [vmem:[#allocation4 + $0x10] sm:$0xff]
    %v1305 = vld [vmem:[#allocation4 + $0x18] sm:$0xff]
    %v1306 = vld [vmem:[#allocation4 + $0x20] sm:$0xff]
    %v1307 = vld [vmem:[#allocation4 + $0x28] sm:$0xff]
    %v1308 = vld [vmem:[#allocation4 + $0x30] sm:$0xff]
    %v1309 = vld [vmem:[#allocation4 + $0x38] sm:$0xff]
    %v1310 = vld [vmem:[#allocation4 + $0x40] sm:$0xff]
    %v1311 = vld [vmem:[#allocation4 + $0x48] sm:$0xff]
    %v1312 = vld [vmem:[#allocation4 + $0x50] sm:$0xff]
    %v1313 = vld [vmem:[#allocation4 + $0x58] sm:$0xff]
    %v1314 = vld [vmem:[#allocation4 + $0x60] sm:$0xff]
    %v1315 = vld [vmem:[#allocation4 + $0x68] sm:$0xff]
    %v1316 = vld [vmem:[#allocation4 + $0x70] sm:$0xff]
    %v1317 = vld [vmem:[#allocation4 + $0x78] sm:$0xff]
    %v1318 = vadd.f32 %v1302, %v1224
    %v1319 = vadd.f32 %v1303, %v1229
    %v1320 = vadd.f32 %v1304, %v1234
    %v1321 = vadd.f32 %v1305, %v1239
    %v1322 = vadd.f32 %v1306, %v1244
    %v1323 = vadd.f32 %v1307, %v1249
    %v1324 = vadd.f32 %v1308, %v1254
    %v1325 = vadd.f32 %v1309, %v1259
    %v1326 = vadd.f32 %v1310, %v1264
    %v1327 = vadd.f32 %v1311, %v1269
    %v1328 = vadd.f32 %v1312, %v1274
    %v1329 = vadd.f32 %v1313, %v1279
    %v1330 = vadd.f32 %v1314, %v1284
    %v1331 = vadd.f32 %v1315, %v1289
    %v1332 = vadd.f32 %v1316, %v1294
    %v1333 = vadd.f32 %v1317, %v1299
    %1334 = vst [vmem:[#allocation4] sm:$0xff] %v1318
    %1335 = vst [vmem:[#allocation4 + $0x8] sm:$0xff] %v1319
    %1336 = vst [vmem:[#allocation4 + $0x10] sm:$0xff] %v1320
    %1337 = vst [vmem:[#allocation4 + $0x18] sm:$0xff] %v1321
    %1338 = vst [vmem:[#allocation4 + $0x20] sm:$0xff] %v1322
    %1339 = vst [vmem:[#allocation4 + $0x28] sm:$0xff] %v1323
    %1340 = vst [vmem:[#allocation4 + $0x30] sm:$0xff] %v1324
    %1341 = vst [vmem:[#allocation4 + $0x38] sm:$0xff] %v1325
    %1342 = vst [vmem:[#allocation4 + $0x40] sm:$0xff] %v1326
    %1343 = vst [vmem:[#allocation4 + $0x48] sm:$0xff] %v1327
    %1344 = vst [vmem:[#allocation4 + $0x50] sm:$0xff] %v1328
    %1345 = vst [vmem:[#allocation4 + $0x58] sm:$0xff] %v1329
    %1346 = vst [vmem:[#allocation4 + $0x60] sm:$0xff] %v1330
    %1347 = vst [vmem:[#allocation4 + $0x68] sm:$0xff] %v1331
    %1348 = vst [vmem:[#allocation4 + $0x70] sm:$0xff] %v1332
    %1349 = vst [vmem:[#allocation4 + $0x78] sm:$0xff] %v1333
    %v1350 = vld [vmem:[%s317 + $0x1] sm:$0xff]
    %v1351 = vld [vmem:[%s317 + $0x11] sm:$0xff]
    %v1352 = vld [vmem:[%s317 + $0x21] sm:$0xff]
    %v1353 = vld [vmem:[%s317 + $0x31] sm:$0xff]
    %v1354 = vld [vmem:[%s317 + $0x41] sm:$0xff]
    %v1355 = vld [vmem:[%s317 + $0x51] sm:$0xff]
    %v1356 = vld [vmem:[%s317 + $0x61] sm:$0xff]
    %v1357 = vld [vmem:[%s317 + $0x71] sm:$0xff]
    %v1358 = vld [vmem:[%s317 + $0xa1] sm:$0xff]
    %v1359 = vld [vmem:[%s317 + $0xb1] sm:$0xff]
    %v1360 = vld [vmem:[%s317 + $0xc1] sm:$0xff]
    %v1361 = vld [vmem:[%s317 + $0xd1] sm:$0xff]
    %v1362 = vld [vmem:[%s317 + $0xe1] sm:$0xff]
    %v1363 = vld [vmem:[%s317 + $0xf1] sm:$0xff]
    %v1364 = vld [vmem:[%s317 + $0x101] sm:$0xff]
    %v1365 = vld [vmem:[%s317 + $0x111] sm:$0xff]
    %s1366 = scalar_lea.vmem %s1, 16
    %v1367 = vld [vmem:[%s1366] sm:$0xf]
    %v1369 = vsel %vm41, %v1350, 0
    %v1372 = vsel %vm41, %v1351, 0
    %v1375 = vsel %vm41, %v1352, 0
    %v1378 = vsel %vm41, %v1353, 0
    %v1381 = vsel %vm41, %v1354, 0
    %v1384 = vsel %vm41, %v1355, 0
    %v1387 = vsel %vm41, %v1356, 0
    %v1390 = vsel %vm41, %v1357, 0
    %v1393 = vsel %vm41, %v1358, 0
    %v1396 = vsel %vm41, %v1359, 0
    %v1399 = vsel %vm41, %v1360, 0
    %v1402 = vsel %vm41, %v1361, 0
    %v1405 = vsel %vm41, %v1362, 0
    %v1408 = vsel %vm41, %v1363, 0
    %v1411 = vsel %vm41, %v1364, 0
    %v1414 = vsel %vm41, %v1365, 0
    %v1417 = vsel %vm399, %v1367, 0
    %1419 = vmatprep.subr.mxu0 0.0
    %1420 = vmatpush1.msra.mxu0 %v1417
    %1421 = vmatprep.subr.mxu0 0.0
    %1422 = vmatpush1.msra.mxu0 0.0
    %1423 = vmatprep.subr.mxu0 0.0
    %1424 = vmatpush1.msra.mxu0 0.0
    %1425 = vmatprep.subr.mxu0 0.0
    %1426 = vmatpush1.msra.mxu0 0.0
    %1427 = vmatprep.subr.mxu0 0.0
    %1428 = vmatpush1.msra.mxu0 0.0
    %1429 = vmatprep.subr.mxu0 0.0
    %1430 = vmatpush1.msra.mxu0 0.0
    %1431 = vmatprep.subr.mxu0 0.0
    %1432 = vmatpush1.msra.mxu0 0.0
    %1433 = vmatprep.subr.mxu0 0.0
    %1434 = vmatpush1.msra.mxu0 0.0
    %1435 = vmatprep.subr.mxu0 0.0
    %1436 = vmatpush1.msra.mxu0 0.0
    %1437 = vmatprep.subr.mxu0 0.0
    %1438 = vmatpush1.msra.mxu0 0.0
    %1439 = vmatprep.subr.mxu0 0.0
    %1440 = vmatpush1.msra.mxu0 0.0
    %1441 = vmatprep.subr.mxu0 0.0
    %1442 = vmatpush1.msra.mxu0 0.0
    %1443 = vmatprep.subr.mxu0 0.0
    %1444 = vmatpush1.msra.mxu0 0.0
    %1445 = vmatprep.subr.mxu0 0.0
    %1446 = vmatpush1.msra.mxu0 0.0
    %1447 = vmatprep.subr.mxu0 0.0
    %1448 = vmatpush1.msra.mxu0 0.0
    %1449 = vmatprep.subr.mxu0 0.0
    %1450 = vmatpush1.msra.mxu0 0.0
    %1451 = vmatprep.subr.mxu0 0.0
    %1452 = vmatpush1.msra.mxu0 0.0
    %1453 = vmatprep.subr.mxu0 0.0
    %1454 = vmatpush1.msra.mxu0 0.0
    %1455 = vmatprep.subr.mxu0 0.0
    %1456 = vmatpush1.msra.mxu0 0.0
    %1457 = vmatprep.subr.mxu0 0.0
    %1458 = vmatpush1.msra.mxu0 0.0
    %1459 = vmatprep.subr.mxu0 0.0
    %1460 = vmatpush1.msra.mxu0 0.0
    %1461 = vmatprep.subr.mxu0 0.0
    %1462 = vmatpush1.msra.mxu0 0.0
    %1463 = vmatprep.subr.mxu0 0.0
    %1464 = vmatpush1.msra.mxu0 0.0
    %1465 = vmatprep.subr.mxu0 0.0
    %1466 = vmatpush1.msra.mxu0 0.0
    %1467 = vmatprep.subr.mxu0 0.0
    %1468 = vmatpush1.msra.mxu0 0.0
    %1469 = vmatprep.subr.mxu0 0.0
    %1470 = vmatpush1.msra.mxu0 0.0
    %1471 = vmatprep.subr.mxu0 0.0
    %1472 = vmatpush1.msra.mxu0 0.0
    %1473 = vmatprep.subr.mxu0 0.0
    %1474 = vmatpush1.msra.mxu0 0.0
    %1475 = vmatprep.subr.mxu0 0.0
    %1476 = vmatpush1.msra.mxu0 0.0
    %1477 = vmatprep.subr.mxu0 0.0
    %1478 = vmatpush1.msra.mxu0 0.0
    %1479 = vmatprep.subr.mxu0 0.0
    %1480 = vmatpush1.msra.mxu0 0.0
    %1481 = vmatprep.subr.mxu0 0.0
    %1482 = vmatpush1.msra.mxu0 0.0
    %1483 = vmatprep.mubr.f32.mxu0 0.0
    %1484 = vmatmul.mubr.f32.gmra.mrb[0].mxu0 %v1369
    %v1485 = vpop.f32.mrb[0].mxu0
    %v1486 = vadd.f32 0.0, %v1485
    %v1487 = vpop.f32.mrb[0].mxu0
    %1488 = vmatprep.mubr.f32.mxu0 0.0
    %1489 = vmatmul.mubr.f32.gmra.mrb[0].mxu0 %v1372
    %v1490 = vpop.f32.mrb[0].mxu0
    %v1491 = vadd.f32 0.0, %v1490
    %v1492 = vpop.f32.mrb[0].mxu0
    %1493 = vmatprep.mubr.f32.mxu0 0.0
    %1494 = vmatmul.mubr.f32.gmra.mrb[0].mxu0 %v1375
    %v1495 = vpop.f32.mrb[0].mxu0
    %v1496 = vadd.f32 0.0, %v1495
    %v1497 = vpop.f32.mrb[0].mxu0
    %1498 = vmatprep.mubr.f32.mxu0 0.0
    %1499 = vmatmul.mubr.f32.gmra.mrb[0].mxu0 %v1378
    %v1500 = vpop.f32.mrb[0].mxu0
    %v1501 = vadd.f32 0.0, %v1500
    %v1502 = vpop.f32.mrb[0].mxu0
    %1503 = vmatprep.mubr.f32.mxu0 0.0
    %1504 = vmatmul.mubr.f32.gmra.mrb[0].mxu0 %v1381
    %v1505 = vpop.f32.mrb[0].mxu0
    %v1506 = vadd.f32 0.0, %v1505
    %v1507 = vpop.f32.mrb[0].mxu0
    %1508 = vmatprep.mubr.f32.mxu0 0.0
    %1509 = vmatmul.mubr.f32.gmra.mrb[0].mxu0 %v1384
    %v1510 = vpop.f32.mrb[0].mxu0
    %v1511 = vadd.f32 0.0, %v1510
    %v1512 = vpop.f32.mrb[0].mxu0
    %1513 = vmatprep.mubr.f32.mxu0 0.0
    %1514 = vmatmul.mubr.f32.gmra.mrb[0].mxu0 %v1387
    %v1515 = vpop.f32.mrb[0].mxu0
    %v1516 = vadd.f32 0.0, %v1515
    %v1517 = vpop.f32.mrb[0].mxu0
    %1518 = vmatprep.mubr.f32.mxu0 0.0
    %1519 = vmatmul.mubr.f32.gmra.mrb[0].mxu0 %v1390
    %v1520 = vpop.f32.mrb[0].mxu0
    %v1521 = vadd.f32 0.0, %v1520
    %v1522 = vpop.f32.mrb[0].mxu0
    %1523 = vmatprep.mubr.f32.mxu0 0.0
    %1524 = vmatmul.mubr.f32.gmra.mrb[0].mxu0 %v1393
    %v1525 = vpop.f32.mrb[0].mxu0
    %v1526 = vadd.f32 0.0, %v1525
    %v1527 = vpop.f32.mrb[0].mxu0
    %1528 = vmatprep.mubr.f32.mxu0 0.0
    %1529 = vmatmul.mubr.f32.gmra.mrb[0].mxu0 %v1396
    %v1530 = vpop.f32.mrb[0].mxu0
    %v1531 = vadd.f32 0.0, %v1530
    %v1532 = vpop.f32.mrb[0].mxu0
    %1533 = vmatprep.mubr.f32.mxu0 0.0
    %1534 = vmatmul.mubr.f32.gmra.mrb[0].mxu0 %v1399
    %v1535 = vpop.f32.mrb[0].mxu0
    %v1536 = vadd.f32 0.0, %v1535
    %v1537 = vpop.f32.mrb[0].mxu0
    %1538 = vmatprep.mubr.f32.mxu0 0.0
    %1539 = vmatmul.mubr.f32.gmra.mrb[0].mxu0 %v1402
    %v1540 = vpop.f32.mrb[0].mxu0
    %v1541 = vadd.f32 0.0, %v1540
    %v1542 = vpop.f32.mrb[0].mxu0
    %1543 = vmatprep.mubr.f32.mxu0 0.0
    %1544 = vmatmul.mubr.f32.gmra.mrb[0].mxu0 %v1405
    %v1545 = vpop.f32.mrb[0].mxu0
    %v1546 = vadd.f32 0.0, %v1545
    %v1547 = vpop.f32.mrb[0].mxu0
    %1548 = vmatprep.mubr.f32.mxu0 0.0
    %1549 = vmatmul.mubr.f32.gmra.mrb[0].mxu0 %v1408
    %v1550 = vpop.f32.mrb[0].mxu0
    %v1551 = vadd.f32 0.0, %v1550
    %v1552 = vpop.f32.mrb[0].mxu0
    %1553 = vmatprep.mubr.f32.mxu0 0.0
    %1554 = vmatmul.mubr.f32.gmra.mrb[0].mxu0 %v1411
    %v1555 = vpop.f32.mrb[0].mxu0
    %v1556 = vadd.f32 0.0, %v1555
    %v1557 = vpop.f32.mrb[0].mxu0
    %1558 = vmatprep.mubr.f32.mxu0 0.0
    %1559 = vmatmul.mubr.f32.gmra.mrb[0].mxu0 %v1414
    %v1560 = vpop.f32.mrb[0].mxu0
    %v1561 = vadd.f32 0.0, %v1560
    %v1562 = vpop.f32.mrb[0].mxu0
    %1563 = vdwg.mxu0
    %v1564 = vld [vmem:[#allocation4] sm:$0xff]
    %v1565 = vld [vmem:[#allocation4 + $0x8] sm:$0xff]
    %v1566 = vld [vmem:[#allocation4 + $0x10] sm:$0xff]
    %v1567 = vld [vmem:[#allocation4 + $0x18] sm:$0xff]
    %v1568 = vld [vmem:[#allocation4 + $0x20] sm:$0xff]
    %v1569 = vld [vmem:[#allocation4 + $0x28] sm:$0xff]
    %v1570 = vld [vmem:[#allocation4 + $0x30] sm:$0xff]
    %v1571 = vld [vmem:[#allocation4 + $0x38] sm:$0xff]
    %v1572 = vld [vmem:[#allocation4 + $0x40] sm:$0xff]
    %v1573 = vld [vmem:[#allocation4 + $0x48] sm:$0xff]
    %v1574 = vld [vmem:[#allocation4 + $0x50] sm:$0xff]
    %v1575 = vld [vmem:[#allocation4 + $0x58] sm:$0xff]
    %v1576 = vld [vmem:[#allocation4 + $0x60] sm:$0xff]
    %v1577 = vld [vmem:[#allocation4 + $0x68] sm:$0xff]
    %v1578 = vld [vmem:[#allocation4 + $0x70] sm:$0xff]
    %v1579 = vld [vmem:[#allocation4 + $0x78] sm:$0xff]
    %v1580 = vadd.f32 %v1564, %v1486
    %v1581 = vadd.f32 %v1565, %v1491
    %v1582 = vadd.f32 %v1566, %v1496
    %v1583 = vadd.f32 %v1567, %v1501
    %v1584 = vadd.f32 %v1568, %v1506
    %v1585 = vadd.f32 %v1569, %v1511
    %v1586 = vadd.f32 %v1570, %v1516
    %v1587 = vadd.f32 %v1571, %v1521
    %v1588 = vadd.f32 %v1572, %v1526
    %v1589 = vadd.f32 %v1573, %v1531
    %v1590 = vadd.f32 %v1574, %v1536
    %v1591 = vadd.f32 %v1575, %v1541
    %v1592 = vadd.f32 %v1576, %v1546
    %v1593 = vadd.f32 %v1577, %v1551
    %v1594 = vadd.f32 %v1578, %v1556
    %v1595 = vadd.f32 %v1579, %v1561
    %1596 = vst [vmem:[#allocation4] sm:$0xff] %v1580
    %1597 = vst [vmem:[#allocation4 + $0x8] sm:$0xff] %v1581
    %1598 = vst [vmem:[#allocation4 + $0x10] sm:$0xff] %v1582
    %1599 = vst [vmem:[#allocation4 + $0x18] sm:$0xff] %v1583
    %1600 = vst [vmem:[#allocation4 + $0x20] sm:$0xff] %v1584
    %1601 = vst [vmem:[#allocation4 + $0x28] sm:$0xff] %v1585
    %1602 = vst [vmem:[#allocation4 + $0x30] sm:$0xff] %v1586
    %1603 = vst [vmem:[#allocation4 + $0x38] sm:$0xff] %v1587
    %1604 = vst [vmem:[#allocation4 + $0x40] sm:$0xff] %v1588
    %1605 = vst [vmem:[#allocation4 + $0x48] sm:$0xff] %v1589
    %1606 = vst [vmem:[#allocation4 + $0x50] sm:$0xff] %v1590
    %1607 = vst [vmem:[#allocation4 + $0x58] sm:$0xff] %v1591
    %1608 = vst [vmem:[#allocation4 + $0x60] sm:$0xff] %v1592
    %1609 = vst [vmem:[#allocation4 + $0x68] sm:$0xff] %v1593
    %1610 = vst [vmem:[#allocation4 + $0x70] sm:$0xff] %v1594
    %1611 = vst [vmem:[#allocation4 + $0x78] sm:$0xff] %v1595
    %v1612 = vld [vmem:[%s317 + $0x2] sm:$0xff]
    %v1613 = vld [vmem:[%s317 + $0x12] sm:$0xff]
    %v1614 = vld [vmem:[%s317 + $0x22] sm:$0xff]
    %v1615 = vld [vmem:[%s317 + $0x32] sm:$0xff]
    %v1616 = vld [vmem:[%s317 + $0x42] sm:$0xff]
    %v1617 = vld [vmem:[%s317 + $0x52] sm:$0xff]
    %v1618 = vld [vmem:[%s317 + $0x62] sm:$0xff]
    %v1619 = vld [vmem:[%s317 + $0x72] sm:$0xff]
    %v1620 = vld [vmem:[%s317 + $0xa2] sm:$0xff]
    %v1621 = vld [vmem:[%s317 + $0xb2] sm:$0xff]
    %v1622 = vld [vmem:[%s317 + $0xc2] sm:$0xff]
    %v1623 = vld [vmem:[%s317 + $0xd2] sm:$0xff]
    %v1624 = vld [vmem:[%s317 + $0xe2] sm:$0xff]
    %v1625 = vld [vmem:[%s317 + $0xf2] sm:$0xff]
    %v1626 = vld [vmem:[%s317 + $0x102] sm:$0xff]
    %v1627 = vld [vmem:[%s317 + $0x112] sm:$0xff]
    %s1628 = scalar_lea.vmem %s1, 20
    %v1629 = vld [vmem:[%s1628] sm:$0xf]
    %v1631 = vsel %vm41, %v1612, 0
    %v1634 = vsel %vm41, %v1613, 0
    %v1637 = vsel %vm41, %v1614, 0
    %v1640 = vsel %vm41, %v1615, 0
    %v1643 = vsel %vm41, %v1616, 0
    %v1646 = vsel %vm41, %v1617, 0
    %v1649 = vsel %vm41, %v1618, 0
    %v1652 = vsel %vm41, %v1619, 0
    %v1655 = vsel %vm41, %v1620, 0
    %v1658 = vsel %vm41, %v1621, 0
    %v1661 = vsel %vm41, %v1622, 0
    %v1664 = vsel %vm41, %v1623, 0
    %v1667 = vsel %vm41, %v1624, 0
    %v1670 = vsel %vm41, %v1625, 0
    %v1673 = vsel %vm41, %v1626, 0
    %v1676 = vsel %vm41, %v1627, 0
    %v1679 = vsel %vm399, %v1629, 0
    %1681 = vmatprep.subr.mxu0 0.0
    %1682 = vmatpush1.msra.mxu0 %v1679
    %1683 = vmatprep.subr.mxu0 0.0
    %1684 = vmatpush1.msra.mxu0 0.0
    %1685 = vmatprep.subr.mxu0 0.0
    %1686 = vmatpush1.msra.mxu0 0.0
    %1687 = vmatprep.subr.mxu0 0.0
    %1688 = vmatpush1.msra.mxu0 0.0
    %1689 = vmatprep.subr.mxu0 0.0
    %1690 = vmatpush1.msra.mxu0 0.0
    %1691 = vmatprep.subr.mxu0 0.0
    %1692 = vmatpush1.msra.mxu0 0.0
    %1693 = vmatprep.subr.mxu0 0.0
    %1694 = vmatpush1.msra.mxu0 0.0
    %1695 = vmatprep.subr.mxu0 0.0
    %1696 = vmatpush1.msra.mxu0 0.0
    %1697 = vmatprep.subr.mxu0 0.0
    %1698 = vmatpush1.msra.mxu0 0.0
    %1699 = vmatprep.subr.mxu0 0.0
    %1700 = vmatpush1.msra.mxu0 0.0
    %1701 = vmatprep.subr.mxu0 0.0
    %1702 = vmatpush1.msra.mxu0 0.0
    %1703 = vmatprep.subr.mxu0 0.0
    %1704 = vmatpush1.msra.mxu0 0.0
    %1705 = vmatprep.subr.mxu0 0.0
    %1706 = vmatpush1.msra.mxu0 0.0
    %1707 = vmatprep.subr.mxu0 0.0
    %1708 = vmatpush1.msra.mxu0 0.0
    %1709 = vmatprep.subr.mxu0 0.0
    %1710 = vmatpush1.msra.mxu0 0.0
    %1711 = vmatprep.subr.mxu0 0.0
    %1712 = vmatpush1.msra.mxu0 0.0
    %1713 = vmatprep.subr.mxu0 0.0
    %1714 = vmatpush1.msra.mxu0 0.0
    %1715 = vmatprep.subr.mxu0 0.0
    %1716 = vmatpush1.msra.mxu0 0.0
    %1717 = vmatprep.subr.mxu0 0.0
    %1718 = vmatpush1.msra.mxu0 0.0
    %1719 = vmatprep.subr.mxu0 0.0
    %1720 = vmatpush1.msra.mxu0 0.0
    %1721 = vmatprep.subr.mxu0 0.0
    %1722 = vmatpush1.msra.mxu0 0.0
    %1723 = vmatprep.subr.mxu0 0.0
    %1724 = vmatpush1.msra.mxu0 0.0
    %1725 = vmatprep.subr.mxu0 0.0
    %1726 = vmatpush1.msra.mxu0 0.0
    %1727 = vmatprep.subr.mxu0 0.0
    %1728 = vmatpush1.msra.mxu0 0.0
    %1729 = vmatprep.subr.mxu0 0.0
    %1730 = vmatpush1.msra.mxu0 0.0
    %1731 = vmatprep.subr.mxu0 0.0
    %1732 = vmatpush1.msra.mxu0 0.0
    %1733 = vmatprep.subr.mxu0 0.0
    %1734 = vmatpush1.msra.mxu0 0.0
    %1735 = vmatprep.subr.mxu0 0.0
    %1736 = vmatpush1.msra.mxu0 0.0
    %1737 = vmatprep.subr.mxu0 0.0
    %1738 = vmatpush1.msra.mxu0 0.0
    %1739 = vmatprep.subr.mxu0 0.0
    %1740 = vmatpush1.msra.mxu0 0.0
    %1741 = vmatprep.subr.mxu0 0.0
    %1742 = vmatpush1.msra.mxu0 0.0
    %1743 = vmatprep.subr.mxu0 0.0
    %1744 = vmatpush1.msra.mxu0 0.0
    %1745 = vmatprep.mubr.f32.mxu0 0.0
    %1746 = vmatmul.mubr.f32.gmra.mrb[0].mxu0 %v1631
    %v1747 = vpop.f32.mrb[0].mxu0
    %v1748 = vadd.f32 0.0, %v1747
    %v1749 = vpop.f32.mrb[0].mxu0
    %1750 = vmatprep.mubr.f32.mxu0 0.0
    %1751 = vmatmul.mubr.f32.gmra.mrb[0].mxu0 %v1634
    %v1752 = vpop.f32.mrb[0].mxu0
    %v1753 = vadd.f32 0.0, %v1752
    %v1754 = vpop.f32.mrb[0].mxu0
    %1755 = vmatprep.mubr.f32.mxu0 0.0
    %1756 = vmatmul.mubr.f32.gmra.mrb[0].mxu0 %v1637
    %v1757 = vpop.f32.mrb[0].mxu0
    %v1758 = vadd.f32 0.0, %v1757
    %v1759 = vpop.f32.mrb[0].mxu0
    %1760 = vmatprep.mubr.f32.mxu0 0.0
    %1761 = vmatmul.mubr.f32.gmra.mrb[0].mxu0 %v1640
    %v1762 = vpop.f32.mrb[0].mxu0
    %v1763 = vadd.f32 0.0, %v1762
    %v1764 = vpop.f32.mrb[0].mxu0
    %1765 = vmatprep.mubr.f32.mxu0 0.0
    %1766 = vmatmul.mubr.f32.gmra.mrb[0].mxu0 %v1643
    %v1767 = vpop.f32.mrb[0].mxu0
    %v1768 = vadd.f32 0.0, %v1767
    %v1769 = vpop.f32.mrb[0].mxu0
    %1770 = vmatprep.mubr.f32.mxu0 0.0
    %1771 = vmatmul.mubr.f32.gmra.mrb[0].mxu0 %v1646
    %v1772 = vpop.f32.mrb[0].mxu0
    %v1773 = vadd.f32 0.0, %v1772
    %v1774 = vpop.f32.mrb[0].mxu0
    %1775 = vmatprep.mubr.f32.mxu0 0.0
    %1776 = vmatmul.mubr.f32.gmra.mrb[0].mxu0 %v1649
    %v1777 = vpop.f32.mrb[0].mxu0
    %v1778 = vadd.f32 0.0, %v1777
    %v1779 = vpop.f32.mrb[0].mxu0
    %1780 = vmatprep.mubr.f32.mxu0 0.0
    %1781 = vmatmul.mubr.f32.gmra.mrb[0].mxu0 %v1652
    %v1782 = vpop.f32.mrb[0].mxu0
    %v1783 = vadd.f32 0.0, %v1782
    %v1784 = vpop.f32.mrb[0].mxu0
    %1785 = vmatprep.mubr.f32.mxu0 0.0
    %1786 = vmatmul.mubr.f32.gmra.mrb[0].mxu0 %v1655
    %v1787 = vpop.f32.mrb[0].mxu0
    %v1788 = vadd.f32 0.0, %v1787
    %v1789 = vpop.f32.mrb[0].mxu0
    %1790 = vmatprep.mubr.f32.mxu0 0.0
    %1791 = vmatmul.mubr.f32.gmra.mrb[0].mxu0 %v1658
    %v1792 = vpop.f32.mrb[0].mxu0
    %v1793 = vadd.f32 0.0, %v1792
    %v1794 = vpop.f32.mrb[0].mxu0
    %1795 = vmatprep.mubr.f32.mxu0 0.0
    %1796 = vmatmul.mubr.f32.gmra.mrb[0].mxu0 %v1661
    %v1797 = vpop.f32.mrb[0].mxu0
    %v1798 = vadd.f32 0.0, %v1797
    %v1799 = vpop.f32.mrb[0].mxu0
    %1800 = vmatprep.mubr.f32.mxu0 0.0
    %1801 = vmatmul.mubr.f32.gmra.mrb[0].mxu0 %v1664
    %v1802 = vpop.f32.mrb[0].mxu0
    %v1803 = vadd.f32 0.0, %v1802
    %v1804 = vpop.f32.mrb[0].mxu0
    %1805 = vmatprep.mubr.f32.mxu0 0.0
    %1806 = vmatmul.mubr.f32.gmra.mrb[0].mxu0 %v1667
    %v1807 = vpop.f32.mrb[0].mxu0
    %v1808 = vadd.f32 0.0, %v1807
    %v1809 = vpop.f32.mrb[0].mxu0
    %1810 = vmatprep.mubr.f32.mxu0 0.0
    %1811 = vmatmul.mubr.f32.gmra.mrb[0].mxu0 %v1670
    %v1812 = vpop.f32.mrb[0].mxu0
    %v1813 = vadd.f32 0.0, %v1812
    %v1814 = vpop.f32.mrb[0].mxu0
    %1815 = vmatprep.mubr.f32.mxu0 0.0
    %1816 = vmatmul.mubr.f32.gmra.mrb[0].mxu0 %v1673
    %v1817 = vpop.f32.mrb[0].mxu0
    %v1818 = vadd.f32 0.0, %v1817
    %v1819 = vpop.f32.mrb[0].mxu0
    %1820 = vmatprep.mubr.f32.mxu0 0.0
    %1821 = vmatmul.mubr.f32.gmra.mrb[0].mxu0 %v1676
    %v1822 = vpop.f32.mrb[0].mxu0
    %v1823 = vadd.f32 0.0, %v1822
    %v1824 = vpop.f32.mrb[0].mxu0
    %1825 = vdwg.mxu0
    %v1826 = vld [vmem:[#allocation4] sm:$0xff]
    %v1827 = vld [vmem:[#allocation4 + $0x8] sm:$0xff]
    %v1828 = vld [vmem:[#allocation4 + $0x10] sm:$0xff]
    %v1829 = vld [vmem:[#allocation4 + $0x18] sm:$0xff]
    %v1830 = vld [vmem:[#allocation4 + $0x20] sm:$0xff]
    %v1831 = vld [vmem:[#allocation4 + $0x28] sm:$0xff]
    %v1832 = vld [vmem:[#allocation4 + $0x30] sm:$0xff]
    %v1833 = vld [vmem:[#allocation4 + $0x38] sm:$0xff]
    %v1834 = vld [vmem:[#allocation4 + $0x40] sm:$0xff]
    %v1835 = vld [vmem:[#allocation4 + $0x48] sm:$0xff]
    %v1836 = vld [vmem:[#allocation4 + $0x50] sm:$0xff]
    %v1837 = vld [vmem:[#allocation4 + $0x58] sm:$0xff]
    %v1838 = vld [vmem:[#allocation4 + $0x60] sm:$0xff]
    %v1839 = vld [vmem:[#allocation4 + $0x68] sm:$0xff]
    %v1840 = vld [vmem:[#allocation4 + $0x70] sm:$0xff]
    %v1841 = vld [vmem:[#allocation4 + $0x78] sm:$0xff]
    %v1842 = vadd.f32 %v1826, %v1748
    %v1843 = vadd.f32 %v1827, %v1753
    %v1844 = vadd.f32 %v1828, %v1758
    %v1845 = vadd.f32 %v1829, %v1763
    %v1846 = vadd.f32 %v1830, %v1768
    %v1847 = vadd.f32 %v1831, %v1773
    %v1848 = vadd.f32 %v1832, %v1778
    %v1849 = vadd.f32 %v1833, %v1783
    %v1850 = vadd.f32 %v1834, %v1788
    %v1851 = vadd.f32 %v1835, %v1793
    %v1852 = vadd.f32 %v1836, %v1798
    %v1853 = vadd.f32 %v1837, %v1803
    %v1854 = vadd.f32 %v1838, %v1808
    %v1855 = vadd.f32 %v1839, %v1813
    %v1856 = vadd.f32 %v1840, %v1818
    %v1857 = vadd.f32 %v1841, %v1823
    %1858 = vst [vmem:[#allocation4] sm:$0xff] %v1842
    %1859 = vst [vmem:[#allocation4 + $0x8] sm:$0xff] %v1843
    %1860 = vst [vmem:[#allocation4 + $0x10] sm:$0xff] %v1844
    %1861 = vst [vmem:[#allocation4 + $0x18] sm:$0xff] %v1845
    %1862 = vst [vmem:[#allocation4 + $0x20] sm:$0xff] %v1846
    %1863 = vst [vmem:[#allocation4 + $0x28] sm:$0xff] %v1847
    %1864 = vst [vmem:[#allocation4 + $0x30] sm:$0xff] %v1848
    %1865 = vst [vmem:[#allocation4 + $0x38] sm:$0xff] %v1849
    %1866 = vst [vmem:[#allocation4 + $0x40] sm:$0xff] %v1850
    %1867 = vst [vmem:[#allocation4 + $0x48] sm:$0xff] %v1851
    %1868 = vst [vmem:[#allocation4 + $0x50] sm:$0xff] %v1852
    %1869 = vst [vmem:[#allocation4 + $0x58] sm:$0xff] %v1853
    %1870 = vst [vmem:[#allocation4 + $0x60] sm:$0xff] %v1854
    %1871 = vst [vmem:[#allocation4 + $0x68] sm:$0xff] %v1855
    %1872 = vst [vmem:[#allocation4 + $0x70] sm:$0xff] %v1856
    %1873 = vst [vmem:[#allocation4 + $0x78] sm:$0xff] %v1857
    %s1874 = scalar_lea.vmem [#allocation2], 32
    %v1875 = vld [vmem:[%s1874] sm:$0xff]
    %v1876 = vld [vmem:[%s1874 + $0x10] sm:$0xff]
    %v1877 = vld [vmem:[%s1874 + $0x20] sm:$0xff]
    %v1878 = vld [vmem:[%s1874 + $0x30] sm:$0xff]
    %v1879 = vld [vmem:[%s1874 + $0x40] sm:$0xff]
    %v1880 = vld [vmem:[%s1874 + $0x50] sm:$0xff]
    %v1881 = vld [vmem:[%s1874 + $0x60] sm:$0xff]
    %v1882 = vld [vmem:[%s1874 + $0x70] sm:$0xff]
    %v1883 = vld [vmem:[%s1874 + $0xa0] sm:$0xff]
    %v1884 = vld [vmem:[%s1874 + $0xb0] sm:$0xff]
    %v1885 = vld [vmem:[%s1874 + $0xc0] sm:$0xff]
    %v1886 = vld [vmem:[%s1874 + $0xd0] sm:$0xff]
    %v1887 = vld [vmem:[%s1874 + $0xe0] sm:$0xff]
    %v1888 = vld [vmem:[%s1874 + $0xf0] sm:$0xff]
    %v1889 = vld [vmem:[%s1874 + $0x100] sm:$0xff]
    %v1890 = vld [vmem:[%s1874 + $0x110] sm:$0xff]
    %s1891 = scalar_lea.vmem %s1, 24
    %v1892 = vld [vmem:[%s1891] sm:$0xf]
    %v1894 = vsel %vm41, %v1875, 0
    %v1897 = vsel %vm41, %v1876, 0
    %v1900 = vsel %vm41, %v1877, 0
    %v1903 = vsel %vm41, %v1878, 0
    %v1906 = vsel %vm41, %v1879, 0
    %v1909 = vsel %vm41, %v1880, 0
    %v1912 = vsel %vm41, %v1881, 0
    %v1915 = vsel %vm41, %v1882, 0
    %v1918 = vsel %vm41, %v1883, 0
    %v1921 = vsel %vm41, %v1884, 0
    %v1924 = vsel %vm41, %v1885, 0
    %v1927 = vsel %vm41, %v1886, 0
    %v1930 = vsel %vm41, %v1887, 0
    %v1933 = vsel %vm41, %v1888, 0
    %v1936 = vsel %vm41, %v1889, 0
    %v1939 = vsel %vm41, %v1890, 0
    %v1942 = vsel %vm399, %v1892, 0
    %1944 = vmatprep.subr.mxu0 0.0
    %1945 = vmatpush1.msra.mxu0 %v1942
    %1946 = vmatprep.subr.mxu0 0.0
    %1947 = vmatpush1.msra.mxu0 0.0
    %1948 = vmatprep.subr.mxu0 0.0
    %1949 = vmatpush1.msra.mxu0 0.0
    %1950 = vmatprep.subr.mxu0 0.0
    %1951 = vmatpush1.msra.mxu0 0.0
    %1952 = vmatprep.subr.mxu0 0.0
    %1953 = vmatpush1.msra.mxu0 0.0
    %1954 = vmatprep.subr.mxu0 0.0
    %1955 = vmatpush1.msra.mxu0 0.0
    %1956 = vmatprep.subr.mxu0 0.0
    %1957 = vmatpush1.msra.mxu0 0.0
    %1958 = vmatprep.subr.mxu0 0.0
    %1959 = vmatpush1.msra.mxu0 0.0
    %1960 = vmatprep.subr.mxu0 0.0
    %1961 = vmatpush1.msra.mxu0 0.0
    %1962 = vmatprep.subr.mxu0 0.0
    %1963 = vmatpush1.msra.mxu0 0.0
    %1964 = vmatprep.subr.mxu0 0.0
    %1965 = vmatpush1.msra.mxu0 0.0
    %1966 = vmatprep.subr.mxu0 0.0
    %1967 = vmatpush1.msra.mxu0 0.0
    %1968 = vmatprep.subr.mxu0 0.0
    %1969 = vmatpush1.msra.mxu0 0.0
    %1970 = vmatprep.subr.mxu0 0.0
    %1971 = vmatpush1.msra.mxu0 0.0
    %1972 = vmatprep.subr.mxu0 0.0
    %1973 = vmatpush1.msra.mxu0 0.0
    %1974 = vmatprep.subr.mxu0 0.0
    %1975 = vmatpush1.msra.mxu0 0.0
    %1976 = vmatprep.subr.mxu0 0.0
    %1977 = vmatpush1.msra.mxu0 0.0
    %1978 = vmatprep.subr.mxu0 0.0
    %1979 = vmatpush1.msra.mxu0 0.0
    %1980 = vmatprep.subr.mxu0 0.0
    %1981 = vmatpush1.msra.mxu0 0.0
    %1982 = vmatprep.subr.mxu0 0.0
    %1983 = vmatpush1.msra.mxu0 0.0
    %1984 = vmatprep.subr.mxu0 0.0
    %1985 = vmatpush1.msra.mxu0 0.0
    %1986 = vmatprep.subr.mxu0 0.0
    %1987 = vmatpush1.msra.mxu0 0.0
    %1988 = vmatprep.subr.mxu0 0.0
    %1989 = vmatpush1.msra.mxu0 0.0
    %1990 = vmatprep.subr.mxu0 0.0
    %1991 = vmatpush1.msra.mxu0 0.0
    %1992 = vmatprep.subr.mxu0 0.0
    %1993 = vmatpush1.msra.mxu0 0.0
    %1994 = vmatprep.subr.mxu0 0.0
    %1995 = vmatpush1.msra.mxu0 0.0
    %1996 = vmatprep.subr.mxu0 0.0
    %1997 = vmatpush1.msra.mxu0 0.0
    %1998 = vmatprep.subr.mxu0 0.0
    %1999 = vmatpush1.msra.mxu0 0.0
    %2000 = vmatprep.subr.mxu0 0.0
    %2001 = vmatpush1.msra.mxu0 0.0
    %2002 = vmatprep.subr.mxu0 0.0
    %2003 = vmatpush1.msra.mxu0 0.0
    %2004 = vmatprep.subr.mxu0 0.0
    %2005 = vmatpush1.msra.mxu0 0.0
    %2006 = vmatprep.subr.mxu0 0.0
    %2007 = vmatpush1.msra.mxu0 0.0
    %2008 = vmatprep.mubr.f32.mxu0 0.0
    %2009 = vmatmul.mubr.f32.gmra.mrb[0].mxu0 %v1894
    %v2010 = vpop.f32.mrb[0].mxu0
    %v2011 = vadd.f32 0.0, %v2010
    %v2012 = vpop.f32.mrb[0].mxu0
    %2013 = vmatprep.mubr.f32.mxu0 0.0
    %2014 = vmatmul.mubr.f32.gmra.mrb[0].mxu0 %v1897
    %v2015 = vpop.f32.mrb[0].mxu0
    %v2016 = vadd.f32 0.0, %v2015
    %v2017 = vpop.f32.mrb[0].mxu0
    %2018 = vmatprep.mubr.f32.mxu0 0.0
    %2019 = vmatmul.mubr.f32.gmra.mrb[0].mxu0 %v1900
    %v2020 = vpop.f32.mrb[0].mxu0
    %v2021 = vadd.f32 0.0, %v2020
    %v2022 = vpop.f32.mrb[0].mxu0
    %2023 = vmatprep.mubr.f32.mxu0 0.0
    %2024 = vmatmul.mubr.f32.gmra.mrb[0].mxu0 %v1903
    %v2025 = vpop.f32.mrb[0].mxu0
    %v2026 = vadd.f32 0.0, %v2025
    %v2027 = vpop.f32.mrb[0].mxu0
    %2028 = vmatprep.mubr.f32.mxu0 0.0
    %2029 = vmatmul.mubr.f32.gmra.mrb[0].mxu0 %v1906
    %v2030 = vpop.f32.mrb[0].mxu0
    %v2031 = vadd.f32 0.0, %v2030
    %v2032 = vpop.f32.mrb[0].mxu0
    %2033 = vmatprep.mubr.f32.mxu0 0.0
    %2034 = vmatmul.mubr.f32.gmra.mrb[0].mxu0 %v1909
    %v2035 = vpop.f32.mrb[0].mxu0
    %v2036 = vadd.f32 0.0, %v2035
    %v2037 = vpop.f32.mrb[0].mxu0
    %2038 = vmatprep.mubr.f32.mxu0 0.0
    %2039 = vmatmul.mubr.f32.gmra.mrb[0].mxu0 %v1912
    %v2040 = vpop.f32.mrb[0].mxu0
    %v2041 = vadd.f32 0.0, %v2040
    %v2042 = vpop.f32.mrb[0].mxu0
    %2043 = vmatprep.mubr.f32.mxu0 0.0
    %2044 = vmatmul.mubr.f32.gmra.mrb[0].mxu0 %v1915
    %v2045 = vpop.f32.mrb[0].mxu0
    %v2046 = vadd.f32 0.0, %v2045
    %v2047 = vpop.f32.mrb[0].mxu0
    %2048 = vmatprep.mubr.f32.mxu0 0.0
    %2049 = vmatmul.mubr.f32.gmra.mrb[0].mxu0 %v1918
    %v2050 = vpop.f32.mrb[0].mxu0
    %v2051 = vadd.f32 0.0, %v2050
    %v2052 = vpop.f32.mrb[0].mxu0
    %2053 = vmatprep.mubr.f32.mxu0 0.0
    %2054 = vmatmul.mubr.f32.gmra.mrb[0].mxu0 %v1921
    %v2055 = vpop.f32.mrb[0].mxu0
    %v2056 = vadd.f32 0.0, %v2055
    %v2057 = vpop.f32.mrb[0].mxu0
    %2058 = vmatprep.mubr.f32.mxu0 0.0
    %2059 = vmatmul.mubr.f32.gmra.mrb[0].mxu0 %v1924
    %v2060 = vpop.f32.mrb[0].mxu0
    %v2061 = vadd.f32 0.0, %v2060
    %v2062 = vpop.f32.mrb[0].mxu0
    %2063 = vmatprep.mubr.f32.mxu0 0.0
    %2064 = vmatmul.mubr.f32.gmra.mrb[0].mxu0 %v1927
    %v2065 = vpop.f32.mrb[0].mxu0
    %v2066 = vadd.f32 0.0, %v2065
    %v2067 = vpop.f32.mrb[0].mxu0
    %2068 = vmatprep.mubr.f32.mxu0 0.0
    %2069 = vmatmul.mubr.f32.gmra.mrb[0].mxu0 %v1930
    %v2070 = vpop.f32.mrb[0].mxu0
    %v2071 = vadd.f32 0.0, %v2070
    %v2072 = vpop.f32.mrb[0].mxu0
    %2073 = vmatprep.mubr.f32.mxu0 0.0
    %2074 = vmatmul.mubr.f32.gmra.mrb[0].mxu0 %v1933
    %v2075 = vpop.f32.mrb[0].mxu0
    %v2076 = vadd.f32 0.0, %v2075
    %v2077 = vpop.f32.mrb[0].mxu0
    %2078 = vmatprep.mubr.f32.mxu0 0.0
    %2079 = vmatmul.mubr.f32.gmra.mrb[0].mxu0 %v1936
    %v2080 = vpop.f32.mrb[0].mxu0
    %v2081 = vadd.f32 0.0, %v2080
    %v2082 = vpop.f32.mrb[0].mxu0
    %2083 = vmatprep.mubr.f32.mxu0 0.0
    %2084 = vmatmul.mubr.f32.gmra.mrb[0].mxu0 %v1939
    %v2085 = vpop.f32.mrb[0].mxu0
    %v2086 = vadd.f32 0.0, %v2085
    %v2087 = vpop.f32.mrb[0].mxu0
    %2088 = vdwg.mxu0
    %v2089 = vld [vmem:[#allocation4] sm:$0xff]
    %v2090 = vld [vmem:[#allocation4 + $0x8] sm:$0xff]
    %v2091 = vld [vmem:[#allocation4 + $0x10] sm:$0xff]
    %v2092 = vld [vmem:[#allocation4 + $0x18] sm:$0xff]
    %v2093 = vld [vmem:[#allocation4 + $0x20] sm:$0xff]
    %v2094 = vld [vmem:[#allocation4 + $0x28] sm:$0xff]
    %v2095 = vld [vmem:[#allocation4 + $0x30] sm:$0xff]
    %v2096 = vld [vmem:[#allocation4 + $0x38] sm:$0xff]
    %v2097 = vld [vmem:[#allocation4 + $0x40] sm:$0xff]
    %v2098 = vld [vmem:[#allocation4 + $0x48] sm:$0xff]
    %v2099 = vld [vmem:[#allocation4 + $0x50] sm:$0xff]
    %v2100 = vld [vmem:[#allocation4 + $0x58] sm:$0xff]
    %v2101 = vld [vmem:[#allocation4 + $0x60] sm:$0xff]
    %v2102 = vld [vmem:[#allocation4 + $0x68] sm:$0xff]
    %v2103 = vld [vmem:[#allocation4 + $0x70] sm:$0xff]
    %v2104 = vld [vmem:[#allocation4 + $0x78] sm:$0xff]
    %v2105 = vadd.f32 %v2089, %v2011
    %v2106 = vadd.f32 %v2090, %v2016
    %v2107 = vadd.f32 %v2091, %v2021
    %v2108 = vadd.f32 %v2092, %v2026
    %v2109 = vadd.f32 %v2093, %v2031
    %v2110 = vadd.f32 %v2094, %v2036
    %v2111 = vadd.f32 %v2095, %v2041
    %v2112 = vadd.f32 %v2096, %v2046
    %v2113 = vadd.f32 %v2097, %v2051
    %v2114 = vadd.f32 %v2098, %v2056
    %v2115 = vadd.f32 %v2099, %v2061
    %v2116 = vadd.f32 %v2100, %v2066
    %v2117 = vadd.f32 %v2101, %v2071
    %v2118 = vadd.f32 %v2102, %v2076
    %v2119 = vadd.f32 %v2103, %v2081
    %v2120 = vadd.f32 %v2104, %v2086
    %2121 = vst [vmem:[#allocation4] sm:$0xff] %v2105
    %2122 = vst [vmem:[#allocation4 + $0x8] sm:$0xff] %v2106
    %2123 = vst [vmem:[#allocation4 + $0x10] sm:$0xff] %v2107
    %2124 = vst [vmem:[#allocation4 + $0x18] sm:$0xff] %v2108
    %2125 = vst [vmem:[#allocation4 + $0x20] sm:$0xff] %v2109
    %2126 = vst [vmem:[#allocation4 + $0x28] sm:$0xff] %v2110
    %2127 = vst [vmem:[#allocation4 + $0x30] sm:$0xff] %v2111
    %2128 = vst [vmem:[#allocation4 + $0x38] sm:$0xff] %v2112
    %2129 = vst [vmem:[#allocation4 + $0x40] sm:$0xff] %v2113
    %2130 = vst [vmem:[#allocation4 + $0x48] sm:$0xff] %v2114
    %2131 = vst [vmem:[#allocation4 + $0x50] sm:$0xff] %v2115
    %2132 = vst [vmem:[#allocation4 + $0x58] sm:$0xff] %v2116
    %2133 = vst [vmem:[#allocation4 + $0x60] sm:$0xff] %v2117
    %2134 = vst [vmem:[#allocation4 + $0x68] sm:$0xff] %v2118
    %2135 = vst [vmem:[#allocation4 + $0x70] sm:$0xff] %v2119
    %2136 = vst [vmem:[#allocation4 + $0x78] sm:$0xff] %v2120
    %v2137 = vld [vmem:[%s1874 + $0x1] sm:$0xff]
    %v2138 = vld [vmem:[%s1874 + $0x11] sm:$0xff]
    %v2139 = vld [vmem:[%s1874 + $0x21] sm:$0xff]
    %v2140 = vld [vmem:[%s1874 + $0x31] sm:$0xff]
    %v2141 = vld [vmem:[%s1874 + $0x41] sm:$0xff]
    %v2142 = vld [vmem:[%s1874 + $0x51] sm:$0xff]
    %v2143 = vld [vmem:[%s1874 + $0x61] sm:$0xff]
    %v2144 = vld [vmem:[%s1874 + $0x71] sm:$0xff]
    %v2145 = vld [vmem:[%s1874 + $0xa1] sm:$0xff]
    %v2146 = vld [vmem:[%s1874 + $0xb1] sm:$0xff]
    %v2147 = vld [vmem:[%s1874 + $0xc1] sm:$0xff]
    %v2148 = vld [vmem:[%s1874 + $0xd1] sm:$0xff]
    %v2149 = vld [vmem:[%s1874 + $0xe1] sm:$0xff]
    %v2150 = vld [vmem:[%s1874 + $0xf1] sm:$0xff]
    %v2151 = vld [vmem:[%s1874 + $0x101] sm:$0xff]
    %v2152 = vld [vmem:[%s1874 + $0x111] sm:$0xff]
    %s2153 = scalar_lea.vmem %s1, 28
    %v2154 = vld [vmem:[%s2153] sm:$0xf]
    %v2156 = vsel %vm41, %v2137, 0
    %v2159 = vsel %vm41, %v2138, 0
    %v2162 = vsel %vm41, %v2139, 0
    %v2165 = vsel %vm41, %v2140, 0
    %v2168 = vsel %vm41, %v2141, 0
    %v2171 = vsel %vm41, %v2142, 0
    %v2174 = vsel %vm41, %v2143, 0
    %v2177 = vsel %vm41, %v2144, 0
    %v2180 = vsel %vm41, %v2145, 0
    %v2183 = vsel %vm41, %v2146, 0
    %v2186 = vsel %vm41, %v2147, 0
    %v2189 = vsel %vm41, %v2148, 0
    %v2192 = vsel %vm41, %v2149, 0
    %v2195 = vsel %vm41, %v2150, 0
    %v2198 = vsel %vm41, %v2151, 0
    %v2201 = vsel %vm41, %v2152, 0
    %v2204 = vsel %vm399, %v2154, 0
    %2206 = vmatprep.subr.mxu0 0.0
    %2207 = vmatpush1.msra.mxu0 %v2204
    %2208 = vmatprep.subr.mxu0 0.0
    %2209 = vmatpush1.msra.mxu0 0.0
    %2210 = vmatprep.subr.mxu0 0.0
    %2211 = vmatpush1.msra.mxu0 0.0
    %2212 = vmatprep.subr.mxu0 0.0
    %2213 = vmatpush1.msra.mxu0 0.0
    %2214 = vmatprep.subr.mxu0 0.0
    %2215 = vmatpush1.msra.mxu0 0.0
    %2216 = vmatprep.subr.mxu0 0.0
    %2217 = vmatpush1.msra.mxu0 0.0
    %2218 = vmatprep.subr.mxu0 0.0
    %2219 = vmatpush1.msra.mxu0 0.0
    %2220 = vmatprep.subr.mxu0 0.0
    %2221 = vmatpush1.msra.mxu0 0.0
    %2222 = vmatprep.subr.mxu0 0.0
    %2223 = vmatpush1.msra.mxu0 0.0
    %2224 = vmatprep.subr.mxu0 0.0
    %2225 = vmatpush1.msra.mxu0 0.0
    %2226 = vmatprep.subr.mxu0 0.0
    %2227 = vmatpush1.msra.mxu0 0.0
    %2228 = vmatprep.subr.mxu0 0.0
    %2229 = vmatpush1.msra.mxu0 0.0
    %2230 = vmatprep.subr.mxu0 0.0
    %2231 = vmatpush1.msra.mxu0 0.0
    %2232 = vmatprep.subr.mxu0 0.0
    %2233 = vmatpush1.msra.mxu0 0.0
    %2234 = vmatprep.subr.mxu0 0.0
    %2235 = vmatpush1.msra.mxu0 0.0
    %2236 = vmatprep.subr.mxu0 0.0
    %2237 = vmatpush1.msra.mxu0 0.0
    %2238 = vmatprep.subr.mxu0 0.0
    %2239 = vmatpush1.msra.mxu0 0.0
    %2240 = vmatprep.subr.mxu0 0.0
    %2241 = vmatpush1.msra.mxu0 0.0
    %2242 = vmatprep.subr.mxu0 0.0
    %2243 = vmatpush1.msra.mxu0 0.0
    %2244 = vmatprep.subr.mxu0 0.0
    %2245 = vmatpush1.msra.mxu0 0.0
    %2246 = vmatprep.subr.mxu0 0.0
    %2247 = vmatpush1.msra.mxu0 0.0
    %2248 = vmatprep.subr.mxu0 0.0
    %2249 = vmatpush1.msra.mxu0 0.0
    %2250 = vmatprep.subr.mxu0 0.0
    %2251 = vmatpush1.msra.mxu0 0.0
    %2252 = vmatprep.subr.mxu0 0.0
    %2253 = vmatpush1.msra.mxu0 0.0
    %2254 = vmatprep.subr.mxu0 0.0
    %2255 = vmatpush1.msra.mxu0 0.0
    %2256 = vmatprep.subr.mxu0 0.0
    %2257 = vmatpush1.msra.mxu0 0.0
    %2258 = vmatprep.subr.mxu0 0.0
    %2259 = vmatpush1.msra.mxu0 0.0
    %2260 = vmatprep.subr.mxu0 0.0
    %2261 = vmatpush1.msra.mxu0 0.0
    %2262 = vmatprep.subr.mxu0 0.0
    %2263 = vmatpush1.msra.mxu0 0.0
    %2264 = vmatprep.subr.mxu0 0.0
    %2265 = vmatpush1.msra.mxu0 0.0
    %2266 = vmatprep.subr.mxu0 0.0
    %2267 = vmatpush1.msra.mxu0 0.0
    %2268 = vmatprep.subr.mxu0 0.0
    %2269 = vmatpush1.msra.mxu0 0.0
    %2270 = vmatprep.mubr.f32.mxu0 0.0
    %2271 = vmatmul.mubr.f32.gmra.mrb[0].mxu0 %v2156
    %v2272 = vpop.f32.mrb[0].mxu0
    %v2273 = vadd.f32 0.0, %v2272
    %v2274 = vpop.f32.mrb[0].mxu0
    %2275 = vmatprep.mubr.f32.mxu0 0.0
    %2276 = vmatmul.mubr.f32.gmra.mrb[0].mxu0 %v2159
    %v2277 = vpop.f32.mrb[0].mxu0
    %v2278 = vadd.f32 0.0, %v2277
    %v2279 = vpop.f32.mrb[0].mxu0
    %2280 = vmatprep.mubr.f32.mxu0 0.0
    %2281 = vmatmul.mubr.f32.gmra.mrb[0].mxu0 %v2162
    %v2282 = vpop.f32.mrb[0].mxu0
    %v2283 = vadd.f32 0.0, %v2282
    %v2284 = vpop.f32.mrb[0].mxu0
    %2285 = vmatprep.mubr.f32.mxu0 0.0
    %2286 = vmatmul.mubr.f32.gmra.mrb[0].mxu0 %v2165
    %v2287 = vpop.f32.mrb[0].mxu0
    %v2288 = vadd.f32 0.0, %v2287
    %v2289 = vpop.f32.mrb[0].mxu0
    %2290 = vmatprep.mubr.f32.mxu0 0.0
    %2291 = vmatmul.mubr.f32.gmra.mrb[0].mxu0 %v2168
    %v2292 = vpop.f32.mrb[0].mxu0
    %v2293 = vadd.f32 0.0, %v2292
    %v2294 = vpop.f32.mrb[0].mxu0
    %2295 = vmatprep.mubr.f32.mxu0 0.0
    %2296 = vmatmul.mubr.f32.gmra.mrb[0].mxu0 %v2171
    %v2297 = vpop.f32.mrb[0].mxu0
    %v2298 = vadd.f32 0.0, %v2297
    %v2299 = vpop.f32.mrb[0].mxu0
    %2300 = vmatprep.mubr.f32.mxu0 0.0
    %2301 = vmatmul.mubr.f32.gmra.mrb[0].mxu0 %v2174
    %v2302 = vpop.f32.mrb[0].mxu0
    %v2303 = vadd.f32 0.0, %v2302
    %v2304 = vpop.f32.mrb[0].mxu0
    %2305 = vmatprep.mubr.f32.mxu0 0.0
    %2306 = vmatmul.mubr.f32.gmra.mrb[0].mxu0 %v2177
    %v2307 = vpop.f32.mrb[0].mxu0
    %v2308 = vadd.f32 0.0, %v2307
    %v2309 = vpop.f32.mrb[0].mxu0
    %2310 = vmatprep.mubr.f32.mxu0 0.0
    %2311 = vmatmul.mubr.f32.gmra.mrb[0].mxu0 %v2180
    %v2312 = vpop.f32.mrb[0].mxu0
    %v2313 = vadd.f32 0.0, %v2312
    %v2314 = vpop.f32.mrb[0].mxu0
    %2315 = vmatprep.mubr.f32.mxu0 0.0
    %2316 = vmatmul.mubr.f32.gmra.mrb[0].mxu0 %v2183
    %v2317 = vpop.f32.mrb[0].mxu0
    %v2318 = vadd.f32 0.0, %v2317
    %v2319 = vpop.f32.mrb[0].mxu0
    %2320 = vmatprep.mubr.f32.mxu0 0.0
    %2321 = vmatmul.mubr.f32.gmra.mrb[0].mxu0 %v2186
    %v2322 = vpop.f32.mrb[0].mxu0
    %v2323 = vadd.f32 0.0, %v2322
    %v2324 = vpop.f32.mrb[0].mxu0
    %2325 = vmatprep.mubr.f32.mxu0 0.0
    %2326 = vmatmul.mubr.f32.gmra.mrb[0].mxu0 %v2189
    %v2327 = vpop.f32.mrb[0].mxu0
    %v2328 = vadd.f32 0.0, %v2327
    %v2329 = vpop.f32.mrb[0].mxu0
    %2330 = vmatprep.mubr.f32.mxu0 0.0
    %2331 = vmatmul.mubr.f32.gmra.mrb[0].mxu0 %v2192
    %v2332 = vpop.f32.mrb[0].mxu0
    %v2333 = vadd.f32 0.0, %v2332
    %v2334 = vpop.f32.mrb[0].mxu0
    %2335 = vmatprep.mubr.f32.mxu0 0.0
    %2336 = vmatmul.mubr.f32.gmra.mrb[0].mxu0 %v2195
    %v2337 = vpop.f32.mrb[0].mxu0
    %v2338 = vadd.f32 0.0, %v2337
    %v2339 = vpop.f32.mrb[0].mxu0
    %2340 = vmatprep.mubr.f32.mxu0 0.0
    %2341 = vmatmul.mubr.f32.gmra.mrb[0].mxu0 %v2198
    %v2342 = vpop.f32.mrb[0].mxu0
    %v2343 = vadd.f32 0.0, %v2342
    %v2344 = vpop.f32.mrb[0].mxu0
    %2345 = vmatprep.mubr.f32.mxu0 0.0
    %2346 = vmatmul.mubr.f32.gmra.mrb[0].mxu0 %v2201
    %v2347 = vpop.f32.mrb[0].mxu0
    %v2348 = vadd.f32 0.0, %v2347
    %v2349 = vpop.f32.mrb[0].mxu0
    %2350 = vdwg.mxu0
    %v2351 = vld [vmem:[#allocation4] sm:$0xff]
    %v2352 = vld [vmem:[#allocation4 + $0x8] sm:$0xff]
    %v2353 = vld [vmem:[#allocation4 + $0x10] sm:$0xff]
    %v2354 = vld [vmem:[#allocation4 + $0x18] sm:$0xff]
    %v2355 = vld [vmem:[#allocation4 + $0x20] sm:$0xff]
    %v2356 = vld [vmem:[#allocation4 + $0x28] sm:$0xff]
    %v2357 = vld [vmem:[#allocation4 + $0x30] sm:$0xff]
    %v2358 = vld [vmem:[#allocation4 + $0x38] sm:$0xff]
    %v2359 = vld [vmem:[#allocation4 + $0x40] sm:$0xff]
    %v2360 = vld [vmem:[#allocation4 + $0x48] sm:$0xff]
    %v2361 = vld [vmem:[#allocation4 + $0x50] sm:$0xff]
    %v2362 = vld [vmem:[#allocation4 + $0x58] sm:$0xff]
    %v2363 = vld [vmem:[#allocation4 + $0x60] sm:$0xff]
    %v2364 = vld [vmem:[#allocation4 + $0x68] sm:$0xff]
    %v2365 = vld [vmem:[#allocation4 + $0x70] sm:$0xff]
    %v2366 = vld [vmem:[#allocation4 + $0x78] sm:$0xff]
    %v2367 = vadd.f32 %v2351, %v2273
    %v2368 = vadd.f32 %v2352, %v2278
    %v2369 = vadd.f32 %v2353, %v2283
    %v2370 = vadd.f32 %v2354, %v2288
    %v2371 = vadd.f32 %v2355, %v2293
    %v2372 = vadd.f32 %v2356, %v2298
    %v2373 = vadd.f32 %v2357, %v2303
    %v2374 = vadd.f32 %v2358, %v2308
    %v2375 = vadd.f32 %v2359, %v2313
    %v2376 = vadd.f32 %v2360, %v2318
    %v2377 = vadd.f32 %v2361, %v2323
    %v2378 = vadd.f32 %v2362, %v2328
    %v2379 = vadd.f32 %v2363, %v2333
    %v2380 = vadd.f32 %v2364, %v2338
    %v2381 = vadd.f32 %v2365, %v2343
    %v2382 = vadd.f32 %v2366, %v2348
    %2383 = vst [vmem:[#allocation4] sm:$0xff] %v2367
    %2384 = vst [vmem:[#allocation4 + $0x8] sm:$0xff] %v2368
    %2385 = vst [vmem:[#allocation4 + $0x10] sm:$0xff] %v2369
    %2386 = vst [vmem:[#allocation4 + $0x18] sm:$0xff] %v2370
    %2387 = vst [vmem:[#allocation4 + $0x20] sm:$0xff] %v2371
    %2388 = vst [vmem:[#allocation4 + $0x28] sm:$0xff] %v2372
    %2389 = vst [vmem:[#allocation4 + $0x30] sm:$0xff] %v2373
    %2390 = vst [vmem:[#allocation4 + $0x38] sm:$0xff] %v2374
    %2391 = vst [vmem:[#allocation4 + $0x40] sm:$0xff] %v2375
    %2392 = vst [vmem:[#allocation4 + $0x48] sm:$0xff] %v2376
    %2393 = vst [vmem:[#allocation4 + $0x50] sm:$0xff] %v2377
    %2394 = vst [vmem:[#allocation4 + $0x58] sm:$0xff] %v2378
    %2395 = vst [vmem:[#allocation4 + $0x60] sm:$0xff] %v2379
    %2396 = vst [vmem:[#allocation4 + $0x68] sm:$0xff] %v2380
    %2397 = vst [vmem:[#allocation4 + $0x70] sm:$0xff] %v2381
    %2398 = vst [vmem:[#allocation4 + $0x78] sm:$0xff] %v2382
    %v2399 = vld [vmem:[%s1874 + $0x2] sm:$0xff]
    %v2400 = vld [vmem:[%s1874 + $0x12] sm:$0xff]
    %v2401 = vld [vmem:[%s1874 + $0x22] sm:$0xff]
    %v2402 = vld [vmem:[%s1874 + $0x32] sm:$0xff]
    %v2403 = vld [vmem:[%s1874 + $0x42] sm:$0xff]
    %v2404 = vld [vmem:[%s1874 + $0x52] sm:$0xff]
    %v2405 = vld [vmem:[%s1874 + $0x62] sm:$0xff]
    %v2406 = vld [vmem:[%s1874 + $0x72] sm:$0xff]
    %v2407 = vld [vmem:[%s1874 + $0xa2] sm:$0xff]
    %v2408 = vld [vmem:[%s1874 + $0xb2] sm:$0xff]
    %v2409 = vld [vmem:[%s1874 + $0xc2] sm:$0xff]
    %v2410 = vld [vmem:[%s1874 + $0xd2] sm:$0xff]
    %v2411 = vld [vmem:[%s1874 + $0xe2] sm:$0xff]
    %v2412 = vld [vmem:[%s1874 + $0xf2] sm:$0xff]
    %v2413 = vld [vmem:[%s1874 + $0x102] sm:$0xff]
    %v2414 = vld [vmem:[%s1874 + $0x112] sm:$0xff]
    %s2415 = scalar_lea.vmem %s1, 32
    %v2416 = vld [vmem:[%s2415] sm:$0xf]
    %v2418 = vsel %vm41, %v2399, 0
    %v2421 = vsel %vm41, %v2400, 0
    %v2424 = vsel %vm41, %v2401, 0
    %v2427 = vsel %vm41, %v2402, 0
    %v2430 = vsel %vm41, %v2403, 0
    %v2433 = vsel %vm41, %v2404, 0
    %v2436 = vsel %vm41, %v2405, 0
    %v2439 = vsel %vm41, %v2406, 0
    %v2442 = vsel %vm41, %v2407, 0
    %v2445 = vsel %vm41, %v2408, 0
    %v2448 = vsel %vm41, %v2409, 0
    %v2451 = vsel %vm41, %v2410, 0
    %v2454 = vsel %vm41, %v2411, 0
    %v2457 = vsel %vm41, %v2412, 0
    %v2460 = vsel %vm41, %v2413, 0
    %v2463 = vsel %vm41, %v2414, 0
    %v2466 = vsel %vm399, %v2416, 0
    %2468 = vmatprep.subr.mxu0 0.0
    %2469 = vmatpush1.msra.mxu0 %v2466
    %2470 = vmatprep.subr.mxu0 0.0
    %2471 = vmatpush1.msra.mxu0 0.0
    %2472 = vmatprep.subr.mxu0 0.0
    %2473 = vmatpush1.msra.mxu0 0.0
    %2474 = vmatprep.subr.mxu0 0.0
    %2475 = vmatpush1.msra.mxu0 0.0
    %2476 = vmatprep.subr.mxu0 0.0
    %2477 = vmatpush1.msra.mxu0 0.0
    %2478 = vmatprep.subr.mxu0 0.0
    %2479 = vmatpush1.msra.mxu0 0.0
    %2480 = vmatprep.subr.mxu0 0.0
    %2481 = vmatpush1.msra.mxu0 0.0
    %2482 = vmatprep.subr.mxu0 0.0
    %2483 = vmatpush1.msra.mxu0 0.0
    %2484 = vmatprep.subr.mxu0 0.0
    %2485 = vmatpush1.msra.mxu0 0.0
    %2486 = vmatprep.subr.mxu0 0.0
    %2487 = vmatpush1.msra.mxu0 0.0
    %2488 = vmatprep.subr.mxu0 0.0
    %2489 = vmatpush1.msra.mxu0 0.0
    %2490 = vmatprep.subr.mxu0 0.0
    %2491 = vmatpush1.msra.mxu0 0.0
    %2492 = vmatprep.subr.mxu0 0.0
    %2493 = vmatpush1.msra.mxu0 0.0
    %2494 = vmatprep.subr.mxu0 0.0
    %2495 = vmatpush1.msra.mxu0 0.0
    %2496 = vmatprep.subr.mxu0 0.0
    %2497 = vmatpush1.msra.mxu0 0.0
    %2498 = vmatprep.subr.mxu0 0.0
    %2499 = vmatpush1.msra.mxu0 0.0
    %2500 = vmatprep.subr.mxu0 0.0
    %2501 = vmatpush1.msra.mxu0 0.0
    %2502 = vmatprep.subr.mxu0 0.0
    %2503 = vmatpush1.msra.mxu0 0.0
    %2504 = vmatprep.subr.mxu0 0.0
    %2505 = vmatpush1.msra.mxu0 0.0
    %2506 = vmatprep.subr.mxu0 0.0
    %2507 = vmatpush1.msra.mxu0 0.0
    %2508 = vmatprep.subr.mxu0 0.0
    %2509 = vmatpush1.msra.mxu0 0.0
    %2510 = vmatprep.subr.mxu0 0.0
    %2511 = vmatpush1.msra.mxu0 0.0
    %2512 = vmatprep.subr.mxu0 0.0
    %2513 = vmatpush1.msra.mxu0 0.0
    %2514 = vmatprep.subr.mxu0 0.0
    %2515 = vmatpush1.msra.mxu0 0.0
    %2516 = vmatprep.subr.mxu0 0.0
    %2517 = vmatpush1.msra.mxu0 0.0
    %2518 = vmatprep.subr.mxu0 0.0
    %2519 = vmatpush1.msra.mxu0 0.0
    %2520 = vmatprep.subr.mxu0 0.0
    %2521 = vmatpush1.msra.mxu0 0.0
    %2522 = vmatprep.subr.mxu0 0.0
    %2523 = vmatpush1.msra.mxu0 0.0
    %2524 = vmatprep.subr.mxu0 0.0
    %2525 = vmatpush1.msra.mxu0 0.0
    %2526 = vmatprep.subr.mxu0 0.0
    %2527 = vmatpush1.msra.mxu0 0.0
    %2528 = vmatprep.subr.mxu0 0.0
    %2529 = vmatpush1.msra.mxu0 0.0
    %2530 = vmatprep.subr.mxu0 0.0
    %2531 = vmatpush1.msra.mxu0 0.0
    %2532 = vmatprep.mubr.f32.mxu0 0.0
    %2533 = vmatmul.mubr.f32.gmra.mrb[0].mxu0 %v2418
    %v2534 = vpop.f32.mrb[0].mxu0
    %v2535 = vadd.f32 0.0, %v2534
    %v2536 = vpop.f32.mrb[0].mxu0
    %2537 = vmatprep.mubr.f32.mxu0 0.0
    %2538 = vmatmul.mubr.f32.gmra.mrb[0].mxu0 %v2421
    %v2539 = vpop.f32.mrb[0].mxu0
    %v2540 = vadd.f32 0.0, %v2539
    %v2541 = vpop.f32.mrb[0].mxu0
    %2542 = vmatprep.mubr.f32.mxu0 0.0
    %2543 = vmatmul.mubr.f32.gmra.mrb[0].mxu0 %v2424
    %v2544 = vpop.f32.mrb[0].mxu0
    %v2545 = vadd.f32 0.0, %v2544
    %v2546 = vpop.f32.mrb[0].mxu0
    %2547 = vmatprep.mubr.f32.mxu0 0.0
    %2548 = vmatmul.mubr.f32.gmra.mrb[0].mxu0 %v2427
    %v2549 = vpop.f32.mrb[0].mxu0
    %v2550 = vadd.f32 0.0, %v2549
    %v2551 = vpop.f32.mrb[0].mxu0
    %2552 = vmatprep.mubr.f32.mxu0 0.0
    %2553 = vmatmul.mubr.f32.gmra.mrb[0].mxu0 %v2430
    %v2554 = vpop.f32.mrb[0].mxu0
    %v2555 = vadd.f32 0.0, %v2554
    %v2556 = vpop.f32.mrb[0].mxu0
    %2557 = vmatprep.mubr.f32.mxu0 0.0
    %2558 = vmatmul.mubr.f32.gmra.mrb[0].mxu0 %v2433
    %v2559 = vpop.f32.mrb[0].mxu0
    %v2560 = vadd.f32 0.0, %v2559
    %v2561 = vpop.f32.mrb[0].mxu0
    %2562 = vmatprep.mubr.f32.mxu0 0.0
    %2563 = vmatmul.mubr.f32.gmra.mrb[0].mxu0 %v2436
    %v2564 = vpop.f32.mrb[0].mxu0
    %v2565 = vadd.f32 0.0, %v2564
    %v2566 = vpop.f32.mrb[0].mxu0
    %2567 = vmatprep.mubr.f32.mxu0 0.0
    %2568 = vmatmul.mubr.f32.gmra.mrb[0].mxu0 %v2439
    %v2569 = vpop.f32.mrb[0].mxu0
    %v2570 = vadd.f32 0.0, %v2569
    %v2571 = vpop.f32.mrb[0].mxu0
    %2572 = vmatprep.mubr.f32.mxu0 0.0
    %2573 = vmatmul.mubr.f32.gmra.mrb[0].mxu0 %v2442
    %v2574 = vpop.f32.mrb[0].mxu0
    %v2575 = vadd.f32 0.0, %v2574
    %v2576 = vpop.f32.mrb[0].mxu0
    %2577 = vmatprep.mubr.f32.mxu0 0.0
    %2578 = vmatmul.mubr.f32.gmra.mrb[0].mxu0 %v2445
    %v2579 = vpop.f32.mrb[0].mxu0
    %v2580 = vadd.f32 0.0, %v2579
    %v2581 = vpop.f32.mrb[0].mxu0
    %2582 = vmatprep.mubr.f32.mxu0 0.0
    %2583 = vmatmul.mubr.f32.gmra.mrb[0].mxu0 %v2448
    %v2584 = vpop.f32.mrb[0].mxu0
    %v2585 = vadd.f32 0.0, %v2584
    %v2586 = vpop.f32.mrb[0].mxu0
    %2587 = vmatprep.mubr.f32.mxu0 0.0
    %2588 = vmatmul.mubr.f32.gmra.mrb[0].mxu0 %v2451
    %v2589 = vpop.f32.mrb[0].mxu0
    %v2590 = vadd.f32 0.0, %v2589
    %v2591 = vpop.f32.mrb[0].mxu0
    %2592 = vmatprep.mubr.f32.mxu0 0.0
    %2593 = vmatmul.mubr.f32.gmra.mrb[0].mxu0 %v2454
    %v2594 = vpop.f32.mrb[0].mxu0
    %v2595 = vadd.f32 0.0, %v2594
    %v2596 = vpop.f32.mrb[0].mxu0
    %2597 = vmatprep.mubr.f32.mxu0 0.0
    %2598 = vmatmul.mubr.f32.gmra.mrb[0].mxu0 %v2457
    %v2599 = vpop.f32.mrb[0].mxu0
    %v2600 = vadd.f32 0.0, %v2599
    %v2601 = vpop.f32.mrb[0].mxu0
    %2602 = vmatprep.mubr.f32.mxu0 0.0
    %2603 = vmatmul.mubr.f32.gmra.mrb[0].mxu0 %v2460
    %v2604 = vpop.f32.mrb[0].mxu0
    %v2605 = vadd.f32 0.0, %v2604
    %v2606 = vpop.f32.mrb[0].mxu0
    %2607 = vmatprep.mubr.f32.mxu0 0.0
    %2608 = vmatmul.mubr.f32.gmra.mrb[0].mxu0 %v2463
    %v2609 = vpop.f32.mrb[0].mxu0
    %v2610 = vadd.f32 0.0, %v2609
    %v2611 = vpop.f32.mrb[0].mxu0
    %2612 = vdwg.mxu0
    %v2613 = vld [vmem:[#allocation4] sm:$0xff]
    %v2614 = vld [vmem:[#allocation4 + $0x8] sm:$0xff]
    %v2615 = vld [vmem:[#allocation4 + $0x10] sm:$0xff]
    %v2616 = vld [vmem:[#allocation4 + $0x18] sm:$0xff]
    %v2617 = vld [vmem:[#allocation4 + $0x20] sm:$0xff]
    %v2618 = vld [vmem:[#allocation4 + $0x28] sm:$0xff]
    %v2619 = vld [vmem:[#allocation4 + $0x30] sm:$0xff]
    %v2620 = vld [vmem:[#allocation4 + $0x38] sm:$0xff]
    %v2621 = vld [vmem:[#allocation4 + $0x40] sm:$0xff]
    %v2622 = vld [vmem:[#allocation4 + $0x48] sm:$0xff]
    %v2623 = vld [vmem:[#allocation4 + $0x50] sm:$0xff]
    %v2624 = vld [vmem:[#allocation4 + $0x58] sm:$0xff]
    %v2625 = vld [vmem:[#allocation4 + $0x60] sm:$0xff]
    %v2626 = vld [vmem:[#allocation4 + $0x68] sm:$0xff]
    %v2627 = vld [vmem:[#allocation4 + $0x70] sm:$0xff]
    %v2628 = vld [vmem:[#allocation4 + $0x78] sm:$0xff]
    %v2629 = vadd.f32 %v2613, %v2535
    %v2630 = vadd.f32 %v2614, %v2540
    %v2631 = vadd.f32 %v2615, %v2545
    %v2632 = vadd.f32 %v2616, %v2550
    %v2633 = vadd.f32 %v2617, %v2555
    %v2634 = vadd.f32 %v2618, %v2560
    %v2635 = vadd.f32 %v2619, %v2565
    %v2636 = vadd.f32 %v2620, %v2570
    %v2637 = vadd.f32 %v2621, %v2575
    %v2638 = vadd.f32 %v2622, %v2580
    %v2639 = vadd.f32 %v2623, %v2585
    %v2640 = vadd.f32 %v2624, %v2590
    %v2641 = vadd.f32 %v2625, %v2595
    %v2642 = vadd.f32 %v2626, %v2600
    %v2643 = vadd.f32 %v2627, %v2605
    %v2644 = vadd.f32 %v2628, %v2610
    %2645 = vst [vmem:[#allocation4] sm:$0xff] %v2629
    %2646 = vst [vmem:[#allocation4 + $0x8] sm:$0xff] %v2630
    %2647 = vst [vmem:[#allocation4 + $0x10] sm:$0xff] %v2631
    %2648 = vst [vmem:[#allocation4 + $0x18] sm:$0xff] %v2632
    %2649 = vst [vmem:[#allocation4 + $0x20] sm:$0xff] %v2633
    %2650 = vst [vmem:[#allocation4 + $0x28] sm:$0xff] %v2634
    %2651 = vst [vmem:[#allocation4 + $0x30] sm:$0xff] %v2635
    %2652 = vst [vmem:[#allocation4 + $0x38] sm:$0xff] %v2636
    %2653 = vst [vmem:[#allocation4 + $0x40] sm:$0xff] %v2637
    %2654 = vst [vmem:[#allocation4 + $0x48] sm:$0xff] %v2638
    %2655 = vst [vmem:[#allocation4 + $0x50] sm:$0xff] %v2639
    %2656 = vst [vmem:[#allocation4 + $0x58] sm:$0xff] %v2640
    %2657 = vst [vmem:[#allocation4 + $0x60] sm:$0xff] %v2641
    %2658 = vst [vmem:[#allocation4 + $0x68] sm:$0xff] %v2642
    %2659 = vst [vmem:[#allocation4 + $0x70] sm:$0xff] %v2643
    %2660 = vst [vmem:[#allocation4 + $0x78] sm:$0xff] %v2644
    %v2661 = vld [vmem:[#allocation4] sm:$0xff]
    %v2662 = vld [vmem:[#allocation4 + $0x8] sm:$0xff]
    %v2663 = vld [vmem:[#allocation4 + $0x10] sm:$0xff]
    %v2664 = vld [vmem:[#allocation4 + $0x18] sm:$0xff]
    %v2665 = vld [vmem:[#allocation4 + $0x20] sm:$0xff]
    %v2666 = vld [vmem:[#allocation4 + $0x28] sm:$0xff]
    %v2667 = vld [vmem:[#allocation4 + $0x30] sm:$0xff]
    %v2668 = vld [vmem:[#allocation4 + $0x38] sm:$0xff]
    %v2669 = vld [vmem:[#allocation4 + $0x40] sm:$0xff]
    %v2670 = vld [vmem:[#allocation4 + $0x48] sm:$0xff]
    %v2671 = vld [vmem:[#allocation4 + $0x50] sm:$0xff]
    %v2672 = vld [vmem:[#allocation4 + $0x58] sm:$0xff]
    %v2673 = vld [vmem:[#allocation4 + $0x60] sm:$0xff]
    %v2674 = vld [vmem:[#allocation4 + $0x68] sm:$0xff]
    %v2675 = vld [vmem:[#allocation4 + $0x70] sm:$0xff]
    %v2676 = vld [vmem:[#allocation4 + $0x78] sm:$0xff]
    %v2677 = vld [vmem:[%s2] sm:$0x1]
    %v2679 = vlaneseq
    %v2680 = vshrl.u32 %v2679, 7
    %v2681 = vsub.s32 0, %v2680
    %v2682 = vrot.slane %v2677, %v2681
    %v2684 = vmul.f32 %v2661, %v2682
    %v2685 = vmul.f32 %v2662, %v2682
    %v2686 = vmul.f32 %v2663, %v2682
    %v2687 = vmul.f32 %v2664, %v2682
    %v2688 = vmul.f32 %v2665, %v2682
    %v2689 = vmul.f32 %v2666, %v2682
    %v2690 = vmul.f32 %v2667, %v2682
    %v2691 = vmul.f32 %v2668, %v2682
    %v2692 = vmul.f32 %v2669, %v2682
    %v2693 = vmul.f32 %v2670, %v2682
    %v2694 = vmul.f32 %v2671, %v2682
    %v2695 = vmul.f32 %v2672, %v2682
    %v2696 = vmul.f32 %v2673, %v2682
    %v2697 = vmul.f32 %v2674, %v2682
    %v2698 = vmul.f32 %v2675, %v2682
    %v2699 = vmul.f32 %v2676, %v2682
    %v2700 = vld [vmem:[%s3] sm:$0x1]
    %v2702 = vlaneseq
    %v2703 = vshrl.u32 %v2702, 7
    %v2704 = vsub.s32 0, %v2703
    %v2705 = vrot.slane %v2700, %v2704
    %v2707 = vadd.f32 %v2684, %v2705
    %v2708 = vadd.f32 %v2685, %v2705
    %v2709 = vadd.f32 %v2686, %v2705
    %v2710 = vadd.f32 %v2687, %v2705
    %v2711 = vadd.f32 %v2688, %v2705
    %v2712 = vadd.f32 %v2689, %v2705
    %v2713 = vadd.f32 %v2690, %v2705
    %v2714 = vadd.f32 %v2691, %v2705
    %v2715 = vadd.f32 %v2692, %v2705
    %v2716 = vadd.f32 %v2693, %v2705
    %v2717 = vadd.f32 %v2694, %v2705
    %v2718 = vadd.f32 %v2695, %v2705
    %v2719 = vadd.f32 %v2696, %v2705
    %v2720 = vadd.f32 %v2697, %v2705
    %v2721 = vadd.f32 %v2698, %v2705
    %v2722 = vadd.f32 %v2699, %v2705
    %v2723 = vmax.f32 %v2707, 0.0
    %v2724 = vmax.f32 %v2708, 0.0
    %v2725 = vmax.f32 %v2709, 0.0
    %v2726 = vmax.f32 %v2710, 0.0
    %v2727 = vmax.f32 %v2711, 0.0
    %v2728 = vmax.f32 %v2712, 0.0
    %v2729 = vmax.f32 %v2713, 0.0
    %v2730 = vmax.f32 %v2714, 0.0
    %v2731 = vmax.f32 %v2715, 0.0
    %v2732 = vmax.f32 %v2716, 0.0
    %v2733 = vmax.f32 %v2717, 0.0
    %v2734 = vmax.f32 %v2718, 0.0
    %v2735 = vmax.f32 %v2719, 0.0
    %v2736 = vmax.f32 %v2720, 0.0
    %v2737 = vmax.f32 %v2721, 0.0
    %v2738 = vmax.f32 %v2722, 0.0
    %s2739 = scalar_lea.vmem [#allocation3], 16
    %2740 = vst [vmem:[%s2739 + $0x1] sm:$0xff] %v2723
    %2741 = vst [vmem:[%s2739 + $0x11] sm:$0xff] %v2724
    %2742 = vst [vmem:[%s2739 + $0x21] sm:$0xff] %v2725
    %2743 = vst [vmem:[%s2739 + $0x31] sm:$0xff] %v2726
    %2744 = vst [vmem:[%s2739 + $0x41] sm:$0xff] %v2727
    %2745 = vst [vmem:[%s2739 + $0x51] sm:$0xff] %v2728
    %2746 = vst [vmem:[%s2739 + $0x61] sm:$0xff] %v2729
    %2747 = vst [vmem:[%s2739 + $0x71] sm:$0xff] %v2730
    %2748 = vst [vmem:[%s2739 + $0xa1] sm:$0xff] %v2731
    %2749 = vst [vmem:[%s2739 + $0xb1] sm:$0xff] %v2732
    %2750 = vst [vmem:[%s2739 + $0xc1] sm:$0xff] %v2733
    %2751 = vst [vmem:[%s2739 + $0xd1] sm:$0xff] %v2734
    %2752 = vst [vmem:[%s2739 + $0xe1] sm:$0xff] %v2735
    %2753 = vst [vmem:[%s2739 + $0xf1] sm:$0xff] %v2736
    %2754 = vst [vmem:[%s2739 + $0x101] sm:$0xff] %v2737
    %2755 = vst [vmem:[%s2739 + $0x111] sm:$0xff] %v2738
    %v2756 = vld [vmem:[#allocation3] sm:$0xff]
    %v2757 = vld [vmem:[#allocation3 + $0x10] sm:$0xff]
    %v2758 = vld [vmem:[#allocation3 + $0x20] sm:$0xff]
    %v2759 = vld [vmem:[#allocation3 + $0x30] sm:$0xff]
    %v2760 = vld [vmem:[#allocation3 + $0x40] sm:$0xff]
    %v2761 = vld [vmem:[#allocation3 + $0x50] sm:$0xff]
    %v2762 = vld [vmem:[#allocation3 + $0x60] sm:$0xff]
    %v2763 = vld [vmem:[#allocation3 + $0x70] sm:$0xff]
    %v2764 = vld [vmem:[#allocation3 + $0xa0] sm:$0xff]
    %v2765 = vld [vmem:[#allocation3 + $0xb0] sm:$0xff]
    %v2766 = vld [vmem:[#allocation3 + $0xc0] sm:$0xff]
    %v2767 = vld [vmem:[#allocation3 + $0xd0] sm:$0xff]
    %v2768 = vld [vmem:[#allocation3 + $0xe0] sm:$0xff]
    %v2769 = vld [vmem:[#allocation3 + $0xf0] sm:$0xff]
    %v2770 = vld [vmem:[#allocation3 + $0x100] sm:$0xff]
    %v2771 = vld [vmem:[#allocation3 + $0x110] sm:$0xff]
    %v2772 = vld [vmem:[#allocation6] sm:$0xff]
    %v2773 = vld [vmem:[#allocation6 + $0x8] sm:$0xff]
    %v2774 = vld [vmem:[#allocation6 + $0x10] sm:$0xff]
    %v2775 = vld [vmem:[#allocation6 + $0x18] sm:$0xff]
    %v2776 = vld [vmem:[#allocation6 + $0x20] sm:$0xff]
    %v2777 = vld [vmem:[#allocation6 + $0x28] sm:$0xff]
    %v2778 = vld [vmem:[#allocation6 + $0x30] sm:$0xff]
    %v2779 = vld [vmem:[#allocation6 + $0x38] sm:$0xff]
    %v2780 = vld [vmem:[#allocation6 + $0x40] sm:$0xff]
    %v2781 = vld [vmem:[#allocation6 + $0x48] sm:$0xff]
    %v2782 = vld [vmem:[#allocation6 + $0x50] sm:$0xff]
    %v2783 = vld [vmem:[#allocation6 + $0x58] sm:$0xff]
    %v2784 = vld [vmem:[#allocation6 + $0x60] sm:$0xff]
    %v2785 = vld [vmem:[#allocation6 + $0x68] sm:$0xff]
    %v2786 = vld [vmem:[#allocation6 + $0x70] sm:$0xff]
    %v2787 = vld [vmem:[#allocation6 + $0x78] sm:$0xff]
    %2788 = vmatprep.subr.mxu0 0.0
    %2789 = vmatpush1.msra.mxu0 %v2772
    %2790 = vmatprep.subr.mxu0 0.0
    %2791 = vmatpush1.msra.mxu0 %v2773
    %2792 = vmatprep.subr.mxu0 0.0
    %2793 = vmatpush1.msra.mxu0 %v2774
    %2794 = vmatprep.subr.mxu0 0.0
    %2795 = vmatpush1.msra.mxu0 %v2775
    %2796 = vmatprep.subr.mxu0 0.0
    %2797 = vmatpush1.msra.mxu0 %v2776
    %2798 = vmatprep.subr.mxu0 0.0
    %2799 = vmatpush1.msra.mxu0 %v2777
    %2800 = vmatprep.subr.mxu0 0.0
    %2801 = vmatpush1.msra.mxu0 %v2778
    %2802 = vmatprep.subr.mxu0 0.0
    %2803 = vmatpush1.msra.mxu0 %v2779
    %2804 = vmatprep.subr.mxu0 0.0
    %2805 = vmatpush1.msra.mxu0 %v2780
    %2806 = vmatprep.subr.mxu0 0.0
    %2807 = vmatpush1.msra.mxu0 %v2781
    %2808 = vmatprep.subr.mxu0 0.0
    %2809 = vmatpush1.msra.mxu0 %v2782
    %2810 = vmatprep.subr.mxu0 0.0
    %2811 = vmatpush1.msra.mxu0 %v2783
    %2812 = vmatprep.subr.mxu0 0.0
    %2813 = vmatpush1.msra.mxu0 %v2784
    %2814 = vmatprep.subr.mxu0 0.0
    %2815 = vmatpush1.msra.mxu0 %v2785
    %2816 = vmatprep.subr.mxu0 0.0
    %2817 = vmatpush1.msra.mxu0 %v2786
    %2818 = vmatprep.subr.mxu0 0.0
    %2819 = vmatpush1.msra.mxu0 %v2787
    %2820 = vmatprep.subr.mxu0 0.0
    %2821 = vmatpush1.msra.mxu0 0.0
    %2822 = vmatprep.subr.mxu0 0.0
    %2823 = vmatpush1.msra.mxu0 0.0
    %2824 = vmatprep.subr.mxu0 0.0
    %2825 = vmatpush1.msra.mxu0 0.0
    %2826 = vmatprep.subr.mxu0 0.0
    %2827 = vmatpush1.msra.mxu0 0.0
    %2828 = vmatprep.subr.mxu0 0.0
    %2829 = vmatpush1.msra.mxu0 0.0
    %2830 = vmatprep.subr.mxu0 0.0
    %2831 = vmatpush1.msra.mxu0 0.0
    %2832 = vmatprep.subr.mxu0 0.0
    %2833 = vmatpush1.msra.mxu0 0.0
    %2834 = vmatprep.subr.mxu0 0.0
    %2835 = vmatpush1.msra.mxu0 0.0
    %2836 = vmatprep.subr.mxu0 0.0
    %2837 = vmatpush1.msra.mxu0 0.0
    %2838 = vmatprep.subr.mxu0 0.0
    %2839 = vmatpush1.msra.mxu0 0.0
    %2840 = vmatprep.subr.mxu0 0.0
    %2841 = vmatpush1.msra.mxu0 0.0
    %2842 = vmatprep.subr.mxu0 0.0
    %2843 = vmatpush1.msra.mxu0 0.0
    %2844 = vmatprep.subr.mxu0 0.0
    %2845 = vmatpush1.msra.mxu0 0.0
    %2846 = vmatprep.subr.mxu0 0.0
    %2847 = vmatpush1.msra.mxu0 0.0
    %2848 = vmatprep.subr.mxu0 0.0
    %2849 = vmatpush1.msra.mxu0 0.0
    %2850 = vmatprep.subr.mxu0 0.0
    %2851 = vmatpush1.msra.mxu0 0.0
    %2852 = vmatprep.mubr.f32.mxu0 0.0
    %2853 = vmatmul.mubr.f32.gmra.mrb[0].mxu0 %v2756
    %v2854 = vpop.f32.mrb[0].mxu0
    %v2855 = vadd.f32 0.0, %v2854
    %v2856 = vpop.f32.mrb[0].mxu0
    %2857 = vmatprep.mubr.f32.mxu0 0.0
    %2858 = vmatmul.mubr.f32.gmra.mrb[0].mxu0 %v2757
    %v2859 = vpop.f32.mrb[0].mxu0
    %v2860 = vadd.f32 0.0, %v2859
    %v2861 = vpop.f32.mrb[0].mxu0
    %2862 = vmatprep.mubr.f32.mxu0 0.0
    %2863 = vmatmul.mubr.f32.gmra.mrb[0].mxu0 %v2758
    %v2864 = vpop.f32.mrb[0].mxu0
    %v2865 = vadd.f32 0.0, %v2864
    %v2866 = vpop.f32.mrb[0].mxu0
    %2867 = vmatprep.mubr.f32.mxu0 0.0
    %2868 = vmatmul.mubr.f32.gmra.mrb[0].mxu0 %v2759
    %v2869 = vpop.f32.mrb[0].mxu0
    %v2870 = vadd.f32 0.0, %v2869
    %v2871 = vpop.f32.mrb[0].mxu0
    %2872 = vmatprep.mubr.f32.mxu0 0.0
    %2873 = vmatmul.mubr.f32.gmra.mrb[0].mxu0 %v2760
    %v2874 = vpop.f32.mrb[0].mxu0
    %v2875 = vadd.f32 0.0, %v2874
    %v2876 = vpop.f32.mrb[0].mxu0
    %2877 = vmatprep.mubr.f32.mxu0 0.0
    %2878 = vmatmul.mubr.f32.gmra.mrb[0].mxu0 %v2761
    %v2879 = vpop.f32.mrb[0].mxu0
    %v2880 = vadd.f32 0.0, %v2879
    %v2881 = vpop.f32.mrb[0].mxu0
    %2882 = vmatprep.mubr.f32.mxu0 0.0
    %2883 = vmatmul.mubr.f32.gmra.mrb[0].mxu0 %v2762
    %v2884 = vpop.f32.mrb[0].mxu0
    %v2885 = vadd.f32 0.0, %v2884
    %v2886 = vpop.f32.mrb[0].mxu0
    %2887 = vmatprep.mubr.f32.mxu0 0.0
    %2888 = vmatmul.mubr.f32.gmra.mrb[0].mxu0 %v2763
    %v2889 = vpop.f32.mrb[0].mxu0
    %v2890 = vadd.f32 0.0, %v2889
    %v2891 = vpop.f32.mrb[0].mxu0
    %2892 = vmatprep.mubr.f32.mxu0 0.0
    %2893 = vmatmul.mubr.f32.gmra.mrb[0].mxu0 %v2764
    %v2894 = vpop.f32.mrb[0].mxu0
    %v2895 = vadd.f32 0.0, %v2894
    %v2896 = vpop.f32.mrb[0].mxu0
    %2897 = vmatprep.mubr.f32.mxu0 0.0
    %2898 = vmatmul.mubr.f32.gmra.mrb[0].mxu0 %v2765
    %v2899 = vpop.f32.mrb[0].mxu0
    %v2900 = vadd.f32 0.0, %v2899
    %v2901 = vpop.f32.mrb[0].mxu0
    %2902 = vmatprep.mubr.f32.mxu0 0.0
    %2903 = vmatmul.mubr.f32.gmra.mrb[0].mxu0 %v2766
    %v2904 = vpop.f32.mrb[0].mxu0
    %v2905 = vadd.f32 0.0, %v2904
    %v2906 = vpop.f32.mrb[0].mxu0
    %2907 = vmatprep.mubr.f32.mxu0 0.0
    %2908 = vmatmul.mubr.f32.gmra.mrb[0].mxu0 %v2767
    %v2909 = vpop.f32.mrb[0].mxu0
    %v2910 = vadd.f32 0.0, %v2909
    %v2911 = vpop.f32.mrb[0].mxu0
    %2912 = vmatprep.mubr.f32.mxu0 0.0
    %2913 = vmatmul.mubr.f32.gmra.mrb[0].mxu0 %v2768
    %v2914 = vpop.f32.mrb[0].mxu0
    %v2915 = vadd.f32 0.0, %v2914
    %v2916 = vpop.f32.mrb[0].mxu0
    %2917 = vmatprep.mubr.f32.mxu0 0.0
    %2918 = vmatmul.mubr.f32.gmra.mrb[0].mxu0 %v2769
    %v2919 = vpop.f32.mrb[0].mxu0
    %v2920 = vadd.f32 0.0, %v2919
    %v2921 = vpop.f32.mrb[0].mxu0
    %2922 = vmatprep.mubr.f32.mxu0 0.0
    %2923 = vmatmul.mubr.f32.gmra.mrb[0].mxu0 %v2770
    %v2924 = vpop.f32.mrb[0].mxu0
    %v2925 = vadd.f32 0.0, %v2924
    %v2926 = vpop.f32.mrb[0].mxu0
    %2927 = vmatprep.mubr.f32.mxu0 0.0
    %2928 = vmatmul.mubr.f32.gmra.mrb[0].mxu0 %v2771
    %v2929 = vpop.f32.mrb[0].mxu0
    %v2930 = vadd.f32 0.0, %v2929
    %v2931 = vpop.f32.mrb[0].mxu0
    %2932 = vdwg.mxu0
    %2933 = vst [vmem:[#allocation5] sm:$0xff] %v2855
    %2934 = vst [vmem:[#allocation5 + $0x8] sm:$0xff] %v2860
    %2935 = vst [vmem:[#allocation5 + $0x10] sm:$0xff] %v2865
    %2936 = vst [vmem:[#allocation5 + $0x18] sm:$0xff] %v2870
    %2937 = vst [vmem:[#allocation5 + $0x20] sm:$0xff] %v2875
    %2938 = vst [vmem:[#allocation5 + $0x28] sm:$0xff] %v2880
    %2939 = vst [vmem:[#allocation5 + $0x30] sm:$0xff] %v2885
    %2940 = vst [vmem:[#allocation5 + $0x38] sm:$0xff] %v2890
    %2941 = vst [vmem:[#allocation5 + $0x40] sm:$0xff] %v2895
    %2942 = vst [vmem:[#allocation5 + $0x48] sm:$0xff] %v2900
    %2943 = vst [vmem:[#allocation5 + $0x50] sm:$0xff] %v2905
    %2944 = vst [vmem:[#allocation5 + $0x58] sm:$0xff] %v2910
    %2945 = vst [vmem:[#allocation5 + $0x60] sm:$0xff] %v2915
    %2946 = vst [vmem:[#allocation5 + $0x68] sm:$0xff] %v2920
    %2947 = vst [vmem:[#allocation5 + $0x70] sm:$0xff] %v2925
    %2948 = vst [vmem:[#allocation5 + $0x78] sm:$0xff] %v2930
    %v2949 = vld [vmem:[#allocation3 + $0x1] sm:$0xff]
    %v2950 = vld [vmem:[#allocation3 + $0x11] sm:$0xff]
    %v2951 = vld [vmem:[#allocation3 + $0x21] sm:$0xff]
    %v2952 = vld [vmem:[#allocation3 + $0x31] sm:$0xff]
    %v2953 = vld [vmem:[#allocation3 + $0x41] sm:$0xff]
    %v2954 = vld [vmem:[#allocation3 + $0x51] sm:$0xff]
    %v2955 = vld [vmem:[#allocation3 + $0x61] sm:$0xff]
    %v2956 = vld [vmem:[#allocation3 + $0x71] sm:$0xff]
    %v2957 = vld [vmem:[#allocation3 + $0xa1] sm:$0xff]
    %v2958 = vld [vmem:[#allocation3 + $0xb1] sm:$0xff]
    %v2959 = vld [vmem:[#allocation3 + $0xc1] sm:$0xff]
    %v2960 = vld [vmem:[#allocation3 + $0xd1] sm:$0xff]
    %v2961 = vld [vmem:[#allocation3 + $0xe1] sm:$0xff]
    %v2962 = vld [vmem:[#allocation3 + $0xf1] sm:$0xff]
    %v2963 = vld [vmem:[#allocation3 + $0x101] sm:$0xff]
    %v2964 = vld [vmem:[#allocation3 + $0x111] sm:$0xff]
    %s2965 = scalar_lea.vmem [#allocation6], 128
    %v2966 = vld [vmem:[%s2965] sm:$0xff]
    %v2967 = vld [vmem:[%s2965 + $0x8] sm:$0xff]
    %v2968 = vld [vmem:[%s2965 + $0x10] sm:$0xff]
    %v2969 = vld [vmem:[%s2965 + $0x18] sm:$0xff]
    %v2970 = vld [vmem:[%s2965 + $0x20] sm:$0xff]
    %v2971 = vld [vmem:[%s2965 + $0x28] sm:$0xff]
    %v2972 = vld [vmem:[%s2965 + $0x30] sm:$0xff]
    %v2973 = vld [vmem:[%s2965 + $0x38] sm:$0xff]
    %v2974 = vld [vmem:[%s2965 + $0x40] sm:$0xff]
    %v2975 = vld [vmem:[%s2965 + $0x48] sm:$0xff]
    %v2976 = vld [vmem:[%s2965 + $0x50] sm:$0xff]
    %v2977 = vld [vmem:[%s2965 + $0x58] sm:$0xff]
    %v2978 = vld [vmem:[%s2965 + $0x60] sm:$0xff]
    %v2979 = vld [vmem:[%s2965 + $0x68] sm:$0xff]
    %v2980 = vld [vmem:[%s2965 + $0x70] sm:$0xff]
    %v2981 = vld [vmem:[%s2965 + $0x78] sm:$0xff]
    %2982 = vmatprep.subr.mxu0 0.0
    %2983 = vmatpush1.msra.mxu0 %v2966
    %2984 = vmatprep.subr.mxu0 0.0
    %2985 = vmatpush1.msra.mxu0 %v2967
    %2986 = vmatprep.subr.mxu0 0.0
    %2987 = vmatpush1.msra.mxu0 %v2968
    %2988 = vmatprep.subr.mxu0 0.0
    %2989 = vmatpush1.msra.mxu0 %v2969
    %2990 = vmatprep.subr.mxu0 0.0
    %2991 = vmatpush1.msra.mxu0 %v2970
    %2992 = vmatprep.subr.mxu0 0.0
    %2993 = vmatpush1.msra.mxu0 %v2971
    %2994 = vmatprep.subr.mxu0 0.0
    %2995 = vmatpush1.msra.mxu0 %v2972
    %2996 = vmatprep.subr.mxu0 0.0
    %2997 = vmatpush1.msra.mxu0 %v2973
    %2998 = vmatprep.subr.mxu0 0.0
    %2999 = vmatpush1.msra.mxu0 %v2974
    %3000 = vmatprep.subr.mxu0 0.0
    %3001 = vmatpush1.msra.mxu0 %v2975
    %3002 = vmatprep.subr.mxu0 0.0
    %3003 = vmatpush1.msra.mxu0 %v2976
    %3004 = vmatprep.subr.mxu0 0.0
    %3005 = vmatpush1.msra.mxu0 %v2977
    %3006 = vmatprep.subr.mxu0 0.0
    %3007 = vmatpush1.msra.mxu0 %v2978
    %3008 = vmatprep.subr.mxu0 0.0
    %3009 = vmatpush1.msra.mxu0 %v2979
    %3010 = vmatprep.subr.mxu0 0.0
    %3011 = vmatpush1.msra.mxu0 %v2980
    %3012 = vmatprep.subr.mxu0 0.0
    %3013 = vmatpush1.msra.mxu0 %v2981
    %3014 = vmatprep.subr.mxu0 0.0
    %3015 = vmatpush1.msra.mxu0 0.0
    %3016 = vmatprep.subr.mxu0 0.0
    %3017 = vmatpush1.msra.mxu0 0.0
    %3018 = vmatprep.subr.mxu0 0.0
    %3019 = vmatpush1.msra.mxu0 0.0
    %3020 = vmatprep.subr.mxu0 0.0
    %3021 = vmatpush1.msra.mxu0 0.0
    %3022 = vmatprep.subr.mxu0 0.0
    %3023 = vmatpush1.msra.mxu0 0.0
    %3024 = vmatprep.subr.mxu0 0.0
    %3025 = vmatpush1.msra.mxu0 0.0
    %3026 = vmatprep.subr.mxu0 0.0
    %3027 = vmatpush1.msra.mxu0 0.0
    %3028 = vmatprep.subr.mxu0 0.0
    %3029 = vmatpush1.msra.mxu0 0.0
    %3030 = vmatprep.subr.mxu0 0.0
    %3031 = vmatpush1.msra.mxu0 0.0
    %3032 = vmatprep.subr.mxu0 0.0
    %3033 = vmatpush1.msra.mxu0 0.0
    %3034 = vmatprep.subr.mxu0 0.0
    %3035 = vmatpush1.msra.mxu0 0.0
    %3036 = vmatprep.subr.mxu0 0.0
    %3037 = vmatpush1.msra.mxu0 0.0
    %3038 = vmatprep.subr.mxu0 0.0
    %3039 = vmatpush1.msra.mxu0 0.0
    %3040 = vmatprep.subr.mxu0 0.0
    %3041 = vmatpush1.msra.mxu0 0.0
    %3042 = vmatprep.subr.mxu0 0.0
    %3043 = vmatpush1.msra.mxu0 0.0
    %3044 = vmatprep.subr.mxu0 0.0
    %3045 = vmatpush1.msra.mxu0 0.0
    %3046 = vmatprep.mubr.f32.mxu0 0.0
    %3047 = vmatmul.mubr.f32.gmra.mrb[0].mxu0 %v2949
    %v3048 = vpop.f32.mrb[0].mxu0
    %v3049 = vadd.f32 0.0, %v3048
    %v3050 = vpop.f32.mrb[0].mxu0
    %3051 = vmatprep.mubr.f32.mxu0 0.0
    %3052 = vmatmul.mubr.f32.gmra.mrb[0].mxu0 %v2950
    %v3053 = vpop.f32.mrb[0].mxu0
    %v3054 = vadd.f32 0.0, %v3053
    %v3055 = vpop.f32.mrb[0].mxu0
    %3056 = vmatprep.mubr.f32.mxu0 0.0
    %3057 = vmatmul.mubr.f32.gmra.mrb[0].mxu0 %v2951
    %v3058 = vpop.f32.mrb[0].mxu0
    %v3059 = vadd.f32 0.0, %v3058
    %v3060 = vpop.f32.mrb[0].mxu0
    %3061 = vmatprep.mubr.f32.mxu0 0.0
    %3062 = vmatmul.mubr.f32.gmra.mrb[0].mxu0 %v2952
    %v3063 = vpop.f32.mrb[0].mxu0
    %v3064 = vadd.f32 0.0, %v3063
    %v3065 = vpop.f32.mrb[0].mxu0
    %3066 = vmatprep.mubr.f32.mxu0 0.0
    %3067 = vmatmul.mubr.f32.gmra.mrb[0].mxu0 %v2953
    %v3068 = vpop.f32.mrb[0].mxu0
    %v3069 = vadd.f32 0.0, %v3068
    %v3070 = vpop.f32.mrb[0].mxu0
    %3071 = vmatprep.mubr.f32.mxu0 0.0
    %3072 = vmatmul.mubr.f32.gmra.mrb[0].mxu0 %v2954
    %v3073 = vpop.f32.mrb[0].mxu0
    %v3074 = vadd.f32 0.0, %v3073
    %v3075 = vpop.f32.mrb[0].mxu0
    %3076 = vmatprep.mubr.f32.mxu0 0.0
    %3077 = vmatmul.mubr.f32.gmra.mrb[0].mxu0 %v2955
    %v3078 = vpop.f32.mrb[0].mxu0
    %v3079 = vadd.f32 0.0, %v3078
    %v3080 = vpop.f32.mrb[0].mxu0
    %3081 = vmatprep.mubr.f32.mxu0 0.0
    %3082 = vmatmul.mubr.f32.gmra.mrb[0].mxu0 %v2956
    %v3083 = vpop.f32.mrb[0].mxu0
    %v3084 = vadd.f32 0.0, %v3083
    %v3085 = vpop.f32.mrb[0].mxu0
    %3086 = vmatprep.mubr.f32.mxu0 0.0
    %3087 = vmatmul.mubr.f32.gmra.mrb[0].mxu0 %v2957
    %v3088 = vpop.f32.mrb[0].mxu0
    %v3089 = vadd.f32 0.0, %v3088
    %v3090 = vpop.f32.mrb[0].mxu0
    %3091 = vmatprep.mubr.f32.mxu0 0.0
    %3092 = vmatmul.mubr.f32.gmra.mrb[0].mxu0 %v2958
    %v3093 = vpop.f32.mrb[0].mxu0
    %v3094 = vadd.f32 0.0, %v3093
    %v3095 = vpop.f32.mrb[0].mxu0
    %3096 = vmatprep.mubr.f32.mxu0 0.0
    %3097 = vmatmul.mubr.f32.gmra.mrb[0].mxu0 %v2959
    %v3098 = vpop.f32.mrb[0].mxu0
    %v3099 = vadd.f32 0.0, %v3098
    %v3100 = vpop.f32.mrb[0].mxu0
    %3101 = vmatprep.mubr.f32.mxu0 0.0
    %3102 = vmatmul.mubr.f32.gmra.mrb[0].mxu0 %v2960
    %v3103 = vpop.f32.mrb[0].mxu0
    %v3104 = vadd.f32 0.0, %v3103
    %v3105 = vpop.f32.mrb[0].mxu0
    %3106 = vmatprep.mubr.f32.mxu0 0.0
    %3107 = vmatmul.mubr.f32.gmra.mrb[0].mxu0 %v2961
    %v3108 = vpop.f32.mrb[0].mxu0
    %v3109 = vadd.f32 0.0, %v3108
    %v3110 = vpop.f32.mrb[0].mxu0
    %3111 = vmatprep.mubr.f32.mxu0 0.0
    %3112 = vmatmul.mubr.f32.gmra.mrb[0].mxu0 %v2962
    %v3113 = vpop.f32.mrb[0].mxu0
    %v3114 = vadd.f32 0.0, %v3113
    %v3115 = vpop.f32.mrb[0].mxu0
    %3116 = vmatprep.mubr.f32.mxu0 0.0
    %3117 = vmatmul.mubr.f32.gmra.mrb[0].mxu0 %v2963
    %v3118 = vpop.f32.mrb[0].mxu0
    %v3119 = vadd.f32 0.0, %v3118
    %v3120 = vpop.f32.mrb[0].mxu0
    %3121 = vmatprep.mubr.f32.mxu0 0.0
    %3122 = vmatmul.mubr.f32.gmra.mrb[0].mxu0 %v2964
    %v3123 = vpop.f32.mrb[0].mxu0
    %v3124 = vadd.f32 0.0, %v3123
    %v3125 = vpop.f32.mrb[0].mxu0
    %3126 = vdwg.mxu0
    %v3127 = vld [vmem:[#allocation5] sm:$0xff]
    %v3128 = vld [vmem:[#allocation5 + $0x8] sm:$0xff]
    %v3129 = vld [vmem:[#allocation5 + $0x10] sm:$0xff]
    %v3130 = vld [vmem:[#allocation5 + $0x18] sm:$0xff]
    %v3131 = vld [vmem:[#allocation5 + $0x20] sm:$0xff]
    %v3132 = vld [vmem:[#allocation5 + $0x28] sm:$0xff]
    %v3133 = vld [vmem:[#allocation5 + $0x30] sm:$0xff]
    %v3134 = vld [vmem:[#allocation5 + $0x38] sm:$0xff]
    %v3135 = vld [vmem:[#allocation5 + $0x40] sm:$0xff]
    %v3136 = vld [vmem:[#allocation5 + $0x48] sm:$0xff]
    %v3137 = vld [vmem:[#allocation5 + $0x50] sm:$0xff]
    %v3138 = vld [vmem:[#allocation5 + $0x58] sm:$0xff]
    %v3139 = vld [vmem:[#allocation5 + $0x60] sm:$0xff]
    %v3140 = vld [vmem:[#allocation5 + $0x68] sm:$0xff]
    %v3141 = vld [vmem:[#allocation5 + $0x70] sm:$0xff]
    %v3142 = vld [vmem:[#allocation5 + $0x78] sm:$0xff]
    %v3143 = vadd.f32 %v3127, %v3049
    %v3144 = vadd.f32 %v3128, %v3054
    %v3145 = vadd.f32 %v3129, %v3059
    %v3146 = vadd.f32 %v3130, %v3064
    %v3147 = vadd.f32 %v3131, %v3069
    %v3148 = vadd.f32 %v3132, %v3074
    %v3149 = vadd.f32 %v3133, %v3079
    %v3150 = vadd.f32 %v3134, %v3084
    %v3151 = vadd.f32 %v3135, %v3089
    %v3152 = vadd.f32 %v3136, %v3094
    %v3153 = vadd.f32 %v3137, %v3099
    %v3154 = vadd.f32 %v3138, %v3104
    %v3155 = vadd.f32 %v3139, %v3109
    %v3156 = vadd.f32 %v3140, %v3114
    %v3157 = vadd.f32 %v3141, %v3119
    %v3158 = vadd.f32 %v3142, %v3124
    %3159 = vst [vmem:[#allocation5] sm:$0xff] %v3143
    %3160 = vst [vmem:[#allocation5 + $0x8] sm:$0xff] %v3144
    %3161 = vst [vmem:[#allocation5 + $0x10] sm:$0xff] %v3145
    %3162 = vst [vmem:[#allocation5 + $0x18] sm:$0xff] %v3146
    %3163 = vst [vmem:[#allocation5 + $0x20] sm:$0xff] %v3147
    %3164 = vst [vmem:[#allocation5 + $0x28] sm:$0xff] %v3148
    %3165 = vst [vmem:[#allocation5 + $0x30] sm:$0xff] %v3149
    %3166 = vst [vmem:[#allocation5 + $0x38] sm:$0xff] %v3150
    %3167 = vst [vmem:[#allocation5 + $0x40] sm:$0xff] %v3151
    %3168 = vst [vmem:[#allocation5 + $0x48] sm:$0xff] %v3152
    %3169 = vst [vmem:[#allocation5 + $0x50] sm:$0xff] %v3153
    %3170 = vst [vmem:[#allocation5 + $0x58] sm:$0xff] %v3154
    %3171 = vst [vmem:[#allocation5 + $0x60] sm:$0xff] %v3155
    %3172 = vst [vmem:[#allocation5 + $0x68] sm:$0xff] %v3156
    %3173 = vst [vmem:[#allocation5 + $0x70] sm:$0xff] %v3157
    %3174 = vst [vmem:[#allocation5 + $0x78] sm:$0xff] %v3158
    %v3175 = vld [vmem:[#allocation3 + $0x2] sm:$0xff]
    %v3176 = vld [vmem:[#allocation3 + $0x12] sm:$0xff]
    %v3177 = vld [vmem:[#allocation3 + $0x22] sm:$0xff]
    %v3178 = vld [vmem:[#allocation3 + $0x32] sm:$0xff]
    %v3179 = vld [vmem:[#allocation3 + $0x42] sm:$0xff]
    %v3180 = vld [vmem:[#allocation3 + $0x52] sm:$0xff]
    %v3181 = vld [vmem:[#allocation3 + $0x62] sm:$0xff]
    %v3182 = vld [vmem:[#allocation3 + $0x72] sm:$0xff]
    %v3183 = vld [vmem:[#allocation3 + $0xa2] sm:$0xff]
    %v3184 = vld [vmem:[#allocation3 + $0xb2] sm:$0xff]
    %v3185 = vld [vmem:[#allocation3 + $0xc2] sm:$0xff]
    %v3186 = vld [vmem:[#allocation3 + $0xd2] sm:$0xff]
    %v3187 = vld [vmem:[#allocation3 + $0xe2] sm:$0xff]
    %v3188 = vld [vmem:[#allocation3 + $0xf2] sm:$0xff]
    %v3189 = vld [vmem:[#allocation3 + $0x102] sm:$0xff]
    %v3190 = vld [vmem:[#allocation3 + $0x112] sm:$0xff]
    %s3191 = scalar_lea.vmem [#allocation6], 256
    %v3192 = vld [vmem:[%s3191] sm:$0xff]
    %v3193 = vld [vmem:[%s3191 + $0x8] sm:$0xff]
    %v3194 = vld [vmem:[%s3191 + $0x10] sm:$0xff]
    %v3195 = vld [vmem:[%s3191 + $0x18] sm:$0xff]
    %v3196 = vld [vmem:[%s3191 + $0x20] sm:$0xff]
    %v3197 = vld [vmem:[%s3191 + $0x28] sm:$0xff]
    %v3198 = vld [vmem:[%s3191 + $0x30] sm:$0xff]
    %v3199 = vld [vmem:[%s3191 + $0x38] sm:$0xff]
    %v3200 = vld [vmem:[%s3191 + $0x40] sm:$0xff]
    %v3201 = vld [vmem:[%s3191 + $0x48] sm:$0xff]
    %v3202 = vld [vmem:[%s3191 + $0x50] sm:$0xff]
    %v3203 = vld [vmem:[%s3191 + $0x58] sm:$0xff]
    %v3204 = vld [vmem:[%s3191 + $0x60] sm:$0xff]
    %v3205 = vld [vmem:[%s3191 + $0x68] sm:$0xff]
    %v3206 = vld [vmem:[%s3191 + $0x70] sm:$0xff]
    %v3207 = vld [vmem:[%s3191 + $0x78] sm:$0xff]
    %3208 = vmatprep.subr.mxu0 0.0
    %3209 = vmatpush1.msra.mxu0 %v3192
    %3210 = vmatprep.subr.mxu0 0.0
    %3211 = vmatpush1.msra.mxu0 %v3193
    %3212 = vmatprep.subr.mxu0 0.0
    %3213 = vmatpush1.msra.mxu0 %v3194
    %3214 = vmatprep.subr.mxu0 0.0
    %3215 = vmatpush1.msra.mxu0 %v3195
    %3216 = vmatprep.subr.mxu0 0.0
    %3217 = vmatpush1.msra.mxu0 %v3196
    %3218 = vmatprep.subr.mxu0 0.0
    %3219 = vmatpush1.msra.mxu0 %v3197
    %3220 = vmatprep.subr.mxu0 0.0
    %3221 = vmatpush1.msra.mxu0 %v3198
    %3222 = vmatprep.subr.mxu0 0.0
    %3223 = vmatpush1.msra.mxu0 %v3199
    %3224 = vmatprep.subr.mxu0 0.0
    %3225 = vmatpush1.msra.mxu0 %v3200
    %3226 = vmatprep.subr.mxu0 0.0
    %3227 = vmatpush1.msra.mxu0 %v3201
    %3228 = vmatprep.subr.mxu0 0.0
    %3229 = vmatpush1.msra.mxu0 %v3202
    %3230 = vmatprep.subr.mxu0 0.0
    %3231 = vmatpush1.msra.mxu0 %v3203
    %3232 = vmatprep.subr.mxu0 0.0
    %3233 = vmatpush1.msra.mxu0 %v3204
    %3234 = vmatprep.subr.mxu0 0.0
    %3235 = vmatpush1.msra.mxu0 %v3205
    %3236 = vmatprep.subr.mxu0 0.0
    %3237 = vmatpush1.msra.mxu0 %v3206
    %3238 = vmatprep.subr.mxu0 0.0
    %3239 = vmatpush1.msra.mxu0 %v3207
    %3240 = vmatprep.subr.mxu0 0.0
    %3241 = vmatpush1.msra.mxu0 0.0
    %3242 = vmatprep.subr.mxu0 0.0
    %3243 = vmatpush1.msra.mxu0 0.0
    %3244 = vmatprep.subr.mxu0 0.0
    %3245 = vmatpush1.msra.mxu0 0.0
    %3246 = vmatprep.subr.mxu0 0.0
    %3247 = vmatpush1.msra.mxu0 0.0
    %3248 = vmatprep.subr.mxu0 0.0
    %3249 = vmatpush1.msra.mxu0 0.0
    %3250 = vmatprep.subr.mxu0 0.0
    %3251 = vmatpush1.msra.mxu0 0.0
    %3252 = vmatprep.subr.mxu0 0.0
    %3253 = vmatpush1.msra.mxu0 0.0
    %3254 = vmatprep.subr.mxu0 0.0
    %3255 = vmatpush1.msra.mxu0 0.0
    %3256 = vmatprep.subr.mxu0 0.0
    %3257 = vmatpush1.msra.mxu0 0.0
    %3258 = vmatprep.subr.mxu0 0.0
    %3259 = vmatpush1.msra.mxu0 0.0
    %3260 = vmatprep.subr.mxu0 0.0
    %3261 = vmatpush1.msra.mxu0 0.0
    %3262 = vmatprep.subr.mxu0 0.0
    %3263 = vmatpush1.msra.mxu0 0.0
    %3264 = vmatprep.subr.mxu0 0.0
    %3265 = vmatpush1.msra.mxu0 0.0
    %3266 = vmatprep.subr.mxu0 0.0
    %3267 = vmatpush1.msra.mxu0 0.0
    %3268 = vmatprep.subr.mxu0 0.0
    %3269 = vmatpush1.msra.mxu0 0.0
    %3270 = vmatprep.subr.mxu0 0.0
    %3271 = vmatpush1.msra.mxu0 0.0
    %3272 = vmatprep.mubr.f32.mxu0 0.0
    %3273 = vmatmul.mubr.f32.gmra.mrb[0].mxu0 %v3175
    %v3274 = vpop.f32.mrb[0].mxu0
    %v3275 = vadd.f32 0.0, %v3274
    %v3276 = vpop.f32.mrb[0].mxu0
    %3277 = vmatprep.mubr.f32.mxu0 0.0
    %3278 = vmatmul.mubr.f32.gmra.mrb[0].mxu0 %v3176
    %v3279 = vpop.f32.mrb[0].mxu0
    %v3280 = vadd.f32 0.0, %v3279
    %v3281 = vpop.f32.mrb[0].mxu0
    %3282 = vmatprep.mubr.f32.mxu0 0.0
    %3283 = vmatmul.mubr.f32.gmra.mrb[0].mxu0 %v3177
    %v3284 = vpop.f32.mrb[0].mxu0
    %v3285 = vadd.f32 0.0, %v3284
    %v3286 = vpop.f32.mrb[0].mxu0
    %3287 = vmatprep.mubr.f32.mxu0 0.0
    %3288 = vmatmul.mubr.f32.gmra.mrb[0].mxu0 %v3178
    %v3289 = vpop.f32.mrb[0].mxu0
    %v3290 = vadd.f32 0.0, %v3289
    %v3291 = vpop.f32.mrb[0].mxu0
    %3292 = vmatprep.mubr.f32.mxu0 0.0
    %3293 = vmatmul.mubr.f32.gmra.mrb[0].mxu0 %v3179
    %v3294 = vpop.f32.mrb[0].mxu0
    %v3295 = vadd.f32 0.0, %v3294
    %v3296 = vpop.f32.mrb[0].mxu0
    %3297 = vmatprep.mubr.f32.mxu0 0.0
    %3298 = vmatmul.mubr.f32.gmra.mrb[0].mxu0 %v3180
    %v3299 = vpop.f32.mrb[0].mxu0
    %v3300 = vadd.f32 0.0, %v3299
    %v3301 = vpop.f32.mrb[0].mxu0
    %3302 = vmatprep.mubr.f32.mxu0 0.0
    %3303 = vmatmul.mubr.f32.gmra.mrb[0].mxu0 %v3181
    %v3304 = vpop.f32.mrb[0].mxu0
    %v3305 = vadd.f32 0.0, %v3304
    %v3306 = vpop.f32.mrb[0].mxu0
    %3307 = vmatprep.mubr.f32.mxu0 0.0
    %3308 = vmatmul.mubr.f32.gmra.mrb[0].mxu0 %v3182
    %v3309 = vpop.f32.mrb[0].mxu0
    %v3310 = vadd.f32 0.0, %v3309
    %v3311 = vpop.f32.mrb[0].mxu0
    %3312 = vmatprep.mubr.f32.mxu0 0.0
    %3313 = vmatmul.mubr.f32.gmra.mrb[0].mxu0 %v3183
    %v3314 = vpop.f32.mrb[0].mxu0
    %v3315 = vadd.f32 0.0, %v3314
    %v3316 = vpop.f32.mrb[0].mxu0
    %3317 = vmatprep.mubr.f32.mxu0 0.0
    %3318 = vmatmul.mubr.f32.gmra.mrb[0].mxu0 %v3184
    %v3319 = vpop.f32.mrb[0].mxu0
    %v3320 = vadd.f32 0.0, %v3319
    %v3321 = vpop.f32.mrb[0].mxu0
    %3322 = vmatprep.mubr.f32.mxu0 0.0
    %3323 = vmatmul.mubr.f32.gmra.mrb[0].mxu0 %v3185
    %v3324 = vpop.f32.mrb[0].mxu0
    %v3325 = vadd.f32 0.0, %v3324
    %v3326 = vpop.f32.mrb[0].mxu0
    %3327 = vmatprep.mubr.f32.mxu0 0.0
    %3328 = vmatmul.mubr.f32.gmra.mrb[0].mxu0 %v3186
    %v3329 = vpop.f32.mrb[0].mxu0
    %v3330 = vadd.f32 0.0, %v3329
    %v3331 = vpop.f32.mrb[0].mxu0
    %3332 = vmatprep.mubr.f32.mxu0 0.0
    %3333 = vmatmul.mubr.f32.gmra.mrb[0].mxu0 %v3187
    %v3334 = vpop.f32.mrb[0].mxu0
    %v3335 = vadd.f32 0.0, %v3334
    %v3336 = vpop.f32.mrb[0].mxu0
    %3337 = vmatprep.mubr.f32.mxu0 0.0
    %3338 = vmatmul.mubr.f32.gmra.mrb[0].mxu0 %v3188
    %v3339 = vpop.f32.mrb[0].mxu0
    %v3340 = vadd.f32 0.0, %v3339
    %v3341 = vpop.f32.mrb[0].mxu0
    %3342 = vmatprep.mubr.f32.mxu0 0.0
    %3343 = vmatmul.mubr.f32.gmra.mrb[0].mxu0 %v3189
    %v3344 = vpop.f32.mrb[0].mxu0
    %v3345 = vadd.f32 0.0, %v3344
    %v3346 = vpop.f32.mrb[0].mxu0
    %3347 = vmatprep.mubr.f32.mxu0 0.0
    %3348 = vmatmul.mubr.f32.gmra.mrb[0].mxu0 %v3190
    %v3349 = vpop.f32.mrb[0].mxu0
    %v3350 = vadd.f32 0.0, %v3349
    %v3351 = vpop.f32.mrb[0].mxu0
    %3352 = vdwg.mxu0
    %v3353 = vld [vmem:[#allocation5] sm:$0xff]
    %v3354 = vld [vmem:[#allocation5 + $0x8] sm:$0xff]
    %v3355 = vld [vmem:[#allocation5 + $0x10] sm:$0xff]
    %v3356 = vld [vmem:[#allocation5 + $0x18] sm:$0xff]
    %v3357 = vld [vmem:[#allocation5 + $0x20] sm:$0xff]
    %v3358 = vld [vmem:[#allocation5 + $0x28] sm:$0xff]
    %v3359 = vld [vmem:[#allocation5 + $0x30] sm:$0xff]
    %v3360 = vld [vmem:[#allocation5 + $0x38] sm:$0xff]
    %v3361 = vld [vmem:[#allocation5 + $0x40] sm:$0xff]
    %v3362 = vld [vmem:[#allocation5 + $0x48] sm:$0xff]
    %v3363 = vld [vmem:[#allocation5 + $0x50] sm:$0xff]
    %v3364 = vld [vmem:[#allocation5 + $0x58] sm:$0xff]
    %v3365 = vld [vmem:[#allocation5 + $0x60] sm:$0xff]
    %v3366 = vld [vmem:[#allocation5 + $0x68] sm:$0xff]
    %v3367 = vld [vmem:[#allocation5 + $0x70] sm:$0xff]
    %v3368 = vld [vmem:[#allocation5 + $0x78] sm:$0xff]
    %v3369 = vadd.f32 %v3353, %v3275
    %v3370 = vadd.f32 %v3354, %v3280
    %v3371 = vadd.f32 %v3355, %v3285
    %v3372 = vadd.f32 %v3356, %v3290
    %v3373 = vadd.f32 %v3357, %v3295
    %v3374 = vadd.f32 %v3358, %v3300
    %v3375 = vadd.f32 %v3359, %v3305
    %v3376 = vadd.f32 %v3360, %v3310
    %v3377 = vadd.f32 %v3361, %v3315
    %v3378 = vadd.f32 %v3362, %v3320
    %v3379 = vadd.f32 %v3363, %v3325
    %v3380 = vadd.f32 %v3364, %v3330
    %v3381 = vadd.f32 %v3365, %v3335
    %v3382 = vadd.f32 %v3366, %v3340
    %v3383 = vadd.f32 %v3367, %v3345
    %v3384 = vadd.f32 %v3368, %v3350
    %3385 = vst [vmem:[#allocation5] sm:$0xff] %v3369
    %3386 = vst [vmem:[#allocation5 + $0x8] sm:$0xff] %v3370
    %3387 = vst [vmem:[#allocation5 + $0x10] sm:$0xff] %v3371
    %3388 = vst [vmem:[#allocation5 + $0x18] sm:$0xff] %v3372
    %3389 = vst [vmem:[#allocation5 + $0x20] sm:$0xff] %v3373
    %3390 = vst [vmem:[#allocation5 + $0x28] sm:$0xff] %v3374
    %3391 = vst [vmem:[#allocation5 + $0x30] sm:$0xff] %v3375
    %3392 = vst [vmem:[#allocation5 + $0x38] sm:$0xff] %v3376
    %3393 = vst [vmem:[#allocation5 + $0x40] sm:$0xff] %v3377
    %3394 = vst [vmem:[#allocation5 + $0x48] sm:$0xff] %v3378
    %3395 = vst [vmem:[#allocation5 + $0x50] sm:$0xff] %v3379
    %3396 = vst [vmem:[#allocation5 + $0x58] sm:$0xff] %v3380
    %3397 = vst [vmem:[#allocation5 + $0x60] sm:$0xff] %v3381
    %3398 = vst [vmem:[#allocation5 + $0x68] sm:$0xff] %v3382
    %3399 = vst [vmem:[#allocation5 + $0x70] sm:$0xff] %v3383
    %3400 = vst [vmem:[#allocation5 + $0x78] sm:$0xff] %v3384
    %v3401 = vld [vmem:[%s2739] sm:$0xff]
    %v3402 = vld [vmem:[%s2739 + $0x10] sm:$0xff]
    %v3403 = vld [vmem:[%s2739 + $0x20] sm:$0xff]
    %v3404 = vld [vmem:[%s2739 + $0x30] sm:$0xff]
    %v3405 = vld [vmem:[%s2739 + $0x40] sm:$0xff]
    %v3406 = vld [vmem:[%s2739 + $0x50] sm:$0xff]
    %v3407 = vld [vmem:[%s2739 + $0x60] sm:$0xff]
    %v3408 = vld [vmem:[%s2739 + $0x70] sm:$0xff]
    %v3409 = vld [vmem:[%s2739 + $0xa0] sm:$0xff]
    %v3410 = vld [vmem:[%s2739 + $0xb0] sm:$0xff]
    %v3411 = vld [vmem:[%s2739 + $0xc0] sm:$0xff]
    %v3412 = vld [vmem:[%s2739 + $0xd0] sm:$0xff]
    %v3413 = vld [vmem:[%s2739 + $0xe0] sm:$0xff]
    %v3414 = vld [vmem:[%s2739 + $0xf0] sm:$0xff]
    %v3415 = vld [vmem:[%s2739 + $0x100] sm:$0xff]
    %v3416 = vld [vmem:[%s2739 + $0x110] sm:$0xff]
    %s3417 = scalar_lea.vmem [#allocation6], 384
    %v3418 = vld [vmem:[%s3417] sm:$0xff]
    %v3419 = vld [vmem:[%s3417 + $0x8] sm:$0xff]
    %v3420 = vld [vmem:[%s3417 + $0x10] sm:$0xff]
    %v3421 = vld [vmem:[%s3417 + $0x18] sm:$0xff]
    %v3422 = vld [vmem:[%s3417 + $0x20] sm:$0xff]
    %v3423 = vld [vmem:[%s3417 + $0x28] sm:$0xff]
    %v3424 = vld [vmem:[%s3417 + $0x30] sm:$0xff]
    %v3425 = vld [vmem:[%s3417 + $0x38] sm:$0xff]
    %v3426 = vld [vmem:[%s3417 + $0x40] sm:$0xff]
    %v3427 = vld [vmem:[%s3417 + $0x48] sm:$0xff]
    %v3428 = vld [vmem:[%s3417 + $0x50] sm:$0xff]
    %v3429 = vld [vmem:[%s3417 + $0x58] sm:$0xff]
    %v3430 = vld [vmem:[%s3417 + $0x60] sm:$0xff]
    %v3431 = vld [vmem:[%s3417 + $0x68] sm:$0xff]
    %v3432 = vld [vmem:[%s3417 + $0x70] sm:$0xff]
    %v3433 = vld [vmem:[%s3417 + $0x78] sm:$0xff]
    %3434 = vmatprep.subr.mxu0 0.0
    %3435 = vmatpush1.msra.mxu0 %v3418
    %3436 = vmatprep.subr.mxu0 0.0
    %3437 = vmatpush1.msra.mxu0 %v3419
    %3438 = vmatprep.subr.mxu0 0.0
    %3439 = vmatpush1.msra.mxu0 %v3420
    %3440 = vmatprep.subr.mxu0 0.0
    %3441 = vmatpush1.msra.mxu0 %v3421
    %3442 = vmatprep.subr.mxu0 0.0
    %3443 = vmatpush1.msra.mxu0 %v3422
    %3444 = vmatprep.subr.mxu0 0.0
    %3445 = vmatpush1.msra.mxu0 %v3423
    %3446 = vmatprep.subr.mxu0 0.0
    %3447 = vmatpush1.msra.mxu0 %v3424
    %3448 = vmatprep.subr.mxu0 0.0
    %3449 = vmatpush1.msra.mxu0 %v3425
    %3450 = vmatprep.subr.mxu0 0.0
    %3451 = vmatpush1.msra.mxu0 %v3426
    %3452 = vmatprep.subr.mxu0 0.0
    %3453 = vmatpush1.msra.mxu0 %v3427
    %3454 = vmatprep.subr.mxu0 0.0
    %3455 = vmatpush1.msra.mxu0 %v3428
    %3456 = vmatprep.subr.mxu0 0.0
    %3457 = vmatpush1.msra.mxu0 %v3429
    %3458 = vmatprep.subr.mxu0 0.0
    %3459 = vmatpush1.msra.mxu0 %v3430
    %3460 = vmatprep.subr.mxu0 0.0
    %3461 = vmatpush1.msra.mxu0 %v3431
    %3462 = vmatprep.subr.mxu0 0.0
    %3463 = vmatpush1.msra.mxu0 %v3432
    %3464 = vmatprep.subr.mxu0 0.0
    %3465 = vmatpush1.msra.mxu0 %v3433
    %3466 = vmatprep.subr.mxu0 0.0
    %3467 = vmatpush1.msra.mxu0 0.0
    %3468 = vmatprep.subr.mxu0 0.0
    %3469 = vmatpush1.msra.mxu0 0.0
    %3470 = vmatprep.subr.mxu0 0.0
    %3471 = vmatpush1.msra.mxu0 0.0
    %3472 = vmatprep.subr.mxu0 0.0
    %3473 = vmatpush1.msra.mxu0 0.0
    %3474 = vmatprep.subr.mxu0 0.0
    %3475 = vmatpush1.msra.mxu0 0.0
    %3476 = vmatprep.subr.mxu0 0.0
    %3477 = vmatpush1.msra.mxu0 0.0
    %3478 = vmatprep.subr.mxu0 0.0
    %3479 = vmatpush1.msra.mxu0 0.0
    %3480 = vmatprep.subr.mxu0 0.0
    %3481 = vmatpush1.msra.mxu0 0.0
    %3482 = vmatprep.subr.mxu0 0.0
    %3483 = vmatpush1.msra.mxu0 0.0
    %3484 = vmatprep.subr.mxu0 0.0
    %3485 = vmatpush1.msra.mxu0 0.0
    %3486 = vmatprep.subr.mxu0 0.0
    %3487 = vmatpush1.msra.mxu0 0.0
    %3488 = vmatprep.subr.mxu0 0.0
    %3489 = vmatpush1.msra.mxu0 0.0
    %3490 = vmatprep.subr.mxu0 0.0
    %3491 = vmatpush1.msra.mxu0 0.0
    %3492 = vmatprep.subr.mxu0 0.0
    %3493 = vmatpush1.msra.mxu0 0.0
    %3494 = vmatprep.subr.mxu0 0.0
    %3495 = vmatpush1.msra.mxu0 0.0
    %3496 = vmatprep.subr.mxu0 0.0
    %3497 = vmatpush1.msra.mxu0 0.0
    %3498 = vmatprep.mubr.f32.mxu0 0.0
    %3499 = vmatmul.mubr.f32.gmra.mrb[0].mxu0 %v3401
    %v3500 = vpop.f32.mrb[0].mxu0
    %v3501 = vadd.f32 0.0, %v3500
    %v3502 = vpop.f32.mrb[0].mxu0
    %3503 = vmatprep.mubr.f32.mxu0 0.0
    %3504 = vmatmul.mubr.f32.gmra.mrb[0].mxu0 %v3402
    %v3505 = vpop.f32.mrb[0].mxu0
    %v3506 = vadd.f32 0.0, %v3505
    %v3507 = vpop.f32.mrb[0].mxu0
    %3508 = vmatprep.mubr.f32.mxu0 0.0
    %3509 = vmatmul.mubr.f32.gmra.mrb[0].mxu0 %v3403
    %v3510 = vpop.f32.mrb[0].mxu0
    %v3511 = vadd.f32 0.0, %v3510
    %v3512 = vpop.f32.mrb[0].mxu0
    %3513 = vmatprep.mubr.f32.mxu0 0.0
    %3514 = vmatmul.mubr.f32.gmra.mrb[0].mxu0 %v3404
    %v3515 = vpop.f32.mrb[0].mxu0
    %v3516 = vadd.f32 0.0, %v3515
    %v3517 = vpop.f32.mrb[0].mxu0
    %3518 = vmatprep.mubr.f32.mxu0 0.0
    %3519 = vmatmul.mubr.f32.gmra.mrb[0].mxu0 %v3405
    %v3520 = vpop.f32.mrb[0].mxu0
    %v3521 = vadd.f32 0.0, %v3520
    %v3522 = vpop.f32.mrb[0].mxu0
    %3523 = vmatprep.mubr.f32.mxu0 0.0
    %3524 = vmatmul.mubr.f32.gmra.mrb[0].mxu0 %v3406
    %v3525 = vpop.f32.mrb[0].mxu0
    %v3526 = vadd.f32 0.0, %v3525
    %v3527 = vpop.f32.mrb[0].mxu0
    %3528 = vmatprep.mubr.f32.mxu0 0.0
    %3529 = vmatmul.mubr.f32.gmra.mrb[0].mxu0 %v3407
    %v3530 = vpop.f32.mrb[0].mxu0
    %v3531 = vadd.f32 0.0, %v3530
    %v3532 = vpop.f32.mrb[0].mxu0
    %3533 = vmatprep.mubr.f32.mxu0 0.0
    %3534 = vmatmul.mubr.f32.gmra.mrb[0].mxu0 %v3408
    %v3535 = vpop.f32.mrb[0].mxu0
    %v3536 = vadd.f32 0.0, %v3535
    %v3537 = vpop.f32.mrb[0].mxu0
    %3538 = vmatprep.mubr.f32.mxu0 0.0
    %3539 = vmatmul.mubr.f32.gmra.mrb[0].mxu0 %v3409
    %v3540 = vpop.f32.mrb[0].mxu0
    %v3541 = vadd.f32 0.0, %v3540
    %v3542 = vpop.f32.mrb[0].mxu0
    %3543 = vmatprep.mubr.f32.mxu0 0.0
    %3544 = vmatmul.mubr.f32.gmra.mrb[0].mxu0 %v3410
    %v3545 = vpop.f32.mrb[0].mxu0
    %v3546 = vadd.f32 0.0, %v3545
    %v3547 = vpop.f32.mrb[0].mxu0
    %3548 = vmatprep.mubr.f32.mxu0 0.0
    %3549 = vmatmul.mubr.f32.gmra.mrb[0].mxu0 %v3411
    %v3550 = vpop.f32.mrb[0].mxu0
    %v3551 = vadd.f32 0.0, %v3550
    %v3552 = vpop.f32.mrb[0].mxu0
    %3553 = vmatprep.mubr.f32.mxu0 0.0
    %3554 = vmatmul.mubr.f32.gmra.mrb[0].mxu0 %v3412
    %v3555 = vpop.f32.mrb[0].mxu0
    %v3556 = vadd.f32 0.0, %v3555
    %v3557 = vpop.f32.mrb[0].mxu0
    %3558 = vmatprep.mubr.f32.mxu0 0.0
    %3559 = vmatmul.mubr.f32.gmra.mrb[0].mxu0 %v3413
    %v3560 = vpop.f32.mrb[0].mxu0
    %v3561 = vadd.f32 0.0, %v3560
    %v3562 = vpop.f32.mrb[0].mxu0
    %3563 = vmatprep.mubr.f32.mxu0 0.0
    %3564 = vmatmul.mubr.f32.gmra.mrb[0].mxu0 %v3414
    %v3565 = vpop.f32.mrb[0].mxu0
    %v3566 = vadd.f32 0.0, %v3565
    %v3567 = vpop.f32.mrb[0].mxu0
    %3568 = vmatprep.mubr.f32.mxu0 0.0
    %3569 = vmatmul.mubr.f32.gmra.mrb[0].mxu0 %v3415
    %v3570 = vpop.f32.mrb[0].mxu0
    %v3571 = vadd.f32 0.0, %v3570
    %v3572 = vpop.f32.mrb[0].mxu0
    %3573 = vmatprep.mubr.f32.mxu0 0.0
    %3574 = vmatmul.mubr.f32.gmra.mrb[0].mxu0 %v3416
    %v3575 = vpop.f32.mrb[0].mxu0
    %v3576 = vadd.f32 0.0, %v3575
    %v3577 = vpop.f32.mrb[0].mxu0
    %3578 = vdwg.mxu0
    %v3579 = vld [vmem:[#allocation5] sm:$0xff]
    %v3580 = vld [vmem:[#allocation5 + $0x8] sm:$0xff]
    %v3581 = vld [vmem:[#allocation5 + $0x10] sm:$0xff]
    %v3582 = vld [vmem:[#allocation5 + $0x18] sm:$0xff]
    %v3583 = vld [vmem:[#allocation5 + $0x20] sm:$0xff]
    %v3584 = vld [vmem:[#allocation5 + $0x28] sm:$0xff]
    %v3585 = vld [vmem:[#allocation5 + $0x30] sm:$0xff]
    %v3586 = vld [vmem:[#allocation5 + $0x38] sm:$0xff]
    %v3587 = vld [vmem:[#allocation5 + $0x40] sm:$0xff]
    %v3588 = vld [vmem:[#allocation5 + $0x48] sm:$0xff]
    %v3589 = vld [vmem:[#allocation5 + $0x50] sm:$0xff]
    %v3590 = vld [vmem:[#allocation5 + $0x58] sm:$0xff]
    %v3591 = vld [vmem:[#allocation5 + $0x60] sm:$0xff]
    %v3592 = vld [vmem:[#allocation5 + $0x68] sm:$0xff]
    %v3593 = vld [vmem:[#allocation5 + $0x70] sm:$0xff]
    %v3594 = vld [vmem:[#allocation5 + $0x78] sm:$0xff]
    %v3595 = vadd.f32 %v3579, %v3501
    %v3596 = vadd.f32 %v3580, %v3506
    %v3597 = vadd.f32 %v3581, %v3511
    %v3598 = vadd.f32 %v3582, %v3516
    %v3599 = vadd.f32 %v3583, %v3521
    %v3600 = vadd.f32 %v3584, %v3526
    %v3601 = vadd.f32 %v3585, %v3531
    %v3602 = vadd.f32 %v3586, %v3536
    %v3603 = vadd.f32 %v3587, %v3541
    %v3604 = vadd.f32 %v3588, %v3546
    %v3605 = vadd.f32 %v3589, %v3551
    %v3606 = vadd.f32 %v3590, %v3556
    %v3607 = vadd.f32 %v3591, %v3561
    %v3608 = vadd.f32 %v3592, %v3566
    %v3609 = vadd.f32 %v3593, %v3571
    %v3610 = vadd.f32 %v3594, %v3576
    %3611 = vst [vmem:[#allocation5] sm:$0xff] %v3595
    %3612 = vst [vmem:[#allocation5 + $0x8] sm:$0xff] %v3596
    %3613 = vst [vmem:[#allocation5 + $0x10] sm:$0xff] %v3597
    %3614 = vst [vmem:[#allocation5 + $0x18] sm:$0xff] %v3598
    %3615 = vst [vmem:[#allocation5 + $0x20] sm:$0xff] %v3599
    %3616 = vst [vmem:[#allocation5 + $0x28] sm:$0xff] %v3600
    %3617 = vst [vmem:[#allocation5 + $0x30] sm:$0xff] %v3601
    %3618 = vst [vmem:[#allocation5 + $0x38] sm:$0xff] %v3602
    %3619 = vst [vmem:[#allocation5 + $0x40] sm:$0xff] %v3603
    %3620 = vst [vmem:[#allocation5 + $0x48] sm:$0xff] %v3604
    %3621 = vst [vmem:[#allocation5 + $0x50] sm:$0xff] %v3605
    %3622 = vst [vmem:[#allocation5 + $0x58] sm:$0xff] %v3606
    %3623 = vst [vmem:[#allocation5 + $0x60] sm:$0xff] %v3607
    %3624 = vst [vmem:[#allocation5 + $0x68] sm:$0xff] %v3608
    %3625 = vst [vmem:[#allocation5 + $0x70] sm:$0xff] %v3609
    %3626 = vst [vmem:[#allocation5 + $0x78] sm:$0xff] %v3610
    %v3627 = vld [vmem:[%s2739 + $0x1] sm:$0xff]
    %v3628 = vld [vmem:[%s2739 + $0x11] sm:$0xff]
    %v3629 = vld [vmem:[%s2739 + $0x21] sm:$0xff]
    %v3630 = vld [vmem:[%s2739 + $0x31] sm:$0xff]
    %v3631 = vld [vmem:[%s2739 + $0x41] sm:$0xff]
    %v3632 = vld [vmem:[%s2739 + $0x51] sm:$0xff]
    %v3633 = vld [vmem:[%s2739 + $0x61] sm:$0xff]
    %v3634 = vld [vmem:[%s2739 + $0x71] sm:$0xff]
    %v3635 = vld [vmem:[%s2739 + $0xa1] sm:$0xff]
    %v3636 = vld [vmem:[%s2739 + $0xb1] sm:$0xff]
    %v3637 = vld [vmem:[%s2739 + $0xc1] sm:$0xff]
    %v3638 = vld [vmem:[%s2739 + $0xd1] sm:$0xff]
    %v3639 = vld [vmem:[%s2739 + $0xe1] sm:$0xff]
    %v3640 = vld [vmem:[%s2739 + $0xf1] sm:$0xff]
    %v3641 = vld [vmem:[%s2739 + $0x101] sm:$0xff]
    %v3642 = vld [vmem:[%s2739 + $0x111] sm:$0xff]
    %s3643 = scalar_lea.vmem [#allocation6], 512
    %v3644 = vld [vmem:[%s3643] sm:$0xff]
    %v3645 = vld [vmem:[%s3643 + $0x8] sm:$0xff]
    %v3646 = vld [vmem:[%s3643 + $0x10] sm:$0xff]
    %v3647 = vld [vmem:[%s3643 + $0x18] sm:$0xff]
    %v3648 = vld [vmem:[%s3643 + $0x20] sm:$0xff]
    %v3649 = vld [vmem:[%s3643 + $0x28] sm:$0xff]
    %v3650 = vld [vmem:[%s3643 + $0x30] sm:$0xff]
    %v3651 = vld [vmem:[%s3643 + $0x38] sm:$0xff]
    %v3652 = vld [vmem:[%s3643 + $0x40] sm:$0xff]
    %v3653 = vld [vmem:[%s3643 + $0x48] sm:$0xff]
    %v3654 = vld [vmem:[%s3643 + $0x50] sm:$0xff]
    %v3655 = vld [vmem:[%s3643 + $0x58] sm:$0xff]
    %v3656 = vld [vmem:[%s3643 + $0x60] sm:$0xff]
    %v3657 = vld [vmem:[%s3643 + $0x68] sm:$0xff]
    %v3658 = vld [vmem:[%s3643 + $0x70] sm:$0xff]
    %v3659 = vld [vmem:[%s3643 + $0x78] sm:$0xff]
    %3660 = vmatprep.subr.mxu0 0.0
    %3661 = vmatpush1.msra.mxu0 %v3644
    %3662 = vmatprep.subr.mxu0 0.0
    %3663 = vmatpush1.msra.mxu0 %v3645
    %3664 = vmatprep.subr.mxu0 0.0
    %3665 = vmatpush1.msra.mxu0 %v3646
    %3666 = vmatprep.subr.mxu0 0.0
    %3667 = vmatpush1.msra.mxu0 %v3647
    %3668 = vmatprep.subr.mxu0 0.0
    %3669 = vmatpush1.msra.mxu0 %v3648
    %3670 = vmatprep.subr.mxu0 0.0
    %3671 = vmatpush1.msra.mxu0 %v3649
    %3672 = vmatprep.subr.mxu0 0.0
    %3673 = vmatpush1.msra.mxu0 %v3650
    %3674 = vmatprep.subr.mxu0 0.0
    %3675 = vmatpush1.msra.mxu0 %v3651
    %3676 = vmatprep.subr.mxu0 0.0
    %3677 = vmatpush1.msra.mxu0 %v3652
    %3678 = vmatprep.subr.mxu0 0.0
    %3679 = vmatpush1.msra.mxu0 %v3653
    %3680 = vmatprep.subr.mxu0 0.0
    %3681 = vmatpush1.msra.mxu0 %v3654
    %3682 = vmatprep.subr.mxu0 0.0
    %3683 = vmatpush1.msra.mxu0 %v3655
    %3684 = vmatprep.subr.mxu0 0.0
    %3685 = vmatpush1.msra.mxu0 %v3656
    %3686 = vmatprep.subr.mxu0 0.0
    %3687 = vmatpush1.msra.mxu0 %v3657
    %3688 = vmatprep.subr.mxu0 0.0
    %3689 = vmatpush1.msra.mxu0 %v3658
    %3690 = vmatprep.subr.mxu0 0.0
    %3691 = vmatpush1.msra.mxu0 %v3659
    %3692 = vmatprep.subr.mxu0 0.0
    %3693 = vmatpush1.msra.mxu0 0.0
    %3694 = vmatprep.subr.mxu0 0.0
    %3695 = vmatpush1.msra.mxu0 0.0
    %3696 = vmatprep.subr.mxu0 0.0
    %3697 = vmatpush1.msra.mxu0 0.0
    %3698 = vmatprep.subr.mxu0 0.0
    %3699 = vmatpush1.msra.mxu0 0.0
    %3700 = vmatprep.subr.mxu0 0.0
    %3701 = vmatpush1.msra.mxu0 0.0
    %3702 = vmatprep.subr.mxu0 0.0
    %3703 = vmatpush1.msra.mxu0 0.0
    %3704 = vmatprep.subr.mxu0 0.0
    %3705 = vmatpush1.msra.mxu0 0.0
    %3706 = vmatprep.subr.mxu0 0.0
    %3707 = vmatpush1.msra.mxu0 0.0
    %3708 = vmatprep.subr.mxu0 0.0
    %3709 = vmatpush1.msra.mxu0 0.0
    %3710 = vmatprep.subr.mxu0 0.0
    %3711 = vmatpush1.msra.mxu0 0.0
    %3712 = vmatprep.subr.mxu0 0.0
    %3713 = vmatpush1.msra.mxu0 0.0
    %3714 = vmatprep.subr.mxu0 0.0
    %3715 = vmatpush1.msra.mxu0 0.0
    %3716 = vmatprep.subr.mxu0 0.0
    %3717 = vmatpush1.msra.mxu0 0.0
    %3718 = vmatprep.subr.mxu0 0.0
    %3719 = vmatpush1.msra.mxu0 0.0
    %3720 = vmatprep.subr.mxu0 0.0
    %3721 = vmatpush1.msra.mxu0 0.0
    %3722 = vmatprep.subr.mxu0 0.0
    %3723 = vmatpush1.msra.mxu0 0.0
    %3724 = vmatprep.mubr.f32.mxu0 0.0
    %3725 = vmatmul.mubr.f32.gmra.mrb[0].mxu0 %v3627
    %v3726 = vpop.f32.mrb[0].mxu0
    %v3727 = vadd.f32 0.0, %v3726
    %v3728 = vpop.f32.mrb[0].mxu0
    %3729 = vmatprep.mubr.f32.mxu0 0.0
    %3730 = vmatmul.mubr.f32.gmra.mrb[0].mxu0 %v3628
    %v3731 = vpop.f32.mrb[0].mxu0
    %v3732 = vadd.f32 0.0, %v3731
    %v3733 = vpop.f32.mrb[0].mxu0
    %3734 = vmatprep.mubr.f32.mxu0 0.0
    %3735 = vmatmul.mubr.f32.gmra.mrb[0].mxu0 %v3629
    %v3736 = vpop.f32.mrb[0].mxu0
    %v3737 = vadd.f32 0.0, %v3736
    %v3738 = vpop.f32.mrb[0].mxu0
    %3739 = vmatprep.mubr.f32.mxu0 0.0
    %3740 = vmatmul.mubr.f32.gmra.mrb[0].mxu0 %v3630
    %v3741 = vpop.f32.mrb[0].mxu0
    %v3742 = vadd.f32 0.0, %v3741
    %v3743 = vpop.f32.mrb[0].mxu0
    %3744 = vmatprep.mubr.f32.mxu0 0.0
    %3745 = vmatmul.mubr.f32.gmra.mrb[0].mxu0 %v3631
    %v3746 = vpop.f32.mrb[0].mxu0
    %v3747 = vadd.f32 0.0, %v3746
    %v3748 = vpop.f32.mrb[0].mxu0
    %3749 = vmatprep.mubr.f32.mxu0 0.0
    %3750 = vmatmul.mubr.f32.gmra.mrb[0].mxu0 %v3632
    %v3751 = vpop.f32.mrb[0].mxu0
    %v3752 = vadd.f32 0.0, %v3751
    %v3753 = vpop.f32.mrb[0].mxu0
    %3754 = vmatprep.mubr.f32.mxu0 0.0
    %3755 = vmatmul.mubr.f32.gmra.mrb[0].mxu0 %v3633
    %v3756 = vpop.f32.mrb[0].mxu0
    %v3757 = vadd.f32 0.0, %v3756
    %v3758 = vpop.f32.mrb[0].mxu0
    %3759 = vmatprep.mubr.f32.mxu0 0.0
    %3760 = vmatmul.mubr.f32.gmra.mrb[0].mxu0 %v3634
    %v3761 = vpop.f32.mrb[0].mxu0
    %v3762 = vadd.f32 0.0, %v3761
    %v3763 = vpop.f32.mrb[0].mxu0
    %3764 = vmatprep.mubr.f32.mxu0 0.0
    %3765 = vmatmul.mubr.f32.gmra.mrb[0].mxu0 %v3635
    %v3766 = vpop.f32.mrb[0].mxu0
    %v3767 = vadd.f32 0.0, %v3766
    %v3768 = vpop.f32.mrb[0].mxu0
    %3769 = vmatprep.mubr.f32.mxu0 0.0
    %3770 = vmatmul.mubr.f32.gmra.mrb[0].mxu0 %v3636
    %v3771 = vpop.f32.mrb[0].mxu0
    %v3772 = vadd.f32 0.0, %v3771
    %v3773 = vpop.f32.mrb[0].mxu0
    %3774 = vmatprep.mubr.f32.mxu0 0.0
    %3775 = vmatmul.mubr.f32.gmra.mrb[0].mxu0 %v3637
    %v3776 = vpop.f32.mrb[0].mxu0
    %v3777 = vadd.f32 0.0, %v3776
    %v3778 = vpop.f32.mrb[0].mxu0
    %3779 = vmatprep.mubr.f32.mxu0 0.0
    %3780 = vmatmul.mubr.f32.gmra.mrb[0].mxu0 %v3638
    %v3781 = vpop.f32.mrb[0].mxu0
    %v3782 = vadd.f32 0.0, %v3781
    %v3783 = vpop.f32.mrb[0].mxu0
    %3784 = vmatprep.mubr.f32.mxu0 0.0
    %3785 = vmatmul.mubr.f32.gmra.mrb[0].mxu0 %v3639
    %v3786 = vpop.f32.mrb[0].mxu0
    %v3787 = vadd.f32 0.0, %v3786
    %v3788 = vpop.f32.mrb[0].mxu0
    %3789 = vmatprep.mubr.f32.mxu0 0.0
    %3790 = vmatmul.mubr.f32.gmra.mrb[0].mxu0 %v3640
    %v3791 = vpop.f32.mrb[0].mxu0
    %v3792 = vadd.f32 0.0, %v3791
    %v3793 = vpop.f32.mrb[0].mxu0
    %3794 = vmatprep.mubr.f32.mxu0 0.0
    %3795 = vmatmul.mubr.f32.gmra.mrb[0].mxu0 %v3641
    %v3796 = vpop.f32.mrb[0].mxu0
    %v3797 = vadd.f32 0.0, %v3796
    %v3798 = vpop.f32.mrb[0].mxu0
    %3799 = vmatprep.mubr.f32.mxu0 0.0
    %3800 = vmatmul.mubr.f32.gmra.mrb[0].mxu0 %v3642
    %v3801 = vpop.f32.mrb[0].mxu0
    %v3802 = vadd.f32 0.0, %v3801
    %v3803 = vpop.f32.mrb[0].mxu0
    %3804 = vdwg.mxu0
    %v3805 = vld [vmem:[#allocation5] sm:$0xff]
    %v3806 = vld [vmem:[#allocation5 + $0x8] sm:$0xff]
    %v3807 = vld [vmem:[#allocation5 + $0x10] sm:$0xff]
    %v3808 = vld [vmem:[#allocation5 + $0x18] sm:$0xff]
    %v3809 = vld [vmem:[#allocation5 + $0x20] sm:$0xff]
    %v3810 = vld [vmem:[#allocation5 + $0x28] sm:$0xff]
    %v3811 = vld [vmem:[#allocation5 + $0x30] sm:$0xff]
    %v3812 = vld [vmem:[#allocation5 + $0x38] sm:$0xff]
    %v3813 = vld [vmem:[#allocation5 + $0x40] sm:$0xff]
    %v3814 = vld [vmem:[#allocation5 + $0x48] sm:$0xff]
    %v3815 = vld [vmem:[#allocation5 + $0x50] sm:$0xff]
    %v3816 = vld [vmem:[#allocation5 + $0x58] sm:$0xff]
    %v3817 = vld [vmem:[#allocation5 + $0x60] sm:$0xff]
    %v3818 = vld [vmem:[#allocation5 + $0x68] sm:$0xff]
    %v3819 = vld [vmem:[#allocation5 + $0x70] sm:$0xff]
    %v3820 = vld [vmem:[#allocation5 + $0x78] sm:$0xff]
    %v3821 = vadd.f32 %v3805, %v3727
    %v3822 = vadd.f32 %v3806, %v3732
    %v3823 = vadd.f32 %v3807, %v3737
    %v3824 = vadd.f32 %v3808, %v3742
    %v3825 = vadd.f32 %v3809, %v3747
    %v3826 = vadd.f32 %v3810, %v3752
    %v3827 = vadd.f32 %v3811, %v3757
    %v3828 = vadd.f32 %v3812, %v3762
    %v3829 = vadd.f32 %v3813, %v3767
    %v3830 = vadd.f32 %v3814, %v3772
    %v3831 = vadd.f32 %v3815, %v3777
    %v3832 = vadd.f32 %v3816, %v3782
    %v3833 = vadd.f32 %v3817, %v3787
    %v3834 = vadd.f32 %v3818, %v3792
    %v3835 = vadd.f32 %v3819, %v3797
    %v3836 = vadd.f32 %v3820, %v3802
    %3837 = vst [vmem:[#allocation5] sm:$0xff] %v3821
    %3838 = vst [vmem:[#allocation5 + $0x8] sm:$0xff] %v3822
    %3839 = vst [vmem:[#allocation5 + $0x10] sm:$0xff] %v3823
    %3840 = vst [vmem:[#allocation5 + $0x18] sm:$0xff] %v3824
    %3841 = vst [vmem:[#allocation5 + $0x20] sm:$0xff] %v3825
    %3842 = vst [vmem:[#allocation5 + $0x28] sm:$0xff] %v3826
    %3843 = vst [vmem:[#allocation5 + $0x30] sm:$0xff] %v3827
    %3844 = vst [vmem:[#allocation5 + $0x38] sm:$0xff] %v3828
    %3845 = vst [vmem:[#allocation5 + $0x40] sm:$0xff] %v3829
    %3846 = vst [vmem:[#allocation5 + $0x48] sm:$0xff] %v3830
    %3847 = vst [vmem:[#allocation5 + $0x50] sm:$0xff] %v3831
    %3848 = vst [vmem:[#allocation5 + $0x58] sm:$0xff] %v3832
    %3849 = vst [vmem:[#allocation5 + $0x60] sm:$0xff] %v3833
    %3850 = vst [vmem:[#allocation5 + $0x68] sm:$0xff] %v3834
    %3851 = vst [vmem:[#allocation5 + $0x70] sm:$0xff] %v3835
    %3852 = vst [vmem:[#allocation5 + $0x78] sm:$0xff] %v3836
    %v3853 = vld [vmem:[%s2739 + $0x2] sm:$0xff]
    %v3854 = vld [vmem:[%s2739 + $0x12] sm:$0xff]
    %v3855 = vld [vmem:[%s2739 + $0x22] sm:$0xff]
    %v3856 = vld [vmem:[%s2739 + $0x32] sm:$0xff]
    %v3857 = vld [vmem:[%s2739 + $0x42] sm:$0xff]
    %v3858 = vld [vmem:[%s2739 + $0x52] sm:$0xff]
    %v3859 = vld [vmem:[%s2739 + $0x62] sm:$0xff]
    %v3860 = vld [vmem:[%s2739 + $0x72] sm:$0xff]
    %v3861 = vld [vmem:[%s2739 + $0xa2] sm:$0xff]
    %v3862 = vld [vmem:[%s2739 + $0xb2] sm:$0xff]
    %v3863 = vld [vmem:[%s2739 + $0xc2] sm:$0xff]
    %v3864 = vld [vmem:[%s2739 + $0xd2] sm:$0xff]
    %v3865 = vld [vmem:[%s2739 + $0xe2] sm:$0xff]
    %v3866 = vld [vmem:[%s2739 + $0xf2] sm:$0xff]
    %v3867 = vld [vmem:[%s2739 + $0x102] sm:$0xff]
    %v3868 = vld [vmem:[%s2739 + $0x112] sm:$0xff]
    %s3869 = scalar_lea.vmem [#allocation6], 640
    %v3870 = vld [vmem:[%s3869] sm:$0xff]
    %v3871 = vld [vmem:[%s3869 + $0x8] sm:$0xff]
    %v3872 = vld [vmem:[%s3869 + $0x10] sm:$0xff]
    %v3873 = vld [vmem:[%s3869 + $0x18] sm:$0xff]
    %v3874 = vld [vmem:[%s3869 + $0x20] sm:$0xff]
    %v3875 = vld [vmem:[%s3869 + $0x28] sm:$0xff]
    %v3876 = vld [vmem:[%s3869 + $0x30] sm:$0xff]
    %v3877 = vld [vmem:[%s3869 + $0x38] sm:$0xff]
    %v3878 = vld [vmem:[%s3869 + $0x40] sm:$0xff]
    %v3879 = vld [vmem:[%s3869 + $0x48] sm:$0xff]
    %v3880 = vld [vmem:[%s3869 + $0x50] sm:$0xff]
    %v3881 = vld [vmem:[%s3869 + $0x58] sm:$0xff]
    %v3882 = vld [vmem:[%s3869 + $0x60] sm:$0xff]
    %v3883 = vld [vmem:[%s3869 + $0x68] sm:$0xff]
    %v3884 = vld [vmem:[%s3869 + $0x70] sm:$0xff]
    %v3885 = vld [vmem:[%s3869 + $0x78] sm:$0xff]
    %3886 = vmatprep.subr.mxu0 0.0
    %3887 = vmatpush1.msra.mxu0 %v3870
    %3888 = vmatprep.subr.mxu0 0.0
    %3889 = vmatpush1.msra.mxu0 %v3871
    %3890 = vmatprep.subr.mxu0 0.0
    %3891 = vmatpush1.msra.mxu0 %v3872
    %3892 = vmatprep.subr.mxu0 0.0
    %3893 = vmatpush1.msra.mxu0 %v3873
    %3894 = vmatprep.subr.mxu0 0.0
    %3895 = vmatpush1.msra.mxu0 %v3874
    %3896 = vmatprep.subr.mxu0 0.0
    %3897 = vmatpush1.msra.mxu0 %v3875
    %3898 = vmatprep.subr.mxu0 0.0
    %3899 = vmatpush1.msra.mxu0 %v3876
    %3900 = vmatprep.subr.mxu0 0.0
    %3901 = vmatpush1.msra.mxu0 %v3877
    %3902 = vmatprep.subr.mxu0 0.0
    %3903 = vmatpush1.msra.mxu0 %v3878
    %3904 = vmatprep.subr.mxu0 0.0
    %3905 = vmatpush1.msra.mxu0 %v3879
    %3906 = vmatprep.subr.mxu0 0.0
    %3907 = vmatpush1.msra.mxu0 %v3880
    %3908 = vmatprep.subr.mxu0 0.0
    %3909 = vmatpush1.msra.mxu0 %v3881
    %3910 = vmatprep.subr.mxu0 0.0
    %3911 = vmatpush1.msra.mxu0 %v3882
    %3912 = vmatprep.subr.mxu0 0.0
    %3913 = vmatpush1.msra.mxu0 %v3883
    %3914 = vmatprep.subr.mxu0 0.0
    %3915 = vmatpush1.msra.mxu0 %v3884
    %3916 = vmatprep.subr.mxu0 0.0
    %3917 = vmatpush1.msra.mxu0 %v3885
    %3918 = vmatprep.subr.mxu0 0.0
    %3919 = vmatpush1.msra.mxu0 0.0
    %3920 = vmatprep.subr.mxu0 0.0
    %3921 = vmatpush1.msra.mxu0 0.0
    %3922 = vmatprep.subr.mxu0 0.0
    %3923 = vmatpush1.msra.mxu0 0.0
    %3924 = vmatprep.subr.mxu0 0.0
    %3925 = vmatpush1.msra.mxu0 0.0
    %3926 = vmatprep.subr.mxu0 0.0
    %3927 = vmatpush1.msra.mxu0 0.0
    %3928 = vmatprep.subr.mxu0 0.0
    %3929 = vmatpush1.msra.mxu0 0.0
    %3930 = vmatprep.subr.mxu0 0.0
    %3931 = vmatpush1.msra.mxu0 0.0
    %3932 = vmatprep.subr.mxu0 0.0
    %3933 = vmatpush1.msra.mxu0 0.0
    %3934 = vmatprep.subr.mxu0 0.0
    %3935 = vmatpush1.msra.mxu0 0.0
    %3936 = vmatprep.subr.mxu0 0.0
    %3937 = vmatpush1.msra.mxu0 0.0
    %3938 = vmatprep.subr.mxu0 0.0
    %3939 = vmatpush1.msra.mxu0 0.0
    %3940 = vmatprep.subr.mxu0 0.0
    %3941 = vmatpush1.msra.mxu0 0.0
    %3942 = vmatprep.subr.mxu0 0.0
    %3943 = vmatpush1.msra.mxu0 0.0
    %3944 = vmatprep.subr.mxu0 0.0
    %3945 = vmatpush1.msra.mxu0 0.0
    %3946 = vmatprep.subr.mxu0 0.0
    %3947 = vmatpush1.msra.mxu0 0.0
    %3948 = vmatprep.subr.mxu0 0.0
    %3949 = vmatpush1.msra.mxu0 0.0
    %3950 = vmatprep.mubr.f32.mxu0 0.0
    %3951 = vmatmul.mubr.f32.gmra.mrb[0].mxu0 %v3853
    %v3952 = vpop.f32.mrb[0].mxu0
    %v3953 = vadd.f32 0.0, %v3952
    %v3954 = vpop.f32.mrb[0].mxu0
    %3955 = vmatprep.mubr.f32.mxu0 0.0
    %3956 = vmatmul.mubr.f32.gmra.mrb[0].mxu0 %v3854
    %v3957 = vpop.f32.mrb[0].mxu0
    %v3958 = vadd.f32 0.0, %v3957
    %v3959 = vpop.f32.mrb[0].mxu0
    %3960 = vmatprep.mubr.f32.mxu0 0.0
    %3961 = vmatmul.mubr.f32.gmra.mrb[0].mxu0 %v3855
    %v3962 = vpop.f32.mrb[0].mxu0
    %v3963 = vadd.f32 0.0, %v3962
    %v3964 = vpop.f32.mrb[0].mxu0
    %3965 = vmatprep.mubr.f32.mxu0 0.0
    %3966 = vmatmul.mubr.f32.gmra.mrb[0].mxu0 %v3856
    %v3967 = vpop.f32.mrb[0].mxu0
    %v3968 = vadd.f32 0.0, %v3967
    %v3969 = vpop.f32.mrb[0].mxu0
    %3970 = vmatprep.mubr.f32.mxu0 0.0
    %3971 = vmatmul.mubr.f32.gmra.mrb[0].mxu0 %v3857
    %v3972 = vpop.f32.mrb[0].mxu0
    %v3973 = vadd.f32 0.0, %v3972
    %v3974 = vpop.f32.mrb[0].mxu0
    %3975 = vmatprep.mubr.f32.mxu0 0.0
    %3976 = vmatmul.mubr.f32.gmra.mrb[0].mxu0 %v3858
    %v3977 = vpop.f32.mrb[0].mxu0
    %v3978 = vadd.f32 0.0, %v3977
    %v3979 = vpop.f32.mrb[0].mxu0
    %3980 = vmatprep.mubr.f32.mxu0 0.0
    %3981 = vmatmul.mubr.f32.gmra.mrb[0].mxu0 %v3859
    %v3982 = vpop.f32.mrb[0].mxu0
    %v3983 = vadd.f32 0.0, %v3982
    %v3984 = vpop.f32.mrb[0].mxu0
    %3985 = vmatprep.mubr.f32.mxu0 0.0
    %3986 = vmatmul.mubr.f32.gmra.mrb[0].mxu0 %v3860
    %v3987 = vpop.f32.mrb[0].mxu0
    %v3988 = vadd.f32 0.0, %v3987
    %v3989 = vpop.f32.mrb[0].mxu0
    %3990 = vmatprep.mubr.f32.mxu0 0.0
    %3991 = vmatmul.mubr.f32.gmra.mrb[0].mxu0 %v3861
    %v3992 = vpop.f32.mrb[0].mxu0
    %v3993 = vadd.f32 0.0, %v3992
    %v3994 = vpop.f32.mrb[0].mxu0
    %3995 = vmatprep.mubr.f32.mxu0 0.0
    %3996 = vmatmul.mubr.f32.gmra.mrb[0].mxu0 %v3862
    %v3997 = vpop.f32.mrb[0].mxu0
    %v3998 = vadd.f32 0.0, %v3997
    %v3999 = vpop.f32.mrb[0].mxu0
    %4000 = vmatprep.mubr.f32.mxu0 0.0
    %4001 = vmatmul.mubr.f32.gmra.mrb[0].mxu0 %v3863
    %v4002 = vpop.f32.mrb[0].mxu0
    %v4003 = vadd.f32 0.0, %v4002
    %v4004 = vpop.f32.mrb[0].mxu0
    %4005 = vmatprep.mubr.f32.mxu0 0.0
    %4006 = vmatmul.mubr.f32.gmra.mrb[0].mxu0 %v3864
    %v4007 = vpop.f32.mrb[0].mxu0
    %v4008 = vadd.f32 0.0, %v4007
    %v4009 = vpop.f32.mrb[0].mxu0
    %4010 = vmatprep.mubr.f32.mxu0 0.0
    %4011 = vmatmul.mubr.f32.gmra.mrb[0].mxu0 %v3865
    %v4012 = vpop.f32.mrb[0].mxu0
    %v4013 = vadd.f32 0.0, %v4012
    %v4014 = vpop.f32.mrb[0].mxu0
    %4015 = vmatprep.mubr.f32.mxu0 0.0
    %4016 = vmatmul.mubr.f32.gmra.mrb[0].mxu0 %v3866
    %v4017 = vpop.f32.mrb[0].mxu0
    %v4018 = vadd.f32 0.0, %v4017
    %v4019 = vpop.f32.mrb[0].mxu0
    %4020 = vmatprep.mubr.f32.mxu0 0.0
    %4021 = vmatmul.mubr.f32.gmra.mrb[0].mxu0 %v3867
    %v4022 = vpop.f32.mrb[0].mxu0
    %v4023 = vadd.f32 0.0, %v4022
    %v4024 = vpop.f32.mrb[0].mxu0
    %4025 = vmatprep.mubr.f32.mxu0 0.0
    %4026 = vmatmul.mubr.f32.gmra.mrb[0].mxu0 %v3868
    %v4027 = vpop.f32.mrb[0].mxu0
    %v4028 = vadd.f32 0.0, %v4027
    %v4029 = vpop.f32.mrb[0].mxu0
    %4030 = vdwg.mxu0
    %v4031 = vld [vmem:[#allocation5] sm:$0xff]
    %v4032 = vld [vmem:[#allocation5 + $0x8] sm:$0xff]
    %v4033 = vld [vmem:[#allocation5 + $0x10] sm:$0xff]
    %v4034 = vld [vmem:[#allocation5 + $0x18] sm:$0xff]
    %v4035 = vld [vmem:[#allocation5 + $0x20] sm:$0xff]
    %v4036 = vld [vmem:[#allocation5 + $0x28] sm:$0xff]
    %v4037 = vld [vmem:[#allocation5 + $0x30] sm:$0xff]
    %v4038 = vld [vmem:[#allocation5 + $0x38] sm:$0xff]
    %v4039 = vld [vmem:[#allocation5 + $0x40] sm:$0xff]
    %v4040 = vld [vmem:[#allocation5 + $0x48] sm:$0xff]
    %v4041 = vld [vmem:[#allocation5 + $0x50] sm:$0xff]
    %v4042 = vld [vmem:[#allocation5 + $0x58] sm:$0xff]
    %v4043 = vld [vmem:[#allocation5 + $0x60] sm:$0xff]
    %v4044 = vld [vmem:[#allocation5 + $0x68] sm:$0xff]
    %v4045 = vld [vmem:[#allocation5 + $0x70] sm:$0xff]
    %v4046 = vld [vmem:[#allocation5 + $0x78] sm:$0xff]
    %v4047 = vadd.f32 %v4031, %v3953
    %v4048 = vadd.f32 %v4032, %v3958
    %v4049 = vadd.f32 %v4033, %v3963
    %v4050 = vadd.f32 %v4034, %v3968
    %v4051 = vadd.f32 %v4035, %v3973
    %v4052 = vadd.f32 %v4036, %v3978
    %v4053 = vadd.f32 %v4037, %v3983
    %v4054 = vadd.f32 %v4038, %v3988
    %v4055 = vadd.f32 %v4039, %v3993
    %v4056 = vadd.f32 %v4040, %v3998
    %v4057 = vadd.f32 %v4041, %v4003
    %v4058 = vadd.f32 %v4042, %v4008
    %v4059 = vadd.f32 %v4043, %v4013
    %v4060 = vadd.f32 %v4044, %v4018
    %v4061 = vadd.f32 %v4045, %v4023
    %v4062 = vadd.f32 %v4046, %v4028
    %4063 = vst [vmem:[#allocation5] sm:$0xff] %v4047
    %4064 = vst [vmem:[#allocation5 + $0x8] sm:$0xff] %v4048
    %4065 = vst [vmem:[#allocation5 + $0x10] sm:$0xff] %v4049
    %4066 = vst [vmem:[#allocation5 + $0x18] sm:$0xff] %v4050
    %4067 = vst [vmem:[#allocation5 + $0x20] sm:$0xff] %v4051
    %4068 = vst [vmem:[#allocation5 + $0x28] sm:$0xff] %v4052
    %4069 = vst [vmem:[#allocation5 + $0x30] sm:$0xff] %v4053
    %4070 = vst [vmem:[#allocation5 + $0x38] sm:$0xff] %v4054
    %4071 = vst [vmem:[#allocation5 + $0x40] sm:$0xff] %v4055
    %4072 = vst [vmem:[#allocation5 + $0x48] sm:$0xff] %v4056
    %4073 = vst [vmem:[#allocation5 + $0x50] sm:$0xff] %v4057
    %4074 = vst [vmem:[#allocation5 + $0x58] sm:$0xff] %v4058
    %4075 = vst [vmem:[#allocation5 + $0x60] sm:$0xff] %v4059
    %4076 = vst [vmem:[#allocation5 + $0x68] sm:$0xff] %v4060
    %4077 = vst [vmem:[#allocation5 + $0x70] sm:$0xff] %v4061
    %4078 = vst [vmem:[#allocation5 + $0x78] sm:$0xff] %v4062
    %s4079 = scalar_lea.vmem [#allocation3], 32
    %v4080 = vld [vmem:[%s4079] sm:$0xff]
    %v4081 = vld [vmem:[%s4079 + $0x10] sm:$0xff]
    %v4082 = vld [vmem:[%s4079 + $0x20] sm:$0xff]
    %v4083 = vld [vmem:[%s4079 + $0x30] sm:$0xff]
    %v4084 = vld [vmem:[%s4079 + $0x40] sm:$0xff]
    %v4085 = vld [vmem:[%s4079 + $0x50] sm:$0xff]
    %v4086 = vld [vmem:[%s4079 + $0x60] sm:$0xff]
    %v4087 = vld [vmem:[%s4079 + $0x70] sm:$0xff]
    %v4088 = vld [vmem:[%s4079 + $0xa0] sm:$0xff]
    %v4089 = vld [vmem:[%s4079 + $0xb0] sm:$0xff]
    %v4090 = vld [vmem:[%s4079 + $0xc0] sm:$0xff]
    %v4091 = vld [vmem:[%s4079 + $0xd0] sm:$0xff]
    %v4092 = vld [vmem:[%s4079 + $0xe0] sm:$0xff]
    %v4093 = vld [vmem:[%s4079 + $0xf0] sm:$0xff]
    %v4094 = vld [vmem:[%s4079 + $0x100] sm:$0xff]
    %v4095 = vld [vmem:[%s4079 + $0x110] sm:$0xff]
    %s4096 = scalar_lea.vmem [#allocation6], 768
    %v4097 = vld [vmem:[%s4096] sm:$0xff]
    %v4098 = vld [vmem:[%s4096 + $0x8] sm:$0xff]
    %v4099 = vld [vmem:[%s4096 + $0x10] sm:$0xff]
    %v4100 = vld [vmem:[%s4096 + $0x18] sm:$0xff]
    %v4101 = vld [vmem:[%s4096 + $0x20] sm:$0xff]
    %v4102 = vld [vmem:[%s4096 + $0x28] sm:$0xff]
    %v4103 = vld [vmem:[%s4096 + $0x30] sm:$0xff]
    %v4104 = vld [vmem:[%s4096 + $0x38] sm:$0xff]
    %v4105 = vld [vmem:[%s4096 + $0x40] sm:$0xff]
    %v4106 = vld [vmem:[%s4096 + $0x48] sm:$0xff]
    %v4107 = vld [vmem:[%s4096 + $0x50] sm:$0xff]
    %v4108 = vld [vmem:[%s4096 + $0x58] sm:$0xff]
    %v4109 = vld [vmem:[%s4096 + $0x60] sm:$0xff]
    %v4110 = vld [vmem:[%s4096 + $0x68] sm:$0xff]
    %v4111 = vld [vmem:[%s4096 + $0x70] sm:$0xff]
    %v4112 = vld [vmem:[%s4096 + $0x78] sm:$0xff]
    %4113 = vmatprep.subr.mxu0 0.0
    %4114 = vmatpush1.msra.mxu0 %v4097
    %4115 = vmatprep.subr.mxu0 0.0
    %4116 = vmatpush1.msra.mxu0 %v4098
    %4117 = vmatprep.subr.mxu0 0.0
    %4118 = vmatpush1.msra.mxu0 %v4099
    %4119 = vmatprep.subr.mxu0 0.0
    %4120 = vmatpush1.msra.mxu0 %v4100
    %4121 = vmatprep.subr.mxu0 0.0
    %4122 = vmatpush1.msra.mxu0 %v4101
    %4123 = vmatprep.subr.mxu0 0.0
    %4124 = vmatpush1.msra.mxu0 %v4102
    %4125 = vmatprep.subr.mxu0 0.0
    %4126 = vmatpush1.msra.mxu0 %v4103
    %4127 = vmatprep.subr.mxu0 0.0
    %4128 = vmatpush1.msra.mxu0 %v4104
    %4129 = vmatprep.subr.mxu0 0.0
    %4130 = vmatpush1.msra.mxu0 %v4105
    %4131 = vmatprep.subr.mxu0 0.0
    %4132 = vmatpush1.msra.mxu0 %v4106
    %4133 = vmatprep.subr.mxu0 0.0
    %4134 = vmatpush1.msra.mxu0 %v4107
    %4135 = vmatprep.subr.mxu0 0.0
    %4136 = vmatpush1.msra.mxu0 %v4108
    %4137 = vmatprep.subr.mxu0 0.0
    %4138 = vmatpush1.msra.mxu0 %v4109
    %4139 = vmatprep.subr.mxu0 0.0
    %4140 = vmatpush1.msra.mxu0 %v4110
    %4141 = vmatprep.subr.mxu0 0.0
    %4142 = vmatpush1.msra.mxu0 %v4111
    %4143 = vmatprep.subr.mxu0 0.0
    %4144 = vmatpush1.msra.mxu0 %v4112
    %4145 = vmatprep.subr.mxu0 0.0
    %4146 = vmatpush1.msra.mxu0 0.0
    %4147 = vmatprep.subr.mxu0 0.0
    %4148 = vmatpush1.msra.mxu0 0.0
    %4149 = vmatprep.subr.mxu0 0.0
    %4150 = vmatpush1.msra.mxu0 0.0
    %4151 = vmatprep.subr.mxu0 0.0
    %4152 = vmatpush1.msra.mxu0 0.0
    %4153 = vmatprep.subr.mxu0 0.0
    %4154 = vmatpush1.msra.mxu0 0.0
    %4155 = vmatprep.subr.mxu0 0.0
    %4156 = vmatpush1.msra.mxu0 0.0
    %4157 = vmatprep.subr.mxu0 0.0
    %4158 = vmatpush1.msra.mxu0 0.0
    %4159 = vmatprep.subr.mxu0 0.0
    %4160 = vmatpush1.msra.mxu0 0.0
    %4161 = vmatprep.subr.mxu0 0.0
    %4162 = vmatpush1.msra.mxu0 0.0
    %4163 = vmatprep.subr.mxu0 0.0
    %4164 = vmatpush1.msra.mxu0 0.0
    %4165 = vmatprep.subr.mxu0 0.0
    %4166 = vmatpush1.msra.mxu0 0.0
    %4167 = vmatprep.subr.mxu0 0.0
    %4168 = vmatpush1.msra.mxu0 0.0
    %4169 = vmatprep.subr.mxu0 0.0
    %4170 = vmatpush1.msra.mxu0 0.0
    %4171 = vmatprep.subr.mxu0 0.0
    %4172 = vmatpush1.msra.mxu0 0.0
    %4173 = vmatprep.subr.mxu0 0.0
    %4174 = vmatpush1.msra.mxu0 0.0
    %4175 = vmatprep.subr.mxu0 0.0
    %4176 = vmatpush1.msra.mxu0 0.0
    %4177 = vmatprep.mubr.f32.mxu0 0.0
    %4178 = vmatmul.mubr.f32.gmra.mrb[0].mxu0 %v4080
    %v4179 = vpop.f32.mrb[0].mxu0
    %v4180 = vadd.f32 0.0, %v4179
    %v4181 = vpop.f32.mrb[0].mxu0
    %4182 = vmatprep.mubr.f32.mxu0 0.0
    %4183 = vmatmul.mubr.f32.gmra.mrb[0].mxu0 %v4081
    %v4184 = vpop.f32.mrb[0].mxu0
    %v4185 = vadd.f32 0.0, %v4184
    %v4186 = vpop.f32.mrb[0].mxu0
    %4187 = vmatprep.mubr.f32.mxu0 0.0
    %4188 = vmatmul.mubr.f32.gmra.mrb[0].mxu0 %v4082
    %v4189 = vpop.f32.mrb[0].mxu0
    %v4190 = vadd.f32 0.0, %v4189
    %v4191 = vpop.f32.mrb[0].mxu0
    %4192 = vmatprep.mubr.f32.mxu0 0.0
    %4193 = vmatmul.mubr.f32.gmra.mrb[0].mxu0 %v4083
    %v4194 = vpop.f32.mrb[0].mxu0
    %v4195 = vadd.f32 0.0, %v4194
    %v4196 = vpop.f32.mrb[0].mxu0
    %4197 = vmatprep.mubr.f32.mxu0 0.0
    %4198 = vmatmul.mubr.f32.gmra.mrb[0].mxu0 %v4084
    %v4199 = vpop.f32.mrb[0].mxu0
    %v4200 = vadd.f32 0.0, %v4199
    %v4201 = vpop.f32.mrb[0].mxu0
    %4202 = vmatprep.mubr.f32.mxu0 0.0
    %4203 = vmatmul.mubr.f32.gmra.mrb[0].mxu0 %v4085
    %v4204 = vpop.f32.mrb[0].mxu0
    %v4205 = vadd.f32 0.0, %v4204
    %v4206 = vpop.f32.mrb[0].mxu0
    %4207 = vmatprep.mubr.f32.mxu0 0.0
    %4208 = vmatmul.mubr.f32.gmra.mrb[0].mxu0 %v4086
    %v4209 = vpop.f32.mrb[0].mxu0
    %v4210 = vadd.f32 0.0, %v4209
    %v4211 = vpop.f32.mrb[0].mxu0
    %4212 = vmatprep.mubr.f32.mxu0 0.0
    %4213 = vmatmul.mubr.f32.gmra.mrb[0].mxu0 %v4087
    %v4214 = vpop.f32.mrb[0].mxu0
    %v4215 = vadd.f32 0.0, %v4214
    %v4216 = vpop.f32.mrb[0].mxu0
    %4217 = vmatprep.mubr.f32.mxu0 0.0
    %4218 = vmatmul.mubr.f32.gmra.mrb[0].mxu0 %v4088
    %v4219 = vpop.f32.mrb[0].mxu0
    %v4220 = vadd.f32 0.0, %v4219
    %v4221 = vpop.f32.mrb[0].mxu0
    %4222 = vmatprep.mubr.f32.mxu0 0.0
    %4223 = vmatmul.mubr.f32.gmra.mrb[0].mxu0 %v4089
    %v4224 = vpop.f32.mrb[0].mxu0
    %v4225 = vadd.f32 0.0, %v4224
    %v4226 = vpop.f32.mrb[0].mxu0
    %4227 = vmatprep.mubr.f32.mxu0 0.0
    %4228 = vmatmul.mubr.f32.gmra.mrb[0].mxu0 %v4090
    %v4229 = vpop.f32.mrb[0].mxu0
    %v4230 = vadd.f32 0.0, %v4229
    %v4231 = vpop.f32.mrb[0].mxu0
    %4232 = vmatprep.mubr.f32.mxu0 0.0
    %4233 = vmatmul.mubr.f32.gmra.mrb[0].mxu0 %v4091
    %v4234 = vpop.f32.mrb[0].mxu0
    %v4235 = vadd.f32 0.0, %v4234
    %v4236 = vpop.f32.mrb[0].mxu0
    %4237 = vmatprep.mubr.f32.mxu0 0.0
    %4238 = vmatmul.mubr.f32.gmra.mrb[0].mxu0 %v4092
    %v4239 = vpop.f32.mrb[0].mxu0
    %v4240 = vadd.f32 0.0, %v4239
    %v4241 = vpop.f32.mrb[0].mxu0
    %4242 = vmatprep.mubr.f32.mxu0 0.0
    %4243 = vmatmul.mubr.f32.gmra.mrb[0].mxu0 %v4093
    %v4244 = vpop.f32.mrb[0].mxu0
    %v4245 = vadd.f32 0.0, %v4244
    %v4246 = vpop.f32.mrb[0].mxu0
    %4247 = vmatprep.mubr.f32.mxu0 0.0
    %4248 = vmatmul.mubr.f32.gmra.mrb[0].mxu0 %v4094
    %v4249 = vpop.f32.mrb[0].mxu0
    %v4250 = vadd.f32 0.0, %v4249
    %v4251 = vpop.f32.mrb[0].mxu0
    %4252 = vmatprep.mubr.f32.mxu0 0.0
    %4253 = vmatmul.mubr.f32.gmra.mrb[0].mxu0 %v4095
    %v4254 = vpop.f32.mrb[0].mxu0
    %v4255 = vadd.f32 0.0, %v4254
    %v4256 = vpop.f32.mrb[0].mxu0
    %4257 = vdwg.mxu0
    %v4258 = vld [vmem:[#allocation5] sm:$0xff]
    %v4259 = vld [vmem:[#allocation5 + $0x8] sm:$0xff]
    %v4260 = vld [vmem:[#allocation5 + $0x10] sm:$0xff]
    %v4261 = vld [vmem:[#allocation5 + $0x18] sm:$0xff]
    %v4262 = vld [vmem:[#allocation5 + $0x20] sm:$0xff]
    %v4263 = vld [vmem:[#allocation5 + $0x28] sm:$0xff]
    %v4264 = vld [vmem:[#allocation5 + $0x30] sm:$0xff]
    %v4265 = vld [vmem:[#allocation5 + $0x38] sm:$0xff]
    %v4266 = vld [vmem:[#allocation5 + $0x40] sm:$0xff]
    %v4267 = vld [vmem:[#allocation5 + $0x48] sm:$0xff]
    %v4268 = vld [vmem:[#allocation5 + $0x50] sm:$0xff]
    %v4269 = vld [vmem:[#allocation5 + $0x58] sm:$0xff]
    %v4270 = vld [vmem:[#allocation5 + $0x60] sm:$0xff]
    %v4271 = vld [vmem:[#allocation5 + $0x68] sm:$0xff]
    %v4272 = vld [vmem:[#allocation5 + $0x70] sm:$0xff]
    %v4273 = vld [vmem:[#allocation5 + $0x78] sm:$0xff]
    %v4274 = vadd.f32 %v4258, %v4180
    %v4275 = vadd.f32 %v4259, %v4185
    %v4276 = vadd.f32 %v4260, %v4190
    %v4277 = vadd.f32 %v4261, %v4195
    %v4278 = vadd.f32 %v4262, %v4200
    %v4279 = vadd.f32 %v4263, %v4205
    %v4280 = vadd.f32 %v4264, %v4210
    %v4281 = vadd.f32 %v4265, %v4215
    %v4282 = vadd.f32 %v4266, %v4220
    %v4283 = vadd.f32 %v4267, %v4225
    %v4284 = vadd.f32 %v4268, %v4230
    %v4285 = vadd.f32 %v4269, %v4235
    %v4286 = vadd.f32 %v4270, %v4240
    %v4287 = vadd.f32 %v4271, %v4245
    %v4288 = vadd.f32 %v4272, %v4250
    %v4289 = vadd.f32 %v4273, %v4255
    %4290 = vst [vmem:[#allocation5] sm:$0xff] %v4274
    %4291 = vst [vmem:[#allocation5 + $0x8] sm:$0xff] %v4275
    %4292 = vst [vmem:[#allocation5 + $0x10] sm:$0xff] %v4276
    %4293 = vst [vmem:[#allocation5 + $0x18] sm:$0xff] %v4277
    %4294 = vst [vmem:[#allocation5 + $0x20] sm:$0xff] %v4278
    %4295 = vst [vmem:[#allocation5 + $0x28] sm:$0xff] %v4279
    %4296 = vst [vmem:[#allocation5 + $0x30] sm:$0xff] %v4280
    %4297 = vst [vmem:[#allocation5 + $0x38] sm:$0xff] %v4281
    %4298 = vst [vmem:[#allocation5 + $0x40] sm:$0xff] %v4282
    %4299 = vst [vmem:[#allocation5 + $0x48] sm:$0xff] %v4283
    %4300 = vst [vmem:[#allocation5 + $0x50] sm:$0xff] %v4284
    %4301 = vst [vmem:[#allocation5 + $0x58] sm:$0xff] %v4285
    %4302 = vst [vmem:[#allocation5 + $0x60] sm:$0xff] %v4286
    %4303 = vst [vmem:[#allocation5 + $0x68] sm:$0xff] %v4287
    %4304 = vst [vmem:[#allocation5 + $0x70] sm:$0xff] %v4288
    %4305 = vst [vmem:[#allocation5 + $0x78] sm:$0xff] %v4289
    %v4306 = vld [vmem:[%s4079 + $0x1] sm:$0xff]
    %v4307 = vld [vmem:[%s4079 + $0x11] sm:$0xff]
    %v4308 = vld [vmem:[%s4079 + $0x21] sm:$0xff]
    %v4309 = vld [vmem:[%s4079 + $0x31] sm:$0xff]
    %v4310 = vld [vmem:[%s4079 + $0x41] sm:$0xff]
    %v4311 = vld [vmem:[%s4079 + $0x51] sm:$0xff]
    %v4312 = vld [vmem:[%s4079 + $0x61] sm:$0xff]
    %v4313 = vld [vmem:[%s4079 + $0x71] sm:$0xff]
    %v4314 = vld [vmem:[%s4079 + $0xa1] sm:$0xff]
    %v4315 = vld [vmem:[%s4079 + $0xb1] sm:$0xff]
    %v4316 = vld [vmem:[%s4079 + $0xc1] sm:$0xff]
    %v4317 = vld [vmem:[%s4079 + $0xd1] sm:$0xff]
    %v4318 = vld [vmem:[%s4079 + $0xe1] sm:$0xff]
    %v4319 = vld [vmem:[%s4079 + $0xf1] sm:$0xff]
    %v4320 = vld [vmem:[%s4079 + $0x101] sm:$0xff]
    %v4321 = vld [vmem:[%s4079 + $0x111] sm:$0xff]
    %s4322 = scalar_lea.vmem [#allocation6], 896
    %v4323 = vld [vmem:[%s4322] sm:$0xff]
    %v4324 = vld [vmem:[%s4322 + $0x8] sm:$0xff]
    %v4325 = vld [vmem:[%s4322 + $0x10] sm:$0xff]
    %v4326 = vld [vmem:[%s4322 + $0x18] sm:$0xff]
    %v4327 = vld [vmem:[%s4322 + $0x20] sm:$0xff]
    %v4328 = vld [vmem:[%s4322 + $0x28] sm:$0xff]
    %v4329 = vld [vmem:[%s4322 + $0x30] sm:$0xff]
    %v4330 = vld [vmem:[%s4322 + $0x38] sm:$0xff]
    %v4331 = vld [vmem:[%s4322 + $0x40] sm:$0xff]
    %v4332 = vld [vmem:[%s4322 + $0x48] sm:$0xff]
    %v4333 = vld [vmem:[%s4322 + $0x50] sm:$0xff]
    %v4334 = vld [vmem:[%s4322 + $0x58] sm:$0xff]
    %v4335 = vld [vmem:[%s4322 + $0x60] sm:$0xff]
    %v4336 = vld [vmem:[%s4322 + $0x68] sm:$0xff]
    %v4337 = vld [vmem:[%s4322 + $0x70] sm:$0xff]
    %v4338 = vld [vmem:[%s4322 + $0x78] sm:$0xff]
    %4339 = vmatprep.subr.mxu0 0.0
    %4340 = vmatpush1.msra.mxu0 %v4323
    %4341 = vmatprep.subr.mxu0 0.0
    %4342 = vmatpush1.msra.mxu0 %v4324
    %4343 = vmatprep.subr.mxu0 0.0
    %4344 = vmatpush1.msra.mxu0 %v4325
    %4345 = vmatprep.subr.mxu0 0.0
    %4346 = vmatpush1.msra.mxu0 %v4326
    %4347 = vmatprep.subr.mxu0 0.0
    %4348 = vmatpush1.msra.mxu0 %v4327
    %4349 = vmatprep.subr.mxu0 0.0
    %4350 = vmatpush1.msra.mxu0 %v4328
    %4351 = vmatprep.subr.mxu0 0.0
    %4352 = vmatpush1.msra.mxu0 %v4329
    %4353 = vmatprep.subr.mxu0 0.0
    %4354 = vmatpush1.msra.mxu0 %v4330
    %4355 = vmatprep.subr.mxu0 0.0
    %4356 = vmatpush1.msra.mxu0 %v4331
    %4357 = vmatprep.subr.mxu0 0.0
    %4358 = vmatpush1.msra.mxu0 %v4332
    %4359 = vmatprep.subr.mxu0 0.0
    %4360 = vmatpush1.msra.mxu0 %v4333
    %4361 = vmatprep.subr.mxu0 0.0
    %4362 = vmatpush1.msra.mxu0 %v4334
    %4363 = vmatprep.subr.mxu0 0.0
    %4364 = vmatpush1.msra.mxu0 %v4335
    %4365 = vmatprep.subr.mxu0 0.0
    %4366 = vmatpush1.msra.mxu0 %v4336
    %4367 = vmatprep.subr.mxu0 0.0
    %4368 = vmatpush1.msra.mxu0 %v4337
    %4369 = vmatprep.subr.mxu0 0.0
    %4370 = vmatpush1.msra.mxu0 %v4338
    %4371 = vmatprep.subr.mxu0 0.0
    %4372 = vmatpush1.msra.mxu0 0.0
    %4373 = vmatprep.subr.mxu0 0.0
    %4374 = vmatpush1.msra.mxu0 0.0
    %4375 = vmatprep.subr.mxu0 0.0
    %4376 = vmatpush1.msra.mxu0 0.0
    %4377 = vmatprep.subr.mxu0 0.0
    %4378 = vmatpush1.msra.mxu0 0.0
    %4379 = vmatprep.subr.mxu0 0.0
    %4380 = vmatpush1.msra.mxu0 0.0
    %4381 = vmatprep.subr.mxu0 0.0
    %4382 = vmatpush1.msra.mxu0 0.0
    %4383 = vmatprep.subr.mxu0 0.0
    %4384 = vmatpush1.msra.mxu0 0.0
    %4385 = vmatprep.subr.mxu0 0.0
    %4386 = vmatpush1.msra.mxu0 0.0
    %4387 = vmatprep.subr.mxu0 0.0
    %4388 = vmatpush1.msra.mxu0 0.0
    %4389 = vmatprep.subr.mxu0 0.0
    %4390 = vmatpush1.msra.mxu0 0.0
    %4391 = vmatprep.subr.mxu0 0.0
    %4392 = vmatpush1.msra.mxu0 0.0
    %4393 = vmatprep.subr.mxu0 0.0
    %4394 = vmatpush1.msra.mxu0 0.0
    %4395 = vmatprep.subr.mxu0 0.0
    %4396 = vmatpush1.msra.mxu0 0.0
    %4397 = vmatprep.subr.mxu0 0.0
    %4398 = vmatpush1.msra.mxu0 0.0
    %4399 = vmatprep.subr.mxu0 0.0
    %4400 = vmatpush1.msra.mxu0 0.0
    %4401 = vmatprep.subr.mxu0 0.0
    %4402 = vmatpush1.msra.mxu0 0.0
    %4403 = vmatprep.mubr.f32.mxu0 0.0
    %4404 = vmatmul.mubr.f32.gmra.mrb[0].mxu0 %v4306
    %v4405 = vpop.f32.mrb[0].mxu0
    %v4406 = vadd.f32 0.0, %v4405
    %v4407 = vpop.f32.mrb[0].mxu0
    %4408 = vmatprep.mubr.f32.mxu0 0.0
    %4409 = vmatmul.mubr.f32.gmra.mrb[0].mxu0 %v4307
    %v4410 = vpop.f32.mrb[0].mxu0
    %v4411 = vadd.f32 0.0, %v4410
    %v4412 = vpop.f32.mrb[0].mxu0
    %4413 = vmatprep.mubr.f32.mxu0 0.0
    %4414 = vmatmul.mubr.f32.gmra.mrb[0].mxu0 %v4308
    %v4415 = vpop.f32.mrb[0].mxu0
    %v4416 = vadd.f32 0.0, %v4415
    %v4417 = vpop.f32.mrb[0].mxu0
    %4418 = vmatprep.mubr.f32.mxu0 0.0
    %4419 = vmatmul.mubr.f32.gmra.mrb[0].mxu0 %v4309
    %v4420 = vpop.f32.mrb[0].mxu0
    %v4421 = vadd.f32 0.0, %v4420
    %v4422 = vpop.f32.mrb[0].mxu0
    %4423 = vmatprep.mubr.f32.mxu0 0.0
    %4424 = vmatmul.mubr.f32.gmra.mrb[0].mxu0 %v4310
    %v4425 = vpop.f32.mrb[0].mxu0
    %v4426 = vadd.f32 0.0, %v4425
    %v4427 = vpop.f32.mrb[0].mxu0
    %4428 = vmatprep.mubr.f32.mxu0 0.0
    %4429 = vmatmul.mubr.f32.gmra.mrb[0].mxu0 %v4311
    %v4430 = vpop.f32.mrb[0].mxu0
    %v4431 = vadd.f32 0.0, %v4430
    %v4432 = vpop.f32.mrb[0].mxu0
    %4433 = vmatprep.mubr.f32.mxu0 0.0
    %4434 = vmatmul.mubr.f32.gmra.mrb[0].mxu0 %v4312
    %v4435 = vpop.f32.mrb[0].mxu0
    %v4436 = vadd.f32 0.0, %v4435
    %v4437 = vpop.f32.mrb[0].mxu0
    %4438 = vmatprep.mubr.f32.mxu0 0.0
    %4439 = vmatmul.mubr.f32.gmra.mrb[0].mxu0 %v4313
    %v4440 = vpop.f32.mrb[0].mxu0
    %v4441 = vadd.f32 0.0, %v4440
    %v4442 = vpop.f32.mrb[0].mxu0
    %4443 = vmatprep.mubr.f32.mxu0 0.0
    %4444 = vmatmul.mubr.f32.gmra.mrb[0].mxu0 %v4314
    %v4445 = vpop.f32.mrb[0].mxu0
    %v4446 = vadd.f32 0.0, %v4445
    %v4447 = vpop.f32.mrb[0].mxu0
    %4448 = vmatprep.mubr.f32.mxu0 0.0
    %4449 = vmatmul.mubr.f32.gmra.mrb[0].mxu0 %v4315
    %v4450 = vpop.f32.mrb[0].mxu0
    %v4451 = vadd.f32 0.0, %v4450
    %v4452 = vpop.f32.mrb[0].mxu0
    %4453 = vmatprep.mubr.f32.mxu0 0.0
    %4454 = vmatmul.mubr.f32.gmra.mrb[0].mxu0 %v4316
    %v4455 = vpop.f32.mrb[0].mxu0
    %v4456 = vadd.f32 0.0, %v4455
    %v4457 = vpop.f32.mrb[0].mxu0
    %4458 = vmatprep.mubr.f32.mxu0 0.0
    %4459 = vmatmul.mubr.f32.gmra.mrb[0].mxu0 %v4317
    %v4460 = vpop.f32.mrb[0].mxu0
    %v4461 = vadd.f32 0.0, %v4460
    %v4462 = vpop.f32.mrb[0].mxu0
    %4463 = vmatprep.mubr.f32.mxu0 0.0
    %4464 = vmatmul.mubr.f32.gmra.mrb[0].mxu0 %v4318
    %v4465 = vpop.f32.mrb[0].mxu0
    %v4466 = vadd.f32 0.0, %v4465
    %v4467 = vpop.f32.mrb[0].mxu0
    %4468 = vmatprep.mubr.f32.mxu0 0.0
    %4469 = vmatmul.mubr.f32.gmra.mrb[0].mxu0 %v4319
    %v4470 = vpop.f32.mrb[0].mxu0
    %v4471 = vadd.f32 0.0, %v4470
    %v4472 = vpop.f32.mrb[0].mxu0
    %4473 = vmatprep.mubr.f32.mxu0 0.0
    %4474 = vmatmul.mubr.f32.gmra.mrb[0].mxu0 %v4320
    %v4475 = vpop.f32.mrb[0].mxu0
    %v4476 = vadd.f32 0.0, %v4475
    %v4477 = vpop.f32.mrb[0].mxu0
    %4478 = vmatprep.mubr.f32.mxu0 0.0
    %4479 = vmatmul.mubr.f32.gmra.mrb[0].mxu0 %v4321
    %v4480 = vpop.f32.mrb[0].mxu0
    %v4481 = vadd.f32 0.0, %v4480
    %v4482 = vpop.f32.mrb[0].mxu0
    %4483 = vdwg.mxu0
    %v4484 = vld [vmem:[#allocation5] sm:$0xff]
    %v4485 = vld [vmem:[#allocation5 + $0x8] sm:$0xff]
    %v4486 = vld [vmem:[#allocation5 + $0x10] sm:$0xff]
    %v4487 = vld [vmem:[#allocation5 + $0x18] sm:$0xff]
    %v4488 = vld [vmem:[#allocation5 + $0x20] sm:$0xff]
    %v4489 = vld [vmem:[#allocation5 + $0x28] sm:$0xff]
    %v4490 = vld [vmem:[#allocation5 + $0x30] sm:$0xff]
    %v4491 = vld [vmem:[#allocation5 + $0x38] sm:$0xff]
    %v4492 = vld [vmem:[#allocation5 + $0x40] sm:$0xff]
    %v4493 = vld [vmem:[#allocation5 + $0x48] sm:$0xff]
    %v4494 = vld [vmem:[#allocation5 + $0x50] sm:$0xff]
    %v4495 = vld [vmem:[#allocation5 + $0x58] sm:$0xff]
    %v4496 = vld [vmem:[#allocation5 + $0x60] sm:$0xff]
    %v4497 = vld [vmem:[#allocation5 + $0x68] sm:$0xff]
    %v4498 = vld [vmem:[#allocation5 + $0x70] sm:$0xff]
    %v4499 = vld [vmem:[#allocation5 + $0x78] sm:$0xff]
    %v4500 = vadd.f32 %v4484, %v4406
    %v4501 = vadd.f32 %v4485, %v4411
    %v4502 = vadd.f32 %v4486, %v4416
    %v4503 = vadd.f32 %v4487, %v4421
    %v4504 = vadd.f32 %v4488, %v4426
    %v4505 = vadd.f32 %v4489, %v4431
    %v4506 = vadd.f32 %v4490, %v4436
    %v4507 = vadd.f32 %v4491, %v4441
    %v4508 = vadd.f32 %v4492, %v4446
    %v4509 = vadd.f32 %v4493, %v4451
    %v4510 = vadd.f32 %v4494, %v4456
    %v4511 = vadd.f32 %v4495, %v4461
    %v4512 = vadd.f32 %v4496, %v4466
    %v4513 = vadd.f32 %v4497, %v4471
    %v4514 = vadd.f32 %v4498, %v4476
    %v4515 = vadd.f32 %v4499, %v4481
    %4516 = vst [vmem:[#allocation5] sm:$0xff] %v4500
    %4517 = vst [vmem:[#allocation5 + $0x8] sm:$0xff] %v4501
    %4518 = vst [vmem:[#allocation5 + $0x10] sm:$0xff] %v4502
    %4519 = vst [vmem:[#allocation5 + $0x18] sm:$0xff] %v4503
    %4520 = vst [vmem:[#allocation5 + $0x20] sm:$0xff] %v4504
    %4521 = vst [vmem:[#allocation5 + $0x28] sm:$0xff] %v4505
    %4522 = vst [vmem:[#allocation5 + $0x30] sm:$0xff] %v4506
    %4523 = vst [vmem:[#allocation5 + $0x38] sm:$0xff] %v4507
    %4524 = vst [vmem:[#allocation5 + $0x40] sm:$0xff] %v4508
    %4525 = vst [vmem:[#allocation5 + $0x48] sm:$0xff] %v4509
    %4526 = vst [vmem:[#allocation5 + $0x50] sm:$0xff] %v4510
    %4527 = vst [vmem:[#allocation5 + $0x58] sm:$0xff] %v4511
    %4528 = vst [vmem:[#allocation5 + $0x60] sm:$0xff] %v4512
    %4529 = vst [vmem:[#allocation5 + $0x68] sm:$0xff] %v4513
    %4530 = vst [vmem:[#allocation5 + $0x70] sm:$0xff] %v4514
    %4531 = vst [vmem:[#allocation5 + $0x78] sm:$0xff] %v4515
    %v4532 = vld [vmem:[%s4079 + $0x2] sm:$0xff]
    %v4533 = vld [vmem:[%s4079 + $0x12] sm:$0xff]
    %v4534 = vld [vmem:[%s4079 + $0x22] sm:$0xff]
    %v4535 = vld [vmem:[%s4079 + $0x32] sm:$0xff]
    %v4536 = vld [vmem:[%s4079 + $0x42] sm:$0xff]
    %v4537 = vld [vmem:[%s4079 + $0x52] sm:$0xff]
    %v4538 = vld [vmem:[%s4079 + $0x62] sm:$0xff]
    %v4539 = vld [vmem:[%s4079 + $0x72] sm:$0xff]
    %v4540 = vld [vmem:[%s4079 + $0xa2] sm:$0xff]
    %v4541 = vld [vmem:[%s4079 + $0xb2] sm:$0xff]
    %v4542 = vld [vmem:[%s4079 + $0xc2] sm:$0xff]
    %v4543 = vld [vmem:[%s4079 + $0xd2] sm:$0xff]
    %v4544 = vld [vmem:[%s4079 + $0xe2] sm:$0xff]
    %v4545 = vld [vmem:[%s4079 + $0xf2] sm:$0xff]
    %v4546 = vld [vmem:[%s4079 + $0x102] sm:$0xff]
    %v4547 = vld [vmem:[%s4079 + $0x112] sm:$0xff]
    %s4548 = scalar_lea.vmem [#allocation6], 1024
    %v4549 = vld [vmem:[%s4548] sm:$0xff]
    %v4550 = vld [vmem:[%s4548 + $0x8] sm:$0xff]
    %v4551 = vld [vmem:[%s4548 + $0x10] sm:$0xff]
    %v4552 = vld [vmem:[%s4548 + $0x18] sm:$0xff]
    %v4553 = vld [vmem:[%s4548 + $0x20] sm:$0xff]
    %v4554 = vld [vmem:[%s4548 + $0x28] sm:$0xff]
    %v4555 = vld [vmem:[%s4548 + $0x30] sm:$0xff]
    %v4556 = vld [vmem:[%s4548 + $0x38] sm:$0xff]
    %v4557 = vld [vmem:[%s4548 + $0x40] sm:$0xff]
    %v4558 = vld [vmem:[%s4548 + $0x48] sm:$0xff]
    %v4559 = vld [vmem:[%s4548 + $0x50] sm:$0xff]
    %v4560 = vld [vmem:[%s4548 + $0x58] sm:$0xff]
    %v4561 = vld [vmem:[%s4548 + $0x60] sm:$0xff]
    %v4562 = vld [vmem:[%s4548 + $0x68] sm:$0xff]
    %v4563 = vld [vmem:[%s4548 + $0x70] sm:$0xff]
    %v4564 = vld [vmem:[%s4548 + $0x78] sm:$0xff]
    %4565 = vmatprep.subr.mxu0 0.0
    %4566 = vmatpush1.msra.mxu0 %v4549
    %4567 = vmatprep.subr.mxu0 0.0
    %4568 = vmatpush1.msra.mxu0 %v4550
    %4569 = vmatprep.subr.mxu0 0.0
    %4570 = vmatpush1.msra.mxu0 %v4551
    %4571 = vmatprep.subr.mxu0 0.0
    %4572 = vmatpush1.msra.mxu0 %v4552
    %4573 = vmatprep.subr.mxu0 0.0
    %4574 = vmatpush1.msra.mxu0 %v4553
    %4575 = vmatprep.subr.mxu0 0.0
    %4576 = vmatpush1.msra.mxu0 %v4554
    %4577 = vmatprep.subr.mxu0 0.0
    %4578 = vmatpush1.msra.mxu0 %v4555
    %4579 = vmatprep.subr.mxu0 0.0
    %4580 = vmatpush1.msra.mxu0 %v4556
    %4581 = vmatprep.subr.mxu0 0.0
    %4582 = vmatpush1.msra.mxu0 %v4557
    %4583 = vmatprep.subr.mxu0 0.0
    %4584 = vmatpush1.msra.mxu0 %v4558
    %4585 = vmatprep.subr.mxu0 0.0
    %4586 = vmatpush1.msra.mxu0 %v4559
    %4587 = vmatprep.subr.mxu0 0.0
    %4588 = vmatpush1.msra.mxu0 %v4560
    %4589 = vmatprep.subr.mxu0 0.0
    %4590 = vmatpush1.msra.mxu0 %v4561
    %4591 = vmatprep.subr.mxu0 0.0
    %4592 = vmatpush1.msra.mxu0 %v4562
    %4593 = vmatprep.subr.mxu0 0.0
    %4594 = vmatpush1.msra.mxu0 %v4563
    %4595 = vmatprep.subr.mxu0 0.0
    %4596 = vmatpush1.msra.mxu0 %v4564
    %4597 = vmatprep.subr.mxu0 0.0
    %4598 = vmatpush1.msra.mxu0 0.0
    %4599 = vmatprep.subr.mxu0 0.0
    %4600 = vmatpush1.msra.mxu0 0.0
    %4601 = vmatprep.subr.mxu0 0.0
    %4602 = vmatpush1.msra.mxu0 0.0
    %4603 = vmatprep.subr.mxu0 0.0
    %4604 = vmatpush1.msra.mxu0 0.0
    %4605 = vmatprep.subr.mxu0 0.0
    %4606 = vmatpush1.msra.mxu0 0.0
    %4607 = vmatprep.subr.mxu0 0.0
    %4608 = vmatpush1.msra.mxu0 0.0
    %4609 = vmatprep.subr.mxu0 0.0
    %4610 = vmatpush1.msra.mxu0 0.0
    %4611 = vmatprep.subr.mxu0 0.0
    %4612 = vmatpush1.msra.mxu0 0.0
    %4613 = vmatprep.subr.mxu0 0.0
    %4614 = vmatpush1.msra.mxu0 0.0
    %4615 = vmatprep.subr.mxu0 0.0
    %4616 = vmatpush1.msra.mxu0 0.0
    %4617 = vmatprep.subr.mxu0 0.0
    %4618 = vmatpush1.msra.mxu0 0.0
    %4619 = vmatprep.subr.mxu0 0.0
    %4620 = vmatpush1.msra.mxu0 0.0
    %4621 = vmatprep.subr.mxu0 0.0
    %4622 = vmatpush1.msra.mxu0 0.0
    %4623 = vmatprep.subr.mxu0 0.0
    %4624 = vmatpush1.msra.mxu0 0.0
    %4625 = vmatprep.subr.mxu0 0.0
    %4626 = vmatpush1.msra.mxu0 0.0
    %4627 = vmatprep.subr.mxu0 0.0
    %4628 = vmatpush1.msra.mxu0 0.0
    %4629 = vmatprep.mubr.f32.mxu0 0.0
    %4630 = vmatmul.mubr.f32.gmra.mrb[0].mxu0 %v4532
    %v4631 = vpop.f32.mrb[0].mxu0
    %v4632 = vadd.f32 0.0, %v4631
    %v4633 = vpop.f32.mrb[0].mxu0
    %4634 = vmatprep.mubr.f32.mxu0 0.0
    %4635 = vmatmul.mubr.f32.gmra.mrb[0].mxu0 %v4533
    %v4636 = vpop.f32.mrb[0].mxu0
    %v4637 = vadd.f32 0.0, %v4636
    %v4638 = vpop.f32.mrb[0].mxu0
    %4639 = vmatprep.mubr.f32.mxu0 0.0
    %4640 = vmatmul.mubr.f32.gmra.mrb[0].mxu0 %v4534
    %v4641 = vpop.f32.mrb[0].mxu0
    %v4642 = vadd.f32 0.0, %v4641
    %v4643 = vpop.f32.mrb[0].mxu0
    %4644 = vmatprep.mubr.f32.mxu0 0.0
    %4645 = vmatmul.mubr.f32.gmra.mrb[0].mxu0 %v4535
    %v4646 = vpop.f32.mrb[0].mxu0
    %v4647 = vadd.f32 0.0, %v4646
    %v4648 = vpop.f32.mrb[0].mxu0
    %4649 = vmatprep.mubr.f32.mxu0 0.0
    %4650 = vmatmul.mubr.f32.gmra.mrb[0].mxu0 %v4536
    %v4651 = vpop.f32.mrb[0].mxu0
    %v4652 = vadd.f32 0.0, %v4651
    %v4653 = vpop.f32.mrb[0].mxu0
    %4654 = vmatprep.mubr.f32.mxu0 0.0
    %4655 = vmatmul.mubr.f32.gmra.mrb[0].mxu0 %v4537
    %v4656 = vpop.f32.mrb[0].mxu0
    %v4657 = vadd.f32 0.0, %v4656
    %v4658 = vpop.f32.mrb[0].mxu0
    %4659 = vmatprep.mubr.f32.mxu0 0.0
    %4660 = vmatmul.mubr.f32.gmra.mrb[0].mxu0 %v4538
    %v4661 = vpop.f32.mrb[0].mxu0
    %v4662 = vadd.f32 0.0, %v4661
    %v4663 = vpop.f32.mrb[0].mxu0
    %4664 = vmatprep.mubr.f32.mxu0 0.0
    %4665 = vmatmul.mubr.f32.gmra.mrb[0].mxu0 %v4539
    %v4666 = vpop.f32.mrb[0].mxu0
    %v4667 = vadd.f32 0.0, %v4666
    %v4668 = vpop.f32.mrb[0].mxu0
    %4669 = vmatprep.mubr.f32.mxu0 0.0
    %4670 = vmatmul.mubr.f32.gmra.mrb[0].mxu0 %v4540
    %v4671 = vpop.f32.mrb[0].mxu0
    %v4672 = vadd.f32 0.0, %v4671
    %v4673 = vpop.f32.mrb[0].mxu0
    %4674 = vmatprep.mubr.f32.mxu0 0.0
    %4675 = vmatmul.mubr.f32.gmra.mrb[0].mxu0 %v4541
    %v4676 = vpop.f32.mrb[0].mxu0
    %v4677 = vadd.f32 0.0, %v4676
    %v4678 = vpop.f32.mrb[0].mxu0
    %4679 = vmatprep.mubr.f32.mxu0 0.0
    %4680 = vmatmul.mubr.f32.gmra.mrb[0].mxu0 %v4542
    %v4681 = vpop.f32.mrb[0].mxu0
    %v4682 = vadd.f32 0.0, %v4681
    %v4683 = vpop.f32.mrb[0].mxu0
    %4684 = vmatprep.mubr.f32.mxu0 0.0
    %4685 = vmatmul.mubr.f32.gmra.mrb[0].mxu0 %v4543
    %v4686 = vpop.f32.mrb[0].mxu0
    %v4687 = vadd.f32 0.0, %v4686
    %v4688 = vpop.f32.mrb[0].mxu0
    %4689 = vmatprep.mubr.f32.mxu0 0.0
    %4690 = vmatmul.mubr.f32.gmra.mrb[0].mxu0 %v4544
    %v4691 = vpop.f32.mrb[0].mxu0
    %v4692 = vadd.f32 0.0, %v4691
    %v4693 = vpop.f32.mrb[0].mxu0
    %4694 = vmatprep.mubr.f32.mxu0 0.0
    %4695 = vmatmul.mubr.f32.gmra.mrb[0].mxu0 %v4545
    %v4696 = vpop.f32.mrb[0].mxu0
    %v4697 = vadd.f32 0.0, %v4696
    %v4698 = vpop.f32.mrb[0].mxu0
    %4699 = vmatprep.mubr.f32.mxu0 0.0
    %4700 = vmatmul.mubr.f32.gmra.mrb[0].mxu0 %v4546
    %v4701 = vpop.f32.mrb[0].mxu0
    %v4702 = vadd.f32 0.0, %v4701
    %v4703 = vpop.f32.mrb[0].mxu0
    %4704 = vmatprep.mubr.f32.mxu0 0.0
    %4705 = vmatmul.mubr.f32.gmra.mrb[0].mxu0 %v4547
    %v4706 = vpop.f32.mrb[0].mxu0
    %v4707 = vadd.f32 0.0, %v4706
    %v4708 = vpop.f32.mrb[0].mxu0
    %4709 = vdwg.mxu0
    %v4710 = vld [vmem:[#allocation5] sm:$0xff]
    %v4711 = vld [vmem:[#allocation5 + $0x8] sm:$0xff]
    %v4712 = vld [vmem:[#allocation5 + $0x10] sm:$0xff]
    %v4713 = vld [vmem:[#allocation5 + $0x18] sm:$0xff]
    %v4714 = vld [vmem:[#allocation5 + $0x20] sm:$0xff]
    %v4715 = vld [vmem:[#allocation5 + $0x28] sm:$0xff]
    %v4716 = vld [vmem:[#allocation5 + $0x30] sm:$0xff]
    %v4717 = vld [vmem:[#allocation5 + $0x38] sm:$0xff]
    %v4718 = vld [vmem:[#allocation5 + $0x40] sm:$0xff]
    %v4719 = vld [vmem:[#allocation5 + $0x48] sm:$0xff]
    %v4720 = vld [vmem:[#allocation5 + $0x50] sm:$0xff]
    %v4721 = vld [vmem:[#allocation5 + $0x58] sm:$0xff]
    %v4722 = vld [vmem:[#allocation5 + $0x60] sm:$0xff]
    %v4723 = vld [vmem:[#allocation5 + $0x68] sm:$0xff]
    %v4724 = vld [vmem:[#allocation5 + $0x70] sm:$0xff]
    %v4725 = vld [vmem:[#allocation5 + $0x78] sm:$0xff]
    %v4726 = vadd.f32 %v4710, %v4632
    %v4727 = vadd.f32 %v4711, %v4637
    %v4728 = vadd.f32 %v4712, %v4642
    %v4729 = vadd.f32 %v4713, %v4647
    %v4730 = vadd.f32 %v4714, %v4652
    %v4731 = vadd.f32 %v4715, %v4657
    %v4732 = vadd.f32 %v4716, %v4662
    %v4733 = vadd.f32 %v4717, %v4667
    %v4734 = vadd.f32 %v4718, %v4672
    %v4735 = vadd.f32 %v4719, %v4677
    %v4736 = vadd.f32 %v4720, %v4682
    %v4737 = vadd.f32 %v4721, %v4687
    %v4738 = vadd.f32 %v4722, %v4692
    %v4739 = vadd.f32 %v4723, %v4697
    %v4740 = vadd.f32 %v4724, %v4702
    %v4741 = vadd.f32 %v4725, %v4707
    %4742 = vst [vmem:[#allocation5] sm:$0xff] %v4726
    %4743 = vst [vmem:[#allocation5 + $0x8] sm:$0xff] %v4727
    %4744 = vst [vmem:[#allocation5 + $0x10] sm:$0xff] %v4728
    %4745 = vst [vmem:[#allocation5 + $0x18] sm:$0xff] %v4729
    %4746 = vst [vmem:[#allocation5 + $0x20] sm:$0xff] %v4730
    %4747 = vst [vmem:[#allocation5 + $0x28] sm:$0xff] %v4731
    %4748 = vst [vmem:[#allocation5 + $0x30] sm:$0xff] %v4732
    %4749 = vst [vmem:[#allocation5 + $0x38] sm:$0xff] %v4733
    %4750 = vst [vmem:[#allocation5 + $0x40] sm:$0xff] %v4734
    %4751 = vst [vmem:[#allocation5 + $0x48] sm:$0xff] %v4735
    %4752 = vst [vmem:[#allocation5 + $0x50] sm:$0xff] %v4736
    %4753 = vst [vmem:[#allocation5 + $0x58] sm:$0xff] %v4737
    %4754 = vst [vmem:[#allocation5 + $0x60] sm:$0xff] %v4738
    %4755 = vst [vmem:[#allocation5 + $0x68] sm:$0xff] %v4739
    %4756 = vst [vmem:[#allocation5 + $0x70] sm:$0xff] %v4740
    %4757 = vst [vmem:[#allocation5 + $0x78] sm:$0xff] %v4741
    %v4758 = vld [vmem:[#allocation5] sm:$0xff]
    %v4759 = vld [vmem:[#allocation5 + $0x8] sm:$0xff]
    %v4760 = vld [vmem:[#allocation5 + $0x10] sm:$0xff]
    %v4761 = vld [vmem:[#allocation5 + $0x18] sm:$0xff]
    %v4762 = vld [vmem:[#allocation5 + $0x20] sm:$0xff]
    %v4763 = vld [vmem:[#allocation5 + $0x28] sm:$0xff]
    %v4764 = vld [vmem:[#allocation5 + $0x30] sm:$0xff]
    %v4765 = vld [vmem:[#allocation5 + $0x38] sm:$0xff]
    %v4766 = vld [vmem:[#allocation5 + $0x40] sm:$0xff]
    %v4767 = vld [vmem:[#allocation5 + $0x48] sm:$0xff]
    %v4768 = vld [vmem:[#allocation5 + $0x50] sm:$0xff]
    %v4769 = vld [vmem:[#allocation5 + $0x58] sm:$0xff]
    %v4770 = vld [vmem:[#allocation5 + $0x60] sm:$0xff]
    %v4771 = vld [vmem:[#allocation5 + $0x68] sm:$0xff]
    %v4772 = vld [vmem:[#allocation5 + $0x70] sm:$0xff]
    %v4773 = vld [vmem:[#allocation5 + $0x78] sm:$0xff]
    %v4774 = vld [vmem:[%s5] sm:$0x1]
    %v4776 = vlaneseq
    %v4777 = vshrl.u32 %v4776, 7
    %v4778 = vsub.s32 0, %v4777
    %v4779 = vrot.slane %v4774, %v4778
    %v4781 = vmul.f32 %v4758, %v4779
    %v4782 = vmul.f32 %v4759, %v4779
    %v4783 = vmul.f32 %v4760, %v4779
    %v4784 = vmul.f32 %v4761, %v4779
    %v4785 = vmul.f32 %v4762, %v4779
    %v4786 = vmul.f32 %v4763, %v4779
    %v4787 = vmul.f32 %v4764, %v4779
    %v4788 = vmul.f32 %v4765, %v4779
    %v4789 = vmul.f32 %v4766, %v4779
    %v4790 = vmul.f32 %v4767, %v4779
    %v4791 = vmul.f32 %v4768, %v4779
    %v4792 = vmul.f32 %v4769, %v4779
    %v4793 = vmul.f32 %v4770, %v4779
    %v4794 = vmul.f32 %v4771, %v4779
    %v4795 = vmul.f32 %v4772, %v4779
    %v4796 = vmul.f32 %v4773, %v4779
    %v4797 = vld [vmem:[%s6] sm:$0x1]
    %v4799 = vlaneseq
    %v4800 = vshrl.u32 %v4799, 7
    %v4801 = vsub.s32 0, %v4800
    %v4802 = vrot.slane %v4797, %v4801
    %v4804 = vadd.f32 %v4781, %v4802
    %v4805 = vadd.f32 %v4782, %v4802
    %v4806 = vadd.f32 %v4783, %v4802
    %v4807 = vadd.f32 %v4784, %v4802
    %v4808 = vadd.f32 %v4785, %v4802
    %v4809 = vadd.f32 %v4786, %v4802
    %v4810 = vadd.f32 %v4787, %v4802
    %v4811 = vadd.f32 %v4788, %v4802
    %v4812 = vadd.f32 %v4789, %v4802
    %v4813 = vadd.f32 %v4790, %v4802
    %v4814 = vadd.f32 %v4791, %v4802
    %v4815 = vadd.f32 %v4792, %v4802
    %v4816 = vadd.f32 %v4793, %v4802
    %v4817 = vadd.f32 %v4794, %v4802
    %v4818 = vadd.f32 %v4795, %v4802
    %v4819 = vadd.f32 %v4796, %v4802
    %v4820 = vmax.f32 %v4804, 0.0
    %v4821 = vmax.f32 %v4805, 0.0
    %v4822 = vmax.f32 %v4806, 0.0
    %v4823 = vmax.f32 %v4807, 0.0
    %v4824 = vmax.f32 %v4808, 0.0
    %v4825 = vmax.f32 %v4809, 0.0
    %v4826 = vmax.f32 %v4810, 0.0
    %v4827 = vmax.f32 %v4811, 0.0
    %v4828 = vmax.f32 %v4812, 0.0
    %v4829 = vmax.f32 %v4813, 0.0
    %v4830 = vmax.f32 %v4814, 0.0
    %v4831 = vmax.f32 %v4815, 0.0
    %v4832 = vmax.f32 %v4816, 0.0
    %v4833 = vmax.f32 %v4817, 0.0
    %v4834 = vmax.f32 %v4818, 0.0
    %v4835 = vmax.f32 %v4819, 0.0
    %4836 = vst [vmem:[#allocation9] sm:$0xff] %v4820
    %4837 = vst [vmem:[#allocation9 + $0x8] sm:$0xff] %v4821
    %4838 = vst [vmem:[#allocation9 + $0x10] sm:$0xff] %v4822
    %4839 = vst [vmem:[#allocation9 + $0x18] sm:$0xff] %v4823
    %4840 = vst [vmem:[#allocation9 + $0x20] sm:$0xff] %v4824
    %4841 = vst [vmem:[#allocation9 + $0x28] sm:$0xff] %v4825
    %4842 = vst [vmem:[#allocation9 + $0x30] sm:$0xff] %v4826
    %4843 = vst [vmem:[#allocation9 + $0x38] sm:$0xff] %v4827
    %4844 = vst [vmem:[#allocation9 + $0x40] sm:$0xff] %v4828
    %4845 = vst [vmem:[#allocation9 + $0x48] sm:$0xff] %v4829
    %4846 = vst [vmem:[#allocation9 + $0x50] sm:$0xff] %v4830
    %4847 = vst [vmem:[#allocation9 + $0x58] sm:$0xff] %v4831
    %4848 = vst [vmem:[#allocation9 + $0x60] sm:$0xff] %v4832
    %4849 = vst [vmem:[#allocation9 + $0x68] sm:$0xff] %v4833
    %4850 = vst [vmem:[#allocation9 + $0x70] sm:$0xff] %v4834
    %4851 = vst [vmem:[#allocation9 + $0x78] sm:$0xff] %v4835
    // Predicated region
    $region34: #{tpu_custom_call.1} parent=1 // pred_check
      _
    $region35: #{tpu_custom_call.1} parent=1 // pred_check_branch
      %4853 = sbr.rel (0) target = $region37
    $region36: #{tpu_custom_call.1} parent=1 // pred_region
      %s4855 = ssub.s32 2048, 2048
      %4856 = vsyncadd [#allocation8], %s4855
      %s4857 = sshll.u32 [#allocation9], 4
      %s4858 = int_to_ptr.vmem [resolvable:$true] %s4857
      %4863 = dma.vmem_to_hbm [thread:$0]  %s4858, 2048, %s7, [#allocation8], 128, 128, 8
    $region37: #{tpu_custom_call.1} parent=1 // pred_fallthru
      _
    // Predicated region
    $region38: #{tpu_custom_call.1} parent=1 // pred_check
      _
    $region39: #{tpu_custom_call.1} parent=1 // pred_check_branch
      %4865 = sbr.rel (0) target = $region41
    $region40: #{tpu_custom_call.1} parent=1 // pred_region
      %4866 = dma.done [#allocation8], 2048
    $region41: #{tpu_custom_call.1} parent=1 // pred_fallthru
      _
    %4867 = vsyncpa [#allocation7], 1
    %4868 = vsyncpa [#allocation8], 1

</llo_original>
